<compile_context>
chip_gen: v6e
topology: v6e:2x2x1
jax: 0.10.0
libtpu: 0.0.40
codegen_flags: <defaults>
</compile_context>

<pallas_src>
import functools
import math

import jax
import jax.numpy as jnp
from jax.experimental import pallas as pl
from jax.experimental.pallas import tpu as pltpu

_LOG_EPS = math.log(1e-5)   # clamp(min=1e-5) on exp(t) == clip t at log(1e-5)


# ----------------------------------------------------------------------------
# Kernel
# ----------------------------------------------------------------------------
def mcp_kernel(
    # batch-tiled activation: [n, S+R] = [state | relative_target]
    x_ref,
    # fused first layer: [S+R, 1280] = [gating_l1 | primitives_l1 | g3_rel]
    w_cat, b_sc,
    # gating branch
    w_gs2, b_gs2, w_g3s, b_g3, w_g4, b_g4,
    # primitives trunk + fused per-primitive layers
    w_p2, b_p2, w_p3, b_p3, w_p4, b_p4,
    # exact 0/1 helpers for the vectorized epilogue
    e_bc, f_red,
    # lane-fused output: [n, 2A] = [mu | log_std]
    out_ref,
):
    f32, bf16 = jnp.float32, jnp.bfloat16
    a = out_ref.shape[1] // 2
    pa = f_red.shape[0]          # P * A

    # ---- one shared matmul: gating_l1, primitives_l1 and the rel->g3 slice
    x = x_ref[...].astype(bf16)
    y0 = jnp.dot(x, w_cat[...], preferred_element_type=f32)           # [n, 1280]
    sc = jnp.maximum(y0[:, :1024] + b_sc[...], 0.0)
    g1 = sc[:, :512]             # relu(gating_state_l1(state))
    p1 = sc[:, 512:]             # relu(primitives_l1(state))
    r3 = y0[:, 1024:]            # raw rel_target contribution to gating_l3

    # ---- gating branch: relu(L2) -> relu(L3(cat)) -> sigmoid(L4)
    g2 = jnp.maximum(
        jnp.dot(g1.astype(bf16), w_gs2[...], preferred_element_type=f32)
        + b_gs2[...], 0.0)
    g3 = jnp.maximum(
        jnp.dot(g2.astype(bf16), w_g3s[...], preferred_element_type=f32)
        + r3 + b_g3[...], 0.0)
    gating = jax.nn.sigmoid(
        jnp.dot(g3.astype(bf16), w_g4[...], preferred_element_type=f32)
        + b_g4[...])                                                    # [n, P]

    # ---- primitives trunk (all P l3/l4 layers fused into single matmuls)
    p2 = jnp.maximum(
        jnp.dot(p1.astype(bf16), w_p2[...], preferred_element_type=f32)
        + b_p2[...], 0.0)
    h_all = jnp.maximum(
        jnp.dot(p2.astype(bf16), w_p3[...], preferred_element_type=f32)
        + b_p3[...], 0.0)                                               # [n, P*256]
    y_all = (jnp.dot(h_all.astype(bf16), w_p4[...], preferred_element_type=f32)
             + b_p4[...])                                               # [n, 2*P*A]

    means = y_all[:, :pa]        # [n, P*A]   per-primitive means
    tlog = y_all[:, pa:]         # [n, P*A]   per-primitive log-std logits

    # x_i = gating_i / max(exp(clip(t,-20,20)), 1e-5) == gating_i * exp(-clip(t, log(1e-5), 20))
    inv_std = jnp.exp(-jnp.clip(tlog, _LOG_EPS, 20.0))                  # f32 EUP, no approx recip
    g_b = jnp.dot(gating, e_bc[...], preferred_element_type=f32)        # exact 0/1 broadcast [n, P*A]
    xg = g_b * inv_std
    std_acc = jnp.dot(xg, f_red[...], preferred_element_type=f32)       # exact 0/1 reduce over P -> [n, A]
    mu_acc = jnp.dot(xg * means, f_red[...], preferred_element_type=f32)

    std = 1.0 / jnp.maximum(std_acc, 1e-5)
    mu = mu_acc * std
    log_std = jnp.log(jnp.maximum(std, 1e-5))

    out_ref[:, :a] = mu
    out_ref[:, a:] = log_std


# ----------------------------------------------------------------------------
# Wrapper
# ----------------------------------------------------------------------------
def _pick_block_n(n, requested):
    if requested is not None:
        bn = min(requested, n)
        assert n % bn == 0, "flattened batch must be divisible by block_n"
        return bn
    # Fattest tile <= 1024 rows (safe inside v7x's 64 MiB VMEM) that divides n
    # while keeping >= 2 grid steps so v7x megacore shards the parallel axis.
    cap = min(1024, n)
    if n >= 16:
        cap = min(cap, n // 2)
    for bn in (1024, 512, 256, 128, 64, 32, 16, 8):
        if bn <= cap and n % bn == 0:
            return bn
    return n


@functools.partial(jax.jit, static_argnames=("action_size", "block_n"))
def mcp_vision_forward(state, rel_target, params, *, action_size, block_n=None):
    n = state.shape[0]
    # rel_target only feeds gating_l3; its matmul is folded into the first
    # fused weight, so one concatenated activation is the only tiled input.
    x = jnp.concatenate([state, rel_target], axis=-1).astype(jnp.float32)
    d_in = x.shape[1]
    bn = _pick_block_n(n, block_n)

    row_in = pl.BlockSpec((bn, d_in), lambda i: (i, 0))
    out_spec = pl.BlockSpec((bn, 2 * action_size), lambda i: (i, 0))
    # Weights: whole-array VMEM resident, single buffer (no per-step DMA).
    w_spec = pl.BlockSpec(memory_space=pltpu.MemorySpace.VMEM)

    out = pl.pallas_call(
        mcp_kernel,
        out_shape=jax.ShapeDtypeStruct((n, 2 * action_size), jnp.float32),
        grid=(n // bn,),
        in_specs=[row_in] + [w_spec] * len(params),
        out_specs=out_spec,
        compiler_params=pltpu.CompilerParams(
            dimension_semantics=("parallel",),
            vmem_limit_bytes=48 * 1024 * 1024,   # <= v7x 64 MiB physical
        ),
    )(x, *params)
    return out[:, :action_size], out[:, action_size:]


# ----------------------------------------------------------------------------
# Parameter init (torch Linear default U(-1/sqrt(fan_in), +)), packed into the
# fused bf16 layout the kernel expects + raw f32 copies for the reference.
# ----------------------------------------------------------------------------
def init_params(key, s_dim, r_dim, action_size, num_primitives):
    f32, bf16 = jnp.float32, jnp.bfloat16
    a, p = action_size, num_primitives

    def linear(k, fan_in, fan_out):
        k1, k2 = jax.random.split(k)
        bound = 1.0 / float(fan_in) ** 0.5
        w_t = jax.random.uniform(k1, (fan_in, fan_out), f32, -bound, bound)
        b = jax.random.uniform(k2, (1, fan_out), f32, -bound, bound)
        return w_t, b

    keys = jax.random.split(key, 6 + 2 * p)
    w_gs1, b_gs1 = linear(keys[0], s_dim, 512)
    w_gs2, b_gs2 = linear(keys[1], 512, 256)
    w_g3, b_g3 = linear(keys[2], 256 + r_dim, 256)       # gating_l3 on cat(g2, rel)
    w_g3s, w_g3r = w_g3[:256], w_g3[256:]
    w_g4, b_g4 = linear(keys[3], 256, p)
    w_p1, b_p1 = linear(keys[4], s_dim, 512)
    w_p2, b_p2 = linear(keys[5], 512, 256)

    w3s, b3s, w4s, b4s = [], [], [], []
    for i in range(p):
        w3, b3 = linear(keys[6 + 2 * i], 256, 256)
        w4, b4 = linear(keys[7 + 2 * i], 256, 2 * a)
        w3s.append(w3); b3s.append(b3); w4s.append(w4); b4s.append(b4)

    # (1) fused first weight: zero off-blocks keep the fusion algebraically exact.
    w_cat = jnp.zeros((s_dim + r_dim, 1024 + 256), f32)
    w_cat = w_cat.at[:s_dim, :512].set(w_gs1)
    w_cat = w_cat.at[:s_dim, 512:1024].set(w_p1)
    w_cat = w_cat.at[s_dim:, 1024:].set(w_g3r)
    b_sc = jnp.concatenate([b_gs1, b_p1], axis=1)                  # [1, 1024]

    # (2) all per-primitive l3 layers in one lane-dense matrix.
    w_p3 = jnp.concatenate(w3s, axis=1)                            # [256, P*256]
    b_p3 = jnp.concatenate(b3s, axis=1)

    # (3) all per-primitive l4 layers as one block-diagonal matrix, columns
    #     packed [all means | all log-std logits].
    w_p4m = jnp.zeros((p * 256, p * a), f32)
    w_p4t = jnp.zeros((p * 256, p * a), f32)
    b_p4m = jnp.zeros((1, p * a), f32)
    b_p4t = jnp.zeros((1, p * a), f32)
    for i in range(p):
        w_p4m = w_p4m.at[i * 256:(i + 1) * 256, i * a:(i + 1) * a].set(w4s[i][:, :a])
        w_p4t = w_p4t.at[i * 256:(i + 1) * 256, i * a:(i + 1) * a].set(w4s[i][:, a:])
        b_p4m = b_p4m.at[:, i * a:(i + 1) * a].set(b4s[i][:, :a])
        b_p4t = b_p4t.at[:, i * a:(i + 1) * a].set(b4s[i][:, a:])
    w_p4 = jnp.concatenate([w_p4m, w_p4t], axis=1)                 # [P*256, 2*P*A]
    b_p4 = jnp.concatenate([b_p4m, b_p4t], axis=1)                 # [1, 2*P*A]

    # (4) exact 0/1 helpers for the vectorized epilogue (kept f32).
    e_bc = jnp.repeat(jnp.eye(p, dtype=f32), a, axis=1)            # [P, P*A]
    f_red = jnp.tile(jnp.eye(a, dtype=f32), (p, 1))                # [P*A, A]

    # MXU-facing weights in bf16 (native MXU dtype on v5e/v6e/v7x); biases and
    # 0/1 helpers stay f32 (they join the f32 accumulators on the VPU path).
    kernel_params = (
        w_cat.astype(bf16), b_sc,
        w_gs2.astype(bf16), b_gs2,
        w_g3s.astype(bf16), b_g3,
        w_g4.astype(bf16), b_g4,
        w_p2.astype(bf16), b_p2,
        w_p3.astype(bf16), b_p3,
        w_p4.astype(bf16), b_p4,
        e_bc, f_red,
    )
    raw_params = dict(
        w_gs1=w_gs1, b_gs1=b_gs1, w_gs2=w_gs2, b_gs2=b_gs2,
        w_g3=w_g3, b_g3=b_g3, w_g4=w_g4, b_g4=b_g4,
        w_p1=w_p1, b_p1=b_p1, w_p2=w_p2, b_p2=b_p2,
        w3s=w3s, b3s=b3s, w4s=w4s, b4s=b4s,
    )
    return kernel_params, raw_params


# ----------------------------------------------------------------------------
# Pure-JAX reference: mirrors the PyTorch forward exactly (exp/clamp/div) with
# bf16 operands at every dot so it matches the kernel's MXU precision.
# ----------------------------------------------------------------------------
def reference_forward(state, rel, raw, action_size, num_primitives):
    f32, bf16 = jnp.float32, jnp.bfloat16
    relu = jax.nn.relu

    def bdot(x, w):
        return jnp.dot(x.astype(bf16), w.astype(bf16), preferred_element_type=f32)

    g1 = relu(bdot(state, raw["w_gs1"]) + raw["b_gs1"])
    g2 = relu(bdot(g1, raw["w_gs2"]) + raw["b_gs2"])
    cat = jnp.concatenate([g2, rel], axis=-1)
    g3 = relu(bdot(cat, raw["w_g3"]) + raw["b_g3"])
    gating = jax.nn.sigmoid(bdot(g3, raw["w_g4"]) + raw["b_g4"])
    p1 = relu(bdot(state, raw["w_p1"]) + raw["b_p1"])
    p2 = relu(bdot(p1, raw["w_p2"]) + raw["b_p2"])

    n = state.shape[0]
    std = jnp.zeros((n, action_size), f32)
    mu = jnp.zeros((n, action_size), f32)
    for i in range(num_primitives):
        h = relu(bdot(p2, raw["w3s"][i]) + raw["b3s"][i])
        y = bdot(h, raw["w4s"][i]) + raw["b4s"][i]
        mean_i = y[:, :action_size]
        std_i = jnp.exp(jnp.clip(y[:, action_size:], -20.0, 20.0))
        x = gating[:, i:i + 1] / jnp.maximum(std_i, 1e-5)
        std = std + x
        mu = mu + x * mean_i
    std = 1.0 / jnp.maximum(std, 1e-5)
    mu = mu * std
    log_std = jnp.log(jnp.maximum(std, 1e-5))
    return mu, log_std


# ----------------------------------------------------------------------------
if __name__ == "__main__":
    # Small, module-consistent shapes.
    N = 16           # T*B flattened batch
    S = 32           # observation_shape.state[0]
    R = 10           # observation_shape.goal.relative_target[0]
    A = 8            # action_size
    P = 4            # num_primitives
    H = W = 12       # observation_shape.goal.camera (unused by the forward)

    key = jax.random.PRNGKey(0)
    k_state, k_rel, k_cam, k_params = jax.random.split(key, 4)
    state = jax.random.normal(k_state, (N, S), jnp.float32)
    rel_target = jax.random.normal(k_rel, (N, R), jnp.float32)
    camera = jax.random.normal(k_cam, (N, H, W), jnp.float32)   # present but unused
    assert bool(jnp.all(jnp.isfinite(camera)))                  # mirrors torch NaN assert

    kernel_params, raw_params = init_params(k_params, S, R, A, P)

    mu, log_std = mcp_vision_forward(state, rel_target, kernel_params, action_size=A)
    jax.block_until_ready((mu, log_std))

    mu_ref, ls_ref = reference_forward(state, rel_target, raw_params, A, P)
    assert mu.shape == (N, A) and log_std.shape == (N, A)
    # Kernel and reference both use bf16 MXU operands; remaining differences
    # are summation-order / exp(-clip) rewrite only, well under 2e-3.
    assert jnp.allclose(mu, mu_ref, atol=2e-3, rtol=2e-3), "mu mismatch vs reference"
    assert jnp.allclose(log_std, ls_ref, atol=2e-3, rtol=2e-3), "log_std mismatch"

    # Larger batch exercising the tiled grid (>= 2 parallel steps / megacore).
    N2 = 1024
    k2a, k2b = jax.random.split(jax.random.PRNGKey(1))
    state2 = jax.random.normal(k2a, (N2, S), jnp.float32)
    rel2 = jax.random.normal(k2b, (N2, R), jnp.float32)
    mu2, ls2 = mcp_vision_forward(state2, rel2, kernel_params, action_size=A)
    jax.block_until_ready((mu2, ls2))
    mu2_ref, ls2_ref = reference_forward(state2, rel2, raw_params, A, P)
    assert jnp.allclose(mu2, mu2_ref, atol=2e-3, rtol=2e-3), "mu mismatch (tiled)"
    assert jnp.allclose(ls2, ls2_ref, atol=2e-3, rtol=2e-3), "log_std mismatch (tiled)"

    print("KERNEL_OK")
</pallas_src>

<mosaic_0001>
module attributes {stable_mosaic.version = 11 : i64} {
  func.func @mcp_kernel(%arg0: i32, %arg1: memref<8x42xf32, #tpu.memory_space<vmem>>, %arg2: memref<42x1280xbf16, #tpu.memory_space<vmem>>, %arg3: memref<1x1024xf32, #tpu.memory_space<vmem>>, %arg4: memref<512x256xbf16, #tpu.memory_space<vmem>>, %arg5: memref<1x256xf32, #tpu.memory_space<vmem>>, %arg6: memref<256x256xbf16, #tpu.memory_space<vmem>>, %arg7: memref<1x256xf32, #tpu.memory_space<vmem>>, %arg8: memref<256x4xbf16, #tpu.memory_space<vmem>>, %arg9: memref<1x4xf32, #tpu.memory_space<vmem>>, %arg10: memref<512x256xbf16, #tpu.memory_space<vmem>>, %arg11: memref<1x256xf32, #tpu.memory_space<vmem>>, %arg12: memref<256x1024xbf16, #tpu.memory_space<vmem>>, %arg13: memref<1x1024xf32, #tpu.memory_space<vmem>>, %arg14: memref<1024x64xbf16, #tpu.memory_space<vmem>>, %arg15: memref<1x64xf32, #tpu.memory_space<vmem>>, %arg16: memref<4x32xf32, #tpu.memory_space<vmem>>, %arg17: memref<32x8xf32, #tpu.memory_space<vmem>>, %arg18: memref<8x16xf32, #tpu.memory_space<vmem>>) attributes {dimension_semantics = [#tpu.dimension_semantics<parallel>], iteration_bounds = array<i64: 2>, scalar_prefetch = 0 : i64, scratch_operands = 0 : i64, tpu.core_type = #tpu.core_type<tc>, window_params = [{transform_indices = @transform_0, window_bounds = array<i64: 8, 42>}, {pipeline_mode = #tpu.pipeline_mode<synchronous>, transform_indices = @transform_1, window_bounds = array<i64: 42, 1280>}, {pipeline_mode = #tpu.pipeline_mode<synchronous>, transform_indices = @transform_2, window_bounds = array<i64: 1, 1024>}, {pipeline_mode = #tpu.pipeline_mode<synchronous>, transform_indices = @transform_3, window_bounds = array<i64: 512, 256>}, {pipeline_mode = #tpu.pipeline_mode<synchronous>, transform_indices = @transform_4, window_bounds = array<i64: 1, 256>}, {pipeline_mode = #tpu.pipeline_mode<synchronous>, transform_indices = @transform_5, window_bounds = array<i64: 256, 256>}, {pipeline_mode = #tpu.pipeline_mode<synchronous>, transform_indices = @transform_6, window_bounds = array<i64: 1, 256>}, {pipeline_mode = #tpu.pipeline_mode<synchronous>, transform_indices = @transform_7, window_bounds = array<i64: 256, 4>}, {pipeline_mode = #tpu.pipeline_mode<synchronous>, transform_indices = @transform_8, window_bounds = array<i64: 1, 4>}, {pipeline_mode = #tpu.pipeline_mode<synchronous>, transform_indices = @transform_9, window_bounds = array<i64: 512, 256>}, {pipeline_mode = #tpu.pipeline_mode<synchronous>, transform_indices = @transform_10, window_bounds = array<i64: 1, 256>}, {pipeline_mode = #tpu.pipeline_mode<synchronous>, transform_indices = @transform_11, window_bounds = array<i64: 256, 1024>}, {pipeline_mode = #tpu.pipeline_mode<synchronous>, transform_indices = @transform_12, window_bounds = array<i64: 1, 1024>}, {pipeline_mode = #tpu.pipeline_mode<synchronous>, transform_indices = @transform_13, window_bounds = array<i64: 1024, 64>}, {pipeline_mode = #tpu.pipeline_mode<synchronous>, transform_indices = @transform_14, window_bounds = array<i64: 1, 64>}, {pipeline_mode = #tpu.pipeline_mode<synchronous>, transform_indices = @transform_15, window_bounds = array<i64: 4, 32>}, {pipeline_mode = #tpu.pipeline_mode<synchronous>, transform_indices = @transform_16, window_bounds = array<i64: 32, 8>}, {transform_indices = @transform_17, window_bounds = array<i64: 8, 16>}]} {
    %c0 = arith.constant 0 : index
    %c0_0 = arith.constant 0 : index
    %0 = vector.load %arg1[%c0, %c0_0] : memref<8x42xf32, #tpu.memory_space<vmem>>, vector<8x42xf32>
    %1 = arith.truncf %0 : vector<8x42xf32> to vector<8x42xbf16>
    %c0_1 = arith.constant 0 : index
    %c0_2 = arith.constant 0 : index
    %2 = vector.load %arg2[%c0_1, %c0_2] : memref<42x1280xbf16, #tpu.memory_space<vmem>>, vector<42x1280xbf16>
    %cst = arith.constant dense<0.000000e+00> : vector<8x1280xf32>
    %3 = tpu.matmul %1, %2, %cst {dimension_numbers = #tpu.dot_dimension_numbers<[1], [0], [0], [1], [0, 0, 1, 1], [], []>} : vector<8x42xbf16>, vector<42x1280xbf16>, vector<8x1280xf32> -> vector<8x1280xf32>
    %4 = vector.extract_strided_slice %3 {offsets = [0, 0], sizes = [8, 1024], strides = [1, 1]} : vector<8x1280xf32> to vector<8x1024xf32>
    %c0_3 = arith.constant 0 : index
    %c0_4 = arith.constant 0 : index
    %5 = vector.load %arg3[%c0_3, %c0_4] : memref<1x1024xf32, #tpu.memory_space<vmem>>, vector<1x1024xf32>
    %6 = vector.broadcast %5 : vector<1x1024xf32> to vector<8x1024xf32>
    %7 = arith.addf %4, %6 : vector<8x1024xf32>
    %cst_5 = arith.constant 0.000000e+00 : f32
    %8 = vector.broadcast %cst_5 : f32 to vector<8x1024xf32>
    %9 = arith.maximumf %7, %8 : vector<8x1024xf32>
    %10 = vector.extract_strided_slice %9 {offsets = [0, 0], sizes = [8, 512], strides = [1, 1]} : vector<8x1024xf32> to vector<8x512xf32>
    %11 = vector.extract_strided_slice %9 {offsets = [0, 512], sizes = [8, 512], strides = [1, 1]} : vector<8x1024xf32> to vector<8x512xf32>
    %12 = vector.extract_strided_slice %3 {offsets = [0, 1024], sizes = [8, 256], strides = [1, 1]} : vector<8x1280xf32> to vector<8x256xf32>
    %13 = arith.truncf %10 : vector<8x512xf32> to vector<8x512xbf16>
    %c0_6 = arith.constant 0 : index
    %c0_7 = arith.constant 0 : index
    %14 = vector.load %arg4[%c0_6, %c0_7] : memref<512x256xbf16, #tpu.memory_space<vmem>>, vector<512x256xbf16>
    %cst_8 = arith.constant dense<0.000000e+00> : vector<8x256xf32>
    %15 = tpu.matmul %13, %14, %cst_8 {dimension_numbers = #tpu.dot_dimension_numbers<[1], [0], [0], [1], [0, 0, 1, 1], [], []>} : vector<8x512xbf16>, vector<512x256xbf16>, vector<8x256xf32> -> vector<8x256xf32>
    %c0_9 = arith.constant 0 : index
    %c0_10 = arith.constant 0 : index
    %16 = vector.load %arg5[%c0_9, %c0_10] : memref<1x256xf32, #tpu.memory_space<vmem>>, vector<1x256xf32>
    %17 = vector.broadcast %16 : vector<1x256xf32> to vector<8x256xf32>
    %18 = arith.addf %15, %17 : vector<8x256xf32>
    %cst_11 = arith.constant 0.000000e+00 : f32
    %19 = vector.broadcast %cst_11 : f32 to vector<8x256xf32>
    %20 = arith.maximumf %18, %19 : vector<8x256xf32>
    %21 = arith.truncf %20 : vector<8x256xf32> to vector<8x256xbf16>
    %c0_12 = arith.constant 0 : index
    %c0_13 = arith.constant 0 : index
    %22 = vector.load %arg6[%c0_12, %c0_13] : memref<256x256xbf16, #tpu.memory_space<vmem>>, vector<256x256xbf16>
    %cst_14 = arith.constant dense<0.000000e+00> : vector<8x256xf32>
    %23 = tpu.matmul %21, %22, %cst_14 {dimension_numbers = #tpu.dot_dimension_numbers<[1], [0], [0], [1], [0, 0, 1, 1], [], []>} : vector<8x256xbf16>, vector<256x256xbf16>, vector<8x256xf32> -> vector<8x256xf32>
    %24 = arith.addf %23, %12 : vector<8x256xf32>
    %c0_15 = arith.constant 0 : index
    %c0_16 = arith.constant 0 : index
    %25 = vector.load %arg7[%c0_15, %c0_16] : memref<1x256xf32, #tpu.memory_space<vmem>>, vector<1x256xf32>
    %26 = vector.broadcast %25 : vector<1x256xf32> to vector<8x256xf32>
    %27 = arith.addf %24, %26 : vector<8x256xf32>
    %cst_17 = arith.constant 0.000000e+00 : f32
    %28 = vector.broadcast %cst_17 : f32 to vector<8x256xf32>
    %29 = arith.maximumf %27, %28 : vector<8x256xf32>
    %30 = arith.truncf %29 : vector<8x256xf32> to vector<8x256xbf16>
    %c0_18 = arith.constant 0 : index
    %c0_19 = arith.constant 0 : index
    %31 = vector.load %arg8[%c0_18, %c0_19] : memref<256x4xbf16, #tpu.memory_space<vmem>>, vector<256x4xbf16>
    %cst_20 = arith.constant dense<0.000000e+00> : vector<8x4xf32>
    %32 = tpu.matmul %30, %31, %cst_20 {dimension_numbers = #tpu.dot_dimension_numbers<[1], [0], [0], [1], [0, 0, 1, 1], [], []>} : vector<8x256xbf16>, vector<256x4xbf16>, vector<8x4xf32> -> vector<8x4xf32>
    %c0_21 = arith.constant 0 : index
    %c0_22 = arith.constant 0 : index
    %33 = vector.load %arg9[%c0_21, %c0_22] : memref<1x4xf32, #tpu.memory_space<vmem>>, vector<1x4xf32>
    %34 = vector.broadcast %33 : vector<1x4xf32> to vector<8x4xf32>
    %35 = arith.addf %32, %34 : vector<8x4xf32>
    %36 = arith.negf %35 : vector<8x4xf32>
    %37 = math.exp %36 : vector<8x4xf32>
    %cst_23 = arith.constant 1.000000e+00 : f32
    %38 = vector.broadcast %cst_23 : f32 to vector<8x4xf32>
    %39 = arith.addf %38, %37 : vector<8x4xf32>
    %40 = arith.divf %38, %39 : vector<8x4xf32>
    %41 = arith.truncf %11 : vector<8x512xf32> to vector<8x512xbf16>
    %c0_24 = arith.constant 0 : index
    %c0_25 = arith.constant 0 : index
    %42 = vector.load %arg10[%c0_24, %c0_25] : memref<512x256xbf16, #tpu.memory_space<vmem>>, vector<512x256xbf16>
    %cst_26 = arith.constant dense<0.000000e+00> : vector<8x256xf32>
    %43 = tpu.matmul %41, %42, %cst_26 {dimension_numbers = #tpu.dot_dimension_numbers<[1], [0], [0], [1], [0, 0, 1, 1], [], []>} : vector<8x512xbf16>, vector<512x256xbf16>, vector<8x256xf32> -> vector<8x256xf32>
    %c0_27 = arith.constant 0 : index
    %c0_28 = arith.constant 0 : index
    %44 = vector.load %arg11[%c0_27, %c0_28] : memref<1x256xf32, #tpu.memory_space<vmem>>, vector<1x256xf32>
    %45 = vector.broadcast %44 : vector<1x256xf32> to vector<8x256xf32>
    %46 = arith.addf %43, %45 : vector<8x256xf32>
    %cst_29 = arith.constant 0.000000e+00 : f32
    %47 = vector.broadcast %cst_29 : f32 to vector<8x256xf32>
    %48 = arith.maximumf %46, %47 : vector<8x256xf32>
    %49 = arith.truncf %48 : vector<8x256xf32> to vector<8x256xbf16>
    %c0_30 = arith.constant 0 : index
    %c0_31 = arith.constant 0 : index
    %50 = vector.load %arg12[%c0_30, %c0_31] : memref<256x1024xbf16, #tpu.memory_space<vmem>>, vector<256x1024xbf16>
    %cst_32 = arith.constant dense<0.000000e+00> : vector<8x1024xf32>
    %51 = tpu.matmul %49, %50, %cst_32 {dimension_numbers = #tpu.dot_dimension_numbers<[1], [0], [0], [1], [0, 0, 1, 1], [], []>} : vector<8x256xbf16>, vector<256x1024xbf16>, vector<8x1024xf32> -> vector<8x1024xf32>
    %c0_33 = arith.constant 0 : index
    %c0_34 = arith.constant 0 : index
    %52 = vector.load %arg13[%c0_33, %c0_34] : memref<1x1024xf32, #tpu.memory_space<vmem>>, vector<1x1024xf32>
    %53 = vector.broadcast %52 : vector<1x1024xf32> to vector<8x1024xf32>
    %54 = arith.addf %51, %53 : vector<8x1024xf32>
    %cst_35 = arith.constant 0.000000e+00 : f32
    %55 = vector.broadcast %cst_35 : f32 to vector<8x1024xf32>
    %56 = arith.maximumf %54, %55 : vector<8x1024xf32>
    %57 = arith.truncf %56 : vector<8x1024xf32> to vector<8x1024xbf16>
    %c0_36 = arith.constant 0 : index
    %c0_37 = arith.constant 0 : index
    %58 = vector.load %arg14[%c0_36, %c0_37] : memref<1024x64xbf16, #tpu.memory_space<vmem>>, vector<1024x64xbf16>
    %cst_38 = arith.constant dense<0.000000e+00> : vector<8x64xf32>
    %59 = tpu.matmul %57, %58, %cst_38 {dimension_numbers = #tpu.dot_dimension_numbers<[1], [0], [0], [1], [0, 0, 1, 1], [], []>} : vector<8x1024xbf16>, vector<1024x64xbf16>, vector<8x64xf32> -> vector<8x64xf32>
    %c0_39 = arith.constant 0 : index
    %c0_40 = arith.constant 0 : index
    %60 = vector.load %arg15[%c0_39, %c0_40] : memref<1x64xf32, #tpu.memory_space<vmem>>, vector<1x64xf32>
    %61 = vector.broadcast %60 : vector<1x64xf32> to vector<8x64xf32>
    %62 = arith.addf %59, %61 : vector<8x64xf32>
    %63 = vector.extract_strided_slice %62 {offsets = [0, 0], sizes = [8, 32], strides = [1, 1]} : vector<8x64xf32> to vector<8x32xf32>
    %64 = vector.extract_strided_slice %62 {offsets = [0, 32], sizes = [8, 32], strides = [1, 1]} : vector<8x64xf32> to vector<8x32xf32>
    %cst_41 = arith.constant -11.5129251 : f32
    %cst_42 = arith.constant 2.000000e+01 : f32
    %65 = vector.broadcast %cst_41 : f32 to vector<8x32xf32>
    %66 = arith.maximumf %65, %64 : vector<8x32xf32>
    %67 = vector.broadcast %cst_42 : f32 to vector<8x32xf32>
    %68 = arith.minimumf %67, %66 : vector<8x32xf32>
    %cst_43 = arith.constant 0.000000e+00 : f32
    %69 = vector.broadcast %cst_43 : f32 to vector<8x32xf32>
    %70 = arith.subf %69, %68 : vector<8x32xf32>
    %71 = math.exp %70 : vector<8x32xf32>
    %c0_44 = arith.constant 0 : index
    %c0_45 = arith.constant 0 : index
    %72 = vector.load %arg16[%c0_44, %c0_45] : memref<4x32xf32, #tpu.memory_space<vmem>>, vector<4x32xf32>
    %cst_46 = arith.constant dense<0.000000e+00> : vector<8x32xf32>
    %73 = tpu.matmul %40, %72, %cst_46 {dimension_numbers = #tpu.dot_dimension_numbers<[1], [0], [0], [1], [0, 0, 1, 1], [], []>} : vector<8x4xf32>, vector<4x32xf32>, vector<8x32xf32> -> vector<8x32xf32>
    %74 = arith.mulf %73, %71 : vector<8x32xf32>
    %c0_47 = arith.constant 0 : index
    %c0_48 = arith.constant 0 : index
    %75 = vector.load %arg17[%c0_47, %c0_48] : memref<32x8xf32, #tpu.memory_space<vmem>>, vector<32x8xf32>
    %cst_49 = arith.constant dense<0.000000e+00> : vector<8x8xf32>
    %76 = tpu.matmul %74, %75, %cst_49 {dimension_numbers = #tpu.dot_dimension_numbers<[1], [0], [0], [1], [0, 0, 1, 1], [], []>} : vector<8x32xf32>, vector<32x8xf32>, vector<8x8xf32> -> vector<8x8xf32>
    %77 = arith.mulf %74, %63 : vector<8x32xf32>
    %c0_50 = arith.constant 0 : index
    %c0_51 = arith.constant 0 : index
    %78 = vector.load %arg17[%c0_50, %c0_51] : memref<32x8xf32, #tpu.memory_space<vmem>>, vector<32x8xf32>
    %cst_52 = arith.constant dense<0.000000e+00> : vector<8x8xf32>
    %79 = tpu.matmul %77, %78, %cst_52 {dimension_numbers = #tpu.dot_dimension_numbers<[1], [0], [0], [1], [0, 0, 1, 1], [], []>} : vector<8x32xf32>, vector<32x8xf32>, vector<8x8xf32> -> vector<8x8xf32>
    %cst_53 = arith.constant 9.99999974E-6 : f32
    %80 = vector.broadcast %cst_53 : f32 to vector<8x8xf32>
    %81 = arith.maximumf %76, %80 : vector<8x8xf32>
    %cst_54 = arith.constant 1.000000e+00 : f32
    %82 = vector.broadcast %cst_54 : f32 to vector<8x8xf32>
    %83 = arith.divf %82, %81 : vector<8x8xf32>
    %84 = arith.mulf %79, %83 : vector<8x8xf32>
    %cst_55 = arith.constant 9.99999974E-6 : f32
    %85 = vector.broadcast %cst_55 : f32 to vector<8x8xf32>
    %86 = arith.maximumf %83, %85 : vector<8x8xf32>
    %87 = math.log %86 : vector<8x8xf32>
    %c0_56 = arith.constant 0 : index
    %c0_57 = arith.constant 0 : index
    %88 = vector.load %arg18[%c0_56, %c0_57] : memref<8x16xf32, #tpu.memory_space<vmem>>, vector<8x8xf32>
    tpu.vector_store %arg18[%c0_56, %c0_57], %84 {strides = array<i32>} : memref<8x16xf32, #tpu.memory_space<vmem>>, vector<8x8xf32>,
    %c0_58 = arith.constant 0 : index
    %c8 = arith.constant 8 : index
    %89 = vector.load %arg18[%c0_58, %c8] : memref<8x16xf32, #tpu.memory_space<vmem>>, vector<8x8xf32>
    tpu.vector_store %arg18[%c0_58, %c8], %87 {strides = array<i32>} : memref<8x16xf32, #tpu.memory_space<vmem>>, vector<8x8xf32>,
    return
  }
  func.func @transform_0(%arg0: i32) -> (i32, i32) {
    %c0_i32 = arith.constant 0 : i32
    %c0_i32_0 = arith.constant 0 : i32
    return %arg0, %c0_i32 : i32, i32
  }
  func.func @transform_1(%arg0: i32) -> (i32, i32) {
    %c0_i32 = arith.constant 0 : i32
    %c0_i32_0 = arith.constant 0 : i32
    %c0_i32_1 = arith.constant 0 : i32
    return %c0_i32, %c0_i32_0 : i32, i32
  }
  func.func @transform_2(%arg0: i32) -> (i32, i32) {
    %c0_i32 = arith.constant 0 : i32
    %c0_i32_0 = arith.constant 0 : i32
    %c0_i32_1 = arith.constant 0 : i32
    return %c0_i32, %c0_i32_0 : i32, i32
  }
  func.func @transform_3(%arg0: i32) -> (i32, i32) {
    %c0_i32 = arith.constant 0 : i32
    %c0_i32_0 = arith.constant 0 : i32
    %c0_i32_1 = arith.constant 0 : i32
    return %c0_i32, %c0_i32_0 : i32, i32
  }
  func.func @transform_4(%arg0: i32) -> (i32, i32) {
    %c0_i32 = arith.constant 0 : i32
    %c0_i32_0 = arith.constant 0 : i32
    %c0_i32_1 = arith.constant 0 : i32
    return %c0_i32, %c0_i32_0 : i32, i32
  }
  func.func @transform_5(%arg0: i32) -> (i32, i32) {
    %c0_i32 = arith.constant 0 : i32
    %c0_i32_0 = arith.constant 0 : i32
    %c0_i32_1 = arith.constant 0 : i32
    return %c0_i32, %c0_i32_0 : i32, i32
  }
  func.func @transform_6(%arg0: i32) -> (i32, i32) {
    %c0_i32 = arith.constant 0 : i32
    %c0_i32_0 = arith.constant 0 : i32
    %c0_i32_1 = arith.constant 0 : i32
    return %c0_i32, %c0_i32_0 : i32, i32
  }
  func.func @transform_7(%arg0: i32) -> (i32, i32) {
    %c0_i32 = arith.constant 0 : i32
    %c0_i32_0 = arith.constant 0 : i32
    %c0_i32_1 = arith.constant 0 : i32
    return %c0_i32, %c0_i32_0 : i32, i32
  }
  func.func @transform_8(%arg0: i32) -> (i32, i32) {
    %c0_i32 = arith.constant 0 : i32
    %c0_i32_0 = arith.constant 0 : i32
    %c0_i32_1 = arith.constant 0 : i32
    return %c0_i32, %c0_i32_0 : i32, i32
  }
  func.func @transform_9(%arg0: i32) -> (i32, i32) {
    %c0_i32 = arith.constant 0 : i32
    %c0_i32_0 = arith.constant 0 : i32
    %c0_i32_1 = arith.constant 0 : i32
    return %c0_i32, %c0_i32_0 : i32, i32
  }
  func.func @transform_10(%arg0: i32) -> (i32, i32) {
    %c0_i32 = arith.constant 0 : i32
    %c0_i32_0 = arith.constant 0 : i32
    %c0_i32_1 = arith.constant 0 : i32
    return %c0_i32, %c0_i32_0 : i32, i32
  }
  func.func @transform_11(%arg0: i32) -> (i32, i32) {
    %c0_i32 = arith.constant 0 : i32
    %c0_i32_0 = arith.constant 0 : i32
    %c0_i32_1 = arith.constant 0 : i32
    return %c0_i32, %c0_i32_0 : i32, i32
  }
  func.func @transform_12(%arg0: i32) -> (i32, i32) {
    %c0_i32 = arith.constant 0 : i32
    %c0_i32_0 = arith.constant 0 : i32
    %c0_i32_1 = arith.constant 0 : i32
    return %c0_i32, %c0_i32_0 : i32, i32
  }
  func.func @transform_13(%arg0: i32) -> (i32, i32) {
    %c0_i32 = arith.constant 0 : i32
    %c0_i32_0 = arith.constant 0 : i32
    %c0_i32_1 = arith.constant 0 : i32
    return %c0_i32, %c0_i32_0 : i32, i32
  }
  func.func @transform_14(%arg0: i32) -> (i32, i32) {
    %c0_i32 = arith.constant 0 : i32
    %c0_i32_0 = arith.constant 0 : i32
    %c0_i32_1 = arith.constant 0 : i32
    return %c0_i32, %c0_i32_0 : i32, i32
  }
  func.func @transform_15(%arg0: i32) -> (i32, i32) {
    %c0_i32 = arith.constant 0 : i32
    %c0_i32_0 = arith.constant 0 : i32
    %c0_i32_1 = arith.constant 0 : i32
    return %c0_i32, %c0_i32_0 : i32, i32
  }
  func.func @transform_16(%arg0: i32) -> (i32, i32) {
    %c0_i32 = arith.constant 0 : i32
    %c0_i32_0 = arith.constant 0 : i32
    %c0_i32_1 = arith.constant 0 : i32
    return %c0_i32, %c0_i32_0 : i32, i32
  }
  func.func @transform_17(%arg0: i32) -> (i32, i32) {
    %c0_i32 = arith.constant 0 : i32
    %c0_i32_0 = arith.constant 0 : i32
    return %arg0, %c0_i32 : i32, i32
  }
}

</mosaic_0001>

<llo_original>
// kernel: mcp_vision_forward.1
$region0: #{mcp_vision_forward.1}
  #allocation0 [shape = 'u32[]', space=smem, size = 0x4, offset = 0x4, fixed_abs, tag = 'smem constant byte address 0x4 - core index']
  #allocation1 [shape = 'u32[144,128]{1,0:T(1,128)}', space=vmem, size = 0x12000, scoped, tag = 'internal scratch']
  %s0 = inlined_call_operand.vmem [shape: f32[16,42], index: 0, kind: input, shape index: {}]
  %s1 = inlined_call_operand.hbm [shape: bf16[42,1280], index: 1, kind: input, shape index: {}]
  %s2 = inlined_call_operand.vmem [shape: f32[1,1024], index: 2, kind: input, shape index: {}]
  %s3 = inlined_call_operand.vmem [shape: bf16[512,256], index: 3, kind: input, shape index: {}]
  %s4 = inlined_call_operand.vmem [shape: f32[1,256], index: 4, kind: input, shape index: {}]
  %s5 = inlined_call_operand.vmem [shape: bf16[256,256], index: 5, kind: input, shape index: {}]
  %s6 = inlined_call_operand.vmem [shape: f32[1,256], index: 6, kind: input, shape index: {}]
  %s7 = inlined_call_operand.vmem [shape: bf16[256,4], index: 7, kind: input, shape index: {}]
  %s8 = inlined_call_operand.vmem [shape: f32[1,4], index: 8, kind: input, shape index: {}]
  %s9 = inlined_call_operand.hbm [shape: bf16[512,256], index: 9, kind: input, shape index: {}]
  %s10 = inlined_call_operand.vmem [shape: f32[1,256], index: 10, kind: input, shape index: {}]
  %s11 = inlined_call_operand.hbm [shape: bf16[256,1024], index: 11, kind: input, shape index: {}]
  %s12 = inlined_call_operand.vmem [shape: f32[1,1024], index: 12, kind: input, shape index: {}]
  %s13 = inlined_call_operand.vmem [shape: bf16[1024,64], index: 13, kind: input, shape index: {}]
  %s14 = inlined_call_operand.vmem [shape: f32[1,64], index: 14, kind: input, shape index: {}]
  %s15 = inlined_call_operand.vmem [shape: f32[4,32], index: 15, kind: input, shape index: {}]
  %s16 = inlined_call_operand.vmem [shape: f32[32,8], index: 16, kind: input, shape index: {}]
  %s17 = inlined_call_operand.vmem [shape: f32[16,16], index: 17, kind: output, shape index: {}]
  %s18 = sld [smem:[#allocation0]]
  $region113: #{mcp_vision_forward.1} parent=0
    _
  %s20 = ssub.s32 1, %s18
  %s21 = scalar_select 0, %s20, %s18
  $region1: #{mcp_vision_forward.1} parent=0
    #allocation2 [shape = 'u8[122880]{0}', space=vmem, size = 0x1e000, scoped, tag = 'input window, operand 1, single buffered']
    #allocation3 [shape = 's32[2]{0}', space=sflag, size = 0x8, scoped, tag = 'scoped memory for mcp_vision_forward.1']
    #allocation4 [shape = 'u8[262144]{0}', space=vmem, size = 0x40000, scoped, tag = 'input window, operand 9, single buffered']
    #allocation5 [shape = 's32[1]{0}', space=sflag, size = 0x4, scoped, tag = 'scoped memory for mcp_vision_forward.1']
    #allocation6 [shape = 'u8[524288]{0}', space=vmem, size = 0x80000, scoped, tag = 'input window, operand 11, single buffered']
    %22 = vsyncpa [#allocation3], 0
    %23 = vsyncpa [#allocation5], 0
    loop: start=0, step=1, limit=4
    $region2: #{mcp_vision_forward.1} parent=1 // loop_pre_header
      _
    $region3: #{mcp_vision_forward.1} parent=1 // loop_header
      %s25 = sphi 0, %s29
      %p26 = scmp.ge.s32.totalorder %s25, 4
      %s35 = sphi 0, %s37
      %s38 = sphi 0, %s35
      %s39 = sphi 0, %s38
      %s55 = sphi 0, %s39
      %s59 = sphi 0, %s59
      %s61 = sphi 0, %s59
      %s62 = sphi 0, %s61
      %s76 = sphi 0, %s62
      %s80 = sphi 0, %s80
      %s82 = sphi 0, %s80
      %s83 = sphi 0, %s82
      %s97 = sphi 0, %s83
      %s101 = sphi 0, %s101
      %s103 = sphi 0, %s101
      %s104 = sphi 0, %s103
      %s118 = sphi 0, %s104
      %s122 = sphi 0, %s122
      %s124 = sphi 0, %s122
      %s125 = sphi 0, %s124
      %s139 = sphi 0, %s125
      %s143 = sphi 0, %s143
      %s145 = sphi 0, %s143
      %s146 = sphi 0, %s145
      %s160 = sphi 0, %s146
      %s164 = sphi 0, %s164
      %s166 = sphi 0, %s164
      %s167 = sphi 0, %s166
      %s181 = sphi 0, %s167
      %s185 = sphi 0, %s185
      %s187 = sphi 0, %s185
      %s188 = sphi 0, %s187
      %s202 = sphi 0, %s188
      %s206 = sphi 0, %s206
      %s208 = sphi 0, %s206
      %s209 = sphi 0, %s208
      %s223 = sphi 0, %s209
      %s227 = sphi 0, %s227
      %s229 = sphi 0, %s227
      %s230 = sphi 0, %s229
      %s244 = sphi 0, %s230
      %s248 = sphi 0, %s248
      %s250 = sphi 0, %s248
      %s251 = sphi 0, %s250
      %s265 = sphi 0, %s251
      %s269 = sphi 0, %s269
      %s271 = sphi 0, %s269
      %s272 = sphi 0, %s271
      %s286 = sphi 0, %s272
      %s290 = sphi 0, %s290
      %s292 = sphi 0, %s290
      %s293 = sphi 0, %s292
      %s307 = sphi 0, %s293
      %s311 = sphi 0, %s311
      %s313 = sphi 0, %s311
      %s314 = sphi 0, %s313
      %s328 = sphi 0, %s314
      %s332 = sphi 0, %s332
      %s334 = sphi 0, %s332
      %s335 = sphi 0, %s334
      %s349 = sphi 0, %s335
      %s353 = sphi 0, %s353
      %s355 = sphi 0, %s353
      %s356 = sphi 0, %s355
      %s370 = sphi 0, %s356
      %s374 = sphi 0, %s374
      %s376 = sphi 0, %s374
      %s377 = sphi 0, %s376
      %s391 = sphi 0, %s377
      %s397 = sphi 0, %s399
      %s400 = sphi 0, %s397
      %s401 = sphi 0, %s400
      %s417 = sphi 0, %s401
    $region4: #{mcp_vision_forward.1} parent=1 // loop_header_branch
      %28 = sbr.rel (%p26) target = $region8
    $region5: #{mcp_vision_forward.1} parent=1 // loop_body
      %s30 = ssub.s32 %s25, 1
      %s31 = ssub.s32 %s25, 2
      %s32 = sadd.s32 %s25, 1
      %s33 = ssub.s32 %s25, %s32
      %p34 = scmp.eq.s32.totalorder %s33, 0
      %s36 = sadd.s32 %s35, 1
      %s37 = scalar_select %p34, %s35, %s36
      %p40 = pneg %p34
      %p41 = scmp.eq.s32.totalorder %s25, 1
      %p42 = por %p40, %p41
      %p43 = scmp.ne.s32.totalorder %s35, %s38
      %p44 = scmp.eq.s32.totalorder %s25, 0
      %p45 = por %p43, %p44
      %p46 = scmp.ne.s32.totalorder %s35, %s38
      %p47 = scmp.eq.s32.totalorder %s30, 1
      %p48 = por %p46, %p47
      %p49 = scmp.ne.s32.totalorder %s38, %s39
      %p50 = scmp.eq.s32.totalorder %s30, 0
      %p51 = por %p49, %p50
      %p52 = scmp.ne.s32.totalorder %s38, %s39
      %p53 = scmp.eq.s32.totalorder %s31, 1
      %p54 = por %p52, %p53
      %p56 = scmp.ne.s32.totalorder %s39, %s55
      %p57 = scmp.eq.s32.totalorder %s31, 0
      %p58 = por %p56, %p57
      %s60 = sadd.s32 %s59, 1
      %p63 = scmp.eq.s32.totalorder %s25, 1
      %p64 = scmp.ne.s32.totalorder %s59, %s61
      %p65 = scmp.eq.s32.totalorder %s25, 0
      %p66 = por %p64, %p65
      %p67 = scmp.ne.s32.totalorder %s59, %s61
      %p68 = scmp.eq.s32.totalorder %s30, 1
      %p69 = por %p67, %p68
      %p70 = scmp.ne.s32.totalorder %s61, %s62
      %p71 = scmp.eq.s32.totalorder %s30, 0
      %p72 = por %p70, %p71
      %p73 = scmp.ne.s32.totalorder %s61, %s62
      %p74 = scmp.eq.s32.totalorder %s31, 1
      %p75 = por %p73, %p74
      %p77 = scmp.ne.s32.totalorder %s62, %s76
      %p78 = scmp.eq.s32.totalorder %s31, 0
      %p79 = por %p77, %p78
      %s81 = sadd.s32 %s80, 1
      %p84 = scmp.eq.s32.totalorder %s25, 1
      %p85 = scmp.ne.s32.totalorder %s80, %s82
      %p86 = scmp.eq.s32.totalorder %s25, 0
      %p87 = por %p85, %p86
      %p88 = scmp.ne.s32.totalorder %s80, %s82
      %p89 = scmp.eq.s32.totalorder %s30, 1
      %p90 = por %p88, %p89
      %p91 = scmp.ne.s32.totalorder %s82, %s83
      %p92 = scmp.eq.s32.totalorder %s30, 0
      %p93 = por %p91, %p92
      %p94 = scmp.ne.s32.totalorder %s82, %s83
      %p95 = scmp.eq.s32.totalorder %s31, 1
      %p96 = por %p94, %p95
      %p98 = scmp.ne.s32.totalorder %s83, %s97
      %p99 = scmp.eq.s32.totalorder %s31, 0
      %p100 = por %p98, %p99
      %s102 = sadd.s32 %s101, 1
      %p105 = scmp.eq.s32.totalorder %s25, 1
      %p106 = scmp.ne.s32.totalorder %s101, %s103
      %p107 = scmp.eq.s32.totalorder %s25, 0
      %p108 = por %p106, %p107
      %p109 = scmp.ne.s32.totalorder %s101, %s103
      %p110 = scmp.eq.s32.totalorder %s30, 1
      %p111 = por %p109, %p110
      %p112 = scmp.ne.s32.totalorder %s103, %s104
      %p113 = scmp.eq.s32.totalorder %s30, 0
      %p114 = por %p112, %p113
      %p115 = scmp.ne.s32.totalorder %s103, %s104
      %p116 = scmp.eq.s32.totalorder %s31, 1
      %p117 = por %p115, %p116
      %p119 = scmp.ne.s32.totalorder %s104, %s118
      %p120 = scmp.eq.s32.totalorder %s31, 0
      %p121 = por %p119, %p120
      %s123 = sadd.s32 %s122, 1
      %p126 = scmp.eq.s32.totalorder %s25, 1
      %p127 = scmp.ne.s32.totalorder %s122, %s124
      %p128 = scmp.eq.s32.totalorder %s25, 0
      %p129 = por %p127, %p128
      %p130 = scmp.ne.s32.totalorder %s122, %s124
      %p131 = scmp.eq.s32.totalorder %s30, 1
      %p132 = por %p130, %p131
      %p133 = scmp.ne.s32.totalorder %s124, %s125
      %p134 = scmp.eq.s32.totalorder %s30, 0
      %p135 = por %p133, %p134
      %p136 = scmp.ne.s32.totalorder %s124, %s125
      %p137 = scmp.eq.s32.totalorder %s31, 1
      %p138 = por %p136, %p137
      %p140 = scmp.ne.s32.totalorder %s125, %s139
      %p141 = scmp.eq.s32.totalorder %s31, 0
      %p142 = por %p140, %p141
      %s144 = sadd.s32 %s143, 1
      %p147 = scmp.eq.s32.totalorder %s25, 1
      %p148 = scmp.ne.s32.totalorder %s143, %s145
      %p149 = scmp.eq.s32.totalorder %s25, 0
      %p150 = por %p148, %p149
      %p151 = scmp.ne.s32.totalorder %s143, %s145
      %p152 = scmp.eq.s32.totalorder %s30, 1
      %p153 = por %p151, %p152
      %p154 = scmp.ne.s32.totalorder %s145, %s146
      %p155 = scmp.eq.s32.totalorder %s30, 0
      %p156 = por %p154, %p155
      %p157 = scmp.ne.s32.totalorder %s145, %s146
      %p158 = scmp.eq.s32.totalorder %s31, 1
      %p159 = por %p157, %p158
      %p161 = scmp.ne.s32.totalorder %s146, %s160
      %p162 = scmp.eq.s32.totalorder %s31, 0
      %p163 = por %p161, %p162
      %s165 = sadd.s32 %s164, 1
      %p168 = scmp.eq.s32.totalorder %s25, 1
      %p169 = scmp.ne.s32.totalorder %s164, %s166
      %p170 = scmp.eq.s32.totalorder %s25, 0
      %p171 = por %p169, %p170
      %p172 = scmp.ne.s32.totalorder %s164, %s166
      %p173 = scmp.eq.s32.totalorder %s30, 1
      %p174 = por %p172, %p173
      %p175 = scmp.ne.s32.totalorder %s166, %s167
      %p176 = scmp.eq.s32.totalorder %s30, 0
      %p177 = por %p175, %p176
      %p178 = scmp.ne.s32.totalorder %s166, %s167
      %p179 = scmp.eq.s32.totalorder %s31, 1
      %p180 = por %p178, %p179
      %p182 = scmp.ne.s32.totalorder %s167, %s181
      %p183 = scmp.eq.s32.totalorder %s31, 0
      %p184 = por %p182, %p183
      %s186 = sadd.s32 %s185, 1
      %p189 = scmp.eq.s32.totalorder %s25, 1
      %p190 = scmp.ne.s32.totalorder %s185, %s187
      %p191 = scmp.eq.s32.totalorder %s25, 0
      %p192 = por %p190, %p191
      %p193 = scmp.ne.s32.totalorder %s185, %s187
      %p194 = scmp.eq.s32.totalorder %s30, 1
      %p195 = por %p193, %p194
      %p196 = scmp.ne.s32.totalorder %s187, %s188
      %p197 = scmp.eq.s32.totalorder %s30, 0
      %p198 = por %p196, %p197
      %p199 = scmp.ne.s32.totalorder %s187, %s188
      %p200 = scmp.eq.s32.totalorder %s31, 1
      %p201 = por %p199, %p200
      %p203 = scmp.ne.s32.totalorder %s188, %s202
      %p204 = scmp.eq.s32.totalorder %s31, 0
      %p205 = por %p203, %p204
      %s207 = sadd.s32 %s206, 1
      %p210 = scmp.eq.s32.totalorder %s25, 1
      %p211 = scmp.ne.s32.totalorder %s206, %s208
      %p212 = scmp.eq.s32.totalorder %s25, 0
      %p213 = por %p211, %p212
      %p214 = scmp.ne.s32.totalorder %s206, %s208
      %p215 = scmp.eq.s32.totalorder %s30, 1
      %p216 = por %p214, %p215
      %p217 = scmp.ne.s32.totalorder %s208, %s209
      %p218 = scmp.eq.s32.totalorder %s30, 0
      %p219 = por %p217, %p218
      %p220 = scmp.ne.s32.totalorder %s208, %s209
      %p221 = scmp.eq.s32.totalorder %s31, 1
      %p222 = por %p220, %p221
      %p224 = scmp.ne.s32.totalorder %s209, %s223
      %p225 = scmp.eq.s32.totalorder %s31, 0
      %p226 = por %p224, %p225
      %s228 = sadd.s32 %s227, 1
      %p231 = scmp.eq.s32.totalorder %s25, 1
      %p232 = scmp.ne.s32.totalorder %s227, %s229
      %p233 = scmp.eq.s32.totalorder %s25, 0
      %p234 = por %p232, %p233
      %p235 = scmp.ne.s32.totalorder %s227, %s229
      %p236 = scmp.eq.s32.totalorder %s30, 1
      %p237 = por %p235, %p236
      %p238 = scmp.ne.s32.totalorder %s229, %s230
      %p239 = scmp.eq.s32.totalorder %s30, 0
      %p240 = por %p238, %p239
      %p241 = scmp.ne.s32.totalorder %s229, %s230
      %p242 = scmp.eq.s32.totalorder %s31, 1
      %p243 = por %p241, %p242
      %p245 = scmp.ne.s32.totalorder %s230, %s244
      %p246 = scmp.eq.s32.totalorder %s31, 0
      %p247 = por %p245, %p246
      %s249 = sadd.s32 %s248, 1
      %p252 = scmp.eq.s32.totalorder %s25, 1
      %p253 = scmp.ne.s32.totalorder %s248, %s250
      %p254 = scmp.eq.s32.totalorder %s25, 0
      %p255 = por %p253, %p254
      %p256 = scmp.ne.s32.totalorder %s248, %s250
      %p257 = scmp.eq.s32.totalorder %s30, 1
      %p258 = por %p256, %p257
      %p259 = scmp.ne.s32.totalorder %s250, %s251
      %p260 = scmp.eq.s32.totalorder %s30, 0
      %p261 = por %p259, %p260
      %p262 = scmp.ne.s32.totalorder %s250, %s251
      %p263 = scmp.eq.s32.totalorder %s31, 1
      %p264 = por %p262, %p263
      %p266 = scmp.ne.s32.totalorder %s251, %s265
      %p267 = scmp.eq.s32.totalorder %s31, 0
      %p268 = por %p266, %p267
      %s270 = sadd.s32 %s269, 1
      %p273 = scmp.eq.s32.totalorder %s25, 1
      %p274 = scmp.ne.s32.totalorder %s269, %s271
      %p275 = scmp.eq.s32.totalorder %s25, 0
      %p276 = por %p274, %p275
      %p277 = scmp.ne.s32.totalorder %s269, %s271
      %p278 = scmp.eq.s32.totalorder %s30, 1
      %p279 = por %p277, %p278
      %p280 = scmp.ne.s32.totalorder %s271, %s272
      %p281 = scmp.eq.s32.totalorder %s30, 0
      %p282 = por %p280, %p281
      %p283 = scmp.ne.s32.totalorder %s271, %s272
      %p284 = scmp.eq.s32.totalorder %s31, 1
      %p285 = por %p283, %p284
      %p287 = scmp.ne.s32.totalorder %s272, %s286
      %p288 = scmp.eq.s32.totalorder %s31, 0
      %p289 = por %p287, %p288
      %s291 = sadd.s32 %s290, 1
      %p294 = scmp.eq.s32.totalorder %s25, 1
      %p295 = scmp.ne.s32.totalorder %s290, %s292
      %p296 = scmp.eq.s32.totalorder %s25, 0
      %p297 = por %p295, %p296
      %p298 = scmp.ne.s32.totalorder %s290, %s292
      %p299 = scmp.eq.s32.totalorder %s30, 1
      %p300 = por %p298, %p299
      %p301 = scmp.ne.s32.totalorder %s292, %s293
      %p302 = scmp.eq.s32.totalorder %s30, 0
      %p303 = por %p301, %p302
      %p304 = scmp.ne.s32.totalorder %s292, %s293
      %p305 = scmp.eq.s32.totalorder %s31, 1
      %p306 = por %p304, %p305
      %p308 = scmp.ne.s32.totalorder %s293, %s307
      %p309 = scmp.eq.s32.totalorder %s31, 0
      %p310 = por %p308, %p309
      %s312 = sadd.s32 %s311, 1
      %p315 = scmp.eq.s32.totalorder %s25, 1
      %p316 = scmp.ne.s32.totalorder %s311, %s313
      %p317 = scmp.eq.s32.totalorder %s25, 0
      %p318 = por %p316, %p317
      %p319 = scmp.ne.s32.totalorder %s311, %s313
      %p320 = scmp.eq.s32.totalorder %s30, 1
      %p321 = por %p319, %p320
      %p322 = scmp.ne.s32.totalorder %s313, %s314
      %p323 = scmp.eq.s32.totalorder %s30, 0
      %p324 = por %p322, %p323
      %p325 = scmp.ne.s32.totalorder %s313, %s314
      %p326 = scmp.eq.s32.totalorder %s31, 1
      %p327 = por %p325, %p326
      %p329 = scmp.ne.s32.totalorder %s314, %s328
      %p330 = scmp.eq.s32.totalorder %s31, 0
      %p331 = por %p329, %p330
      %s333 = sadd.s32 %s332, 1
      %p336 = scmp.eq.s32.totalorder %s25, 1
      %p337 = scmp.ne.s32.totalorder %s332, %s334
      %p338 = scmp.eq.s32.totalorder %s25, 0
      %p339 = por %p337, %p338
      %p340 = scmp.ne.s32.totalorder %s332, %s334
      %p341 = scmp.eq.s32.totalorder %s30, 1
      %p342 = por %p340, %p341
      %p343 = scmp.ne.s32.totalorder %s334, %s335
      %p344 = scmp.eq.s32.totalorder %s30, 0
      %p345 = por %p343, %p344
      %p346 = scmp.ne.s32.totalorder %s334, %s335
      %p347 = scmp.eq.s32.totalorder %s31, 1
      %p348 = por %p346, %p347
      %p350 = scmp.ne.s32.totalorder %s335, %s349
      %p351 = scmp.eq.s32.totalorder %s31, 0
      %p352 = por %p350, %p351
      %s354 = sadd.s32 %s353, 1
      %p357 = scmp.eq.s32.totalorder %s25, 1
      %p358 = scmp.ne.s32.totalorder %s353, %s355
      %p359 = scmp.eq.s32.totalorder %s25, 0
      %p360 = por %p358, %p359
      %p361 = scmp.ne.s32.totalorder %s353, %s355
      %p362 = scmp.eq.s32.totalorder %s30, 1
      %p363 = por %p361, %p362
      %p364 = scmp.ne.s32.totalorder %s355, %s356
      %p365 = scmp.eq.s32.totalorder %s30, 0
      %p366 = por %p364, %p365
      %p367 = scmp.ne.s32.totalorder %s355, %s356
      %p368 = scmp.eq.s32.totalorder %s31, 1
      %p369 = por %p367, %p368
      %p371 = scmp.ne.s32.totalorder %s356, %s370
      %p372 = scmp.eq.s32.totalorder %s31, 0
      %p373 = por %p371, %p372
      %s375 = sadd.s32 %s374, 1
      %p378 = scmp.eq.s32.totalorder %s25, 1
      %p379 = scmp.ne.s32.totalorder %s374, %s376
      %p380 = scmp.eq.s32.totalorder %s25, 0
      %p381 = por %p379, %p380
      %p382 = scmp.ne.s32.totalorder %s374, %s376
      %p383 = scmp.eq.s32.totalorder %s30, 1
      %p384 = por %p382, %p383
      %p385 = scmp.ne.s32.totalorder %s376, %s377
      %p386 = scmp.eq.s32.totalorder %s30, 0
      %p387 = por %p385, %p386
      %p388 = scmp.ne.s32.totalorder %s376, %s377
      %p389 = scmp.eq.s32.totalorder %s31, 1
      %p390 = por %p388, %p389
      %p392 = scmp.ne.s32.totalorder %s377, %s391
      %p393 = scmp.eq.s32.totalorder %s31, 0
      %p394 = por %p392, %p393
      %s395 = ssub.s32 %s25, %s32
      %p396 = scmp.eq.s32.totalorder %s395, 0
      %s398 = sadd.s32 %s397, 1
      %s399 = scalar_select %p396, %s397, %s398
      %p402 = pneg %p396
      %p403 = scmp.eq.s32.totalorder %s25, 1
      %p404 = por %p402, %p403
      %p405 = scmp.ne.s32.totalorder %s397, %s400
      %p406 = scmp.eq.s32.totalorder %s25, 0
      %p407 = por %p405, %p406
      %p408 = scmp.ne.s32.totalorder %s397, %s400
      %p409 = scmp.eq.s32.totalorder %s30, 1
      %p410 = por %p408, %p409
      %p411 = scmp.ne.s32.totalorder %s400, %s401
      %p412 = scmp.eq.s32.totalorder %s30, 0
      %p413 = por %p411, %p412
      %p414 = scmp.ne.s32.totalorder %s400, %s401
      %p415 = scmp.eq.s32.totalorder %s31, 1
      %p416 = por %p414, %p415
      %p418 = scmp.ne.s32.totalorder %s401, %s417
      %p419 = scmp.eq.s32.totalorder %s31, 0
      %p420 = por %p418, %p419
      %p421 = scmp.le.s32.totalorder 1, %s25
      %p422 = scmp.lt.s32.totalorder %s25, 3
      %p423 = pnand %p421, %p422
      %p424 = pneg %p423
      // Predicated region
      $region9: #{mcp_vision_forward.1} parent=5 // pred_check
        _
      $region10: #{mcp_vision_forward.1} parent=5 // pred_check_branch
        %426 = sbr.rel (%p423) target = $region12
      $region11: #{mcp_vision_forward.1} parent=5 // pred_region
        %s427 = ssub.s32 %s25, 1
        // Predicated region
        $region13: #{mcp_vision_forward.1} parent=11 // pred_check
          %p428 = pneg %p72
        $region14: #{mcp_vision_forward.1} parent=11 // pred_check_branch
          %430 = sbr.rel (%p428) target = $region16
        $region15: #{mcp_vision_forward.1} parent=11 // pred_region
          %s432 = ssub.s32 3840, 3840
          %433 = vsyncadd [#allocation3], %s432
          %s434 = sshll.u32 [#allocation2], 4
          %s435 = int_to_ptr.vmem [resolvable:$true] %s434
          %440 = dma.hbm_to_vmem [thread:$0]  %s1, 3840, %s435, [#allocation3], 640, 640, 40
        $region16: #{mcp_vision_forward.1} parent=11 // pred_fallthru
          _
        // Predicated region
        $region17: #{mcp_vision_forward.1} parent=11 // pred_check
          %p441 = pneg %p93
        $region18: #{mcp_vision_forward.1} parent=11 // pred_check_branch
          %443 = sbr.rel (%p441) target = $region20
        $region19: #{mcp_vision_forward.1} parent=11 // pred_region
          _
        $region20: #{mcp_vision_forward.1} parent=11 // pred_fallthru
          _
        // Predicated region
        $region21: #{mcp_vision_forward.1} parent=11 // pred_check
          %p444 = pneg %p114
        $region22: #{mcp_vision_forward.1} parent=11 // pred_check_branch
          %446 = sbr.rel (%p444) target = $region24
        $region23: #{mcp_vision_forward.1} parent=11 // pred_region
          _
        $region24: #{mcp_vision_forward.1} parent=11 // pred_fallthru
          _
        // Predicated region
        $region25: #{mcp_vision_forward.1} parent=11 // pred_check
          %p447 = pneg %p135
        $region26: #{mcp_vision_forward.1} parent=11 // pred_check_branch
          %449 = sbr.rel (%p447) target = $region28
        $region27: #{mcp_vision_forward.1} parent=11 // pred_region
          _
        $region28: #{mcp_vision_forward.1} parent=11 // pred_fallthru
          _
        // Predicated region
        $region29: #{mcp_vision_forward.1} parent=11 // pred_check
          %p450 = pneg %p156
        $region30: #{mcp_vision_forward.1} parent=11 // pred_check_branch
          %452 = sbr.rel (%p450) target = $region32
        $region31: #{mcp_vision_forward.1} parent=11 // pred_region
          _
        $region32: #{mcp_vision_forward.1} parent=11 // pred_fallthru
          _
        // Predicated region
        $region33: #{mcp_vision_forward.1} parent=11 // pred_check
          %p453 = pneg %p177
        $region34: #{mcp_vision_forward.1} parent=11 // pred_check_branch
          %455 = sbr.rel (%p453) target = $region36
        $region35: #{mcp_vision_forward.1} parent=11 // pred_region
          _
        $region36: #{mcp_vision_forward.1} parent=11 // pred_fallthru
          _
        // Predicated region
        $region37: #{mcp_vision_forward.1} parent=11 // pred_check
          %p456 = pneg %p198
        $region38: #{mcp_vision_forward.1} parent=11 // pred_check_branch
          %458 = sbr.rel (%p456) target = $region40
        $region39: #{mcp_vision_forward.1} parent=11 // pred_region
          _
        $region40: #{mcp_vision_forward.1} parent=11 // pred_fallthru
          _
        // Predicated region
        $region41: #{mcp_vision_forward.1} parent=11 // pred_check
          %p459 = pneg %p219
        $region42: #{mcp_vision_forward.1} parent=11 // pred_check_branch
          %461 = sbr.rel (%p459) target = $region44
        $region43: #{mcp_vision_forward.1} parent=11 // pred_region
          _
        $region44: #{mcp_vision_forward.1} parent=11 // pred_fallthru
          _
        // Predicated region
        $region45: #{mcp_vision_forward.1} parent=11 // pred_check
          %p462 = pneg %p240
        $region46: #{mcp_vision_forward.1} parent=11 // pred_check_branch
          %464 = sbr.rel (%p462) target = $region48
        $region47: #{mcp_vision_forward.1} parent=11 // pred_region
          %s466 = ssub.s32 8192, 8192
          %467 = vsyncadd [#allocation5], %s466
          %s468 = sshll.u32 [#allocation4], 4
          %s469 = int_to_ptr.vmem [resolvable:$true] %s468
          %474 = dma.hbm_to_vmem [thread:$0]  %s9, 8192, %s469, [#allocation5], 128, 128, 8
        $region48: #{mcp_vision_forward.1} parent=11 // pred_fallthru
          _
        // Predicated region
        $region49: #{mcp_vision_forward.1} parent=11 // pred_check
          %p475 = pneg %p261
        $region50: #{mcp_vision_forward.1} parent=11 // pred_check_branch
          %477 = sbr.rel (%p475) target = $region52
        $region51: #{mcp_vision_forward.1} parent=11 // pred_region
          _
        $region52: #{mcp_vision_forward.1} parent=11 // pred_fallthru
          _
        // Predicated region
        $region53: #{mcp_vision_forward.1} parent=11 // pred_check
          %p478 = pneg %p282
        $region54: #{mcp_vision_forward.1} parent=11 // pred_check_branch
          %480 = sbr.rel (%p478) target = $region56
        $region55: #{mcp_vision_forward.1} parent=11 // pred_region
          %s482 = ssub.s32 16384, 16384
          %483 = vsyncadd [#allocation5], %s482
          %s484 = sshll.u32 [#allocation6], 4
          %s485 = int_to_ptr.vmem [resolvable:$true] %s484
          %490 = dma.hbm_to_vmem [thread:$0]  %s11, 16384, %s485, [#allocation5], 512, 512, 32
        $region56: #{mcp_vision_forward.1} parent=11 // pred_fallthru
          _
        // Predicated region
        $region57: #{mcp_vision_forward.1} parent=11 // pred_check
          %p491 = pneg %p303
        $region58: #{mcp_vision_forward.1} parent=11 // pred_check_branch
          %493 = sbr.rel (%p491) target = $region60
        $region59: #{mcp_vision_forward.1} parent=11 // pred_region
          _
        $region60: #{mcp_vision_forward.1} parent=11 // pred_fallthru
          _
        // Predicated region
        $region61: #{mcp_vision_forward.1} parent=11 // pred_check
          %p494 = pneg %p324
        $region62: #{mcp_vision_forward.1} parent=11 // pred_check_branch
          %496 = sbr.rel (%p494) target = $region64
        $region63: #{mcp_vision_forward.1} parent=11 // pred_region
          _
        $region64: #{mcp_vision_forward.1} parent=11 // pred_fallthru
          _
        // Predicated region
        $region65: #{mcp_vision_forward.1} parent=11 // pred_check
          %p497 = pneg %p345
        $region66: #{mcp_vision_forward.1} parent=11 // pred_check_branch
          %499 = sbr.rel (%p497) target = $region68
        $region67: #{mcp_vision_forward.1} parent=11 // pred_region
          _
        $region68: #{mcp_vision_forward.1} parent=11 // pred_fallthru
          _
        // Predicated region
        $region69: #{mcp_vision_forward.1} parent=11 // pred_check
          %p500 = pneg %p366
        $region70: #{mcp_vision_forward.1} parent=11 // pred_check_branch
          %502 = sbr.rel (%p500) target = $region72
        $region71: #{mcp_vision_forward.1} parent=11 // pred_region
          _
        $region72: #{mcp_vision_forward.1} parent=11 // pred_fallthru
          _
        // Predicated region
        $region73: #{mcp_vision_forward.1} parent=11 // pred_check
          %p503 = pneg %p387
        $region74: #{mcp_vision_forward.1} parent=11 // pred_check_branch
          %505 = sbr.rel (%p503) target = $region76
        $region75: #{mcp_vision_forward.1} parent=11 // pred_region
          _
        $region76: #{mcp_vision_forward.1} parent=11 // pred_fallthru
          _
      $region12: #{mcp_vision_forward.1} parent=5 // pred_fallthru
        _
      %p506 = scmp.lt.s32.totalorder %s25, 2
      // Predicated region
      $region77: #{mcp_vision_forward.1} parent=5 // pred_check
        %p507 = pneg %p506
      $region78: #{mcp_vision_forward.1} parent=5 // pred_check_branch
        %509 = sbr.rel (%p507) target = $region80
      $region79: #{mcp_vision_forward.1} parent=5 // pred_region
        // Predicated region
        $region81: #{mcp_vision_forward.1} parent=79 // pred_check
          %p510 = pneg %p45
        $region82: #{mcp_vision_forward.1} parent=79 // pred_check_branch
          %512 = sbr.rel (%p510) target = $region84
        $region83: #{mcp_vision_forward.1} parent=79 // pred_region
          %p513 = scmp.lt.s32.totalorder %s25, 1
          %s514 = scalar_select %p513, %s25, 1
          %s515 = smul.addr %s514, 8
          %s516 = scalar_lea.vmem %s0, %s515
        $region84: #{mcp_vision_forward.1} parent=79 // pred_fallthru
          _
      $region80: #{mcp_vision_forward.1} parent=5 // pred_fallthru
        _
      %p517 = scmp.le.s32.totalorder 1, %s25
      %p518 = scmp.lt.s32.totalorder %s25, 3
      %p519 = pnand %p517, %p518
      %p520 = pneg %p519
      // Predicated region
      $region85: #{mcp_vision_forward.1} parent=5 // pred_check
        _
      $region86: #{mcp_vision_forward.1} parent=5 // pred_check_branch
        %522 = sbr.rel (%p519) target = $region88
      $region87: #{mcp_vision_forward.1} parent=5 // pred_region
        %s523 = ssub.s32 %s25, 1
        // Predicated region
        $region89: #{mcp_vision_forward.1} parent=87 // pred_check
          %p524 = pneg %p72
        $region90: #{mcp_vision_forward.1} parent=87 // pred_check_branch
          %526 = sbr.rel (%p524) target = $region92
        $region91: #{mcp_vision_forward.1} parent=87 // pred_region
          %527 = dma.done [#allocation3], 3840
        $region92: #{mcp_vision_forward.1} parent=87 // pred_fallthru
          _
        // Predicated region
        $region93: #{mcp_vision_forward.1} parent=87 // pred_check
          %p528 = pneg %p240
        $region94: #{mcp_vision_forward.1} parent=87 // pred_check_branch
          %530 = sbr.rel (%p528) target = $region96
        $region95: #{mcp_vision_forward.1} parent=87 // pred_region
          %531 = dma.done [#allocation5], 8192
        $region96: #{mcp_vision_forward.1} parent=87 // pred_fallthru
          _
        // Predicated region
        $region97: #{mcp_vision_forward.1} parent=87 // pred_check
          %p532 = pneg %p282
        $region98: #{mcp_vision_forward.1} parent=87 // pred_check_branch
          %534 = sbr.rel (%p532) target = $region100
        $region99: #{mcp_vision_forward.1} parent=87 // pred_region
          %535 = dma.done [#allocation5], 16384
        $region100: #{mcp_vision_forward.1} parent=87 // pred_fallthru
          _
        %p536 = scmp.lt.s32.totalorder %s30, 1
        %s537 = scalar_select %p536, %s30, 1
        %s538 = smul.addr %s537, 8
        %s539 = scalar_lea.vmem %s0, %s538
        %p540 = pneg %p51
        %p541 = pneg %p48
        %p542 = pneg %p72
        %p543 = pneg %p69
        %p544 = pneg %p93
        %p545 = pneg %p90
        %p546 = pneg %p114
        %p547 = pneg %p111
        %p548 = pneg %p135
        %p549 = pneg %p132
        %p550 = pneg %p156
        %p551 = pneg %p153
        %p552 = pneg %p177
        %p553 = pneg %p174
        %p554 = pneg %p198
        %p555 = pneg %p195
        %p556 = pneg %p219
        %p557 = pneg %p216
        %p558 = pneg %p240
        %p559 = pneg %p237
        %p560 = pneg %p261
        %p561 = pneg %p258
        %p562 = pneg %p282
        %p563 = pneg %p279
        %p564 = pneg %p303
        %p565 = pneg %p300
        %p566 = pneg %p324
        %p567 = pneg %p321
        %p568 = pneg %p345
        %p569 = pneg %p342
        %p570 = pneg %p366
        %p571 = pneg %p363
        %p572 = pneg %p387
        %p573 = pneg %p384
        %p574 = pneg %p413
        %p575 = pneg %p410
        %p576 = scmp.lt.s32.totalorder %s30, 1
        %s577 = scalar_select %p576, %s30, 1
        %s578 = smul.addr %s577, 8
        %s579 = scalar_lea.vmem %s17, %s578
        %p580 = scmp.lt.s32.totalorder %s30, 1
        %s581 = scalar_select %p580, %s30, 1
        %s582 = smul.addr %s581, 8
        %s583 = scalar_lea.vmem %s0, %s582
        %p584 = scmp.lt.s32.totalorder %s30, 1
        %s585 = scalar_select %p584, %s30, 1
        %s586 = smul.addr %s585, 8
        %s587 = scalar_lea.vmem %s17, %s586
        %v589 = vld [vmem:[%s583] sm:$0xff]
        %v590 = vpack.c.bf16 %v589, %v589
        %v591 = vld [vmem:[#allocation2] sm:$0xff]
        %v592 = vld [vmem:[#allocation2 + $0x8] sm:$0xff]
        %v593 = vld [vmem:[#allocation2 + $0x10] sm:$0xff]
        %v594 = vld [vmem:[#allocation2 + $0x18] sm:$0xff]
        %v595 = vld [vmem:[#allocation2 + $0x20] sm:$0xff]
        %v596 = vld [vmem:[#allocation2 + $0x28] sm:$0xff]
        %v597 = vld [vmem:[#allocation2 + $0x30] sm:$0xff]
        %v598 = vld [vmem:[#allocation2 + $0x38] sm:$0xff]
        %v599 = vld [vmem:[#allocation2 + $0x40] sm:$0xff]
        %v600 = vld [vmem:[#allocation2 + $0x48] sm:$0xff]
        %v601 = vld [vmem:[#allocation2 + $0x50] sm:$0xff]
        %v602 = vld [vmem:[#allocation2 + $0x58] sm:$0xff]
        %v603 = vld [vmem:[#allocation2 + $0x60] sm:$0xff]
        %v604 = vld [vmem:[#allocation2 + $0x68] sm:$0xff]
        %v605 = vld [vmem:[#allocation2 + $0x70] sm:$0xff]
        %v606 = vld [vmem:[#allocation2 + $0x78] sm:$0xff]
        %v607 = vld [vmem:[#allocation2 + $0x80] sm:$0xff]
        %v608 = vld [vmem:[#allocation2 + $0x88] sm:$0xff]
        %v609 = vld [vmem:[#allocation2 + $0x90] sm:$0xff]
        %v610 = vld [vmem:[#allocation2 + $0x98] sm:$0xff]
        %v611 = vld [vmem:[#allocation2 + $0xa0] sm:$0xff]
        %v612 = vld [vmem:[#allocation2 + $0xa8] sm:$0xff]
        %v613 = vld [vmem:[#allocation2 + $0xb0] sm:$0xff]
        %v614 = vld [vmem:[#allocation2 + $0xb8] sm:$0xff]
        %v615 = vld [vmem:[#allocation2 + $0xc0] sm:$0xff]
        %v616 = vld [vmem:[#allocation2 + $0xc8] sm:$0x11]
        %v617 = vld [vmem:[#allocation2 + $0xd0] sm:$0x11]
        %v618 = vld [vmem:[#allocation2 + $0xd8] sm:$0x11]
        %v619 = vld [vmem:[#allocation2 + $0xe0] sm:$0x11]
        %v620 = vld [vmem:[#allocation2 + $0xe8] sm:$0x11]
        %v651 = vunpack.c.l.b16 %v591
        %v652 = vunpack.c.h.b16 %v591
        %v653 = vunpack.c.l.b16 %v592
        %v654 = vunpack.c.h.b16 %v592
        %v655 = vunpack.c.l.b16 %v593
        %v656 = vunpack.c.h.b16 %v593
        %v657 = vunpack.c.l.b16 %v594
        %v658 = vunpack.c.h.b16 %v594
        %v659 = vunpack.c.l.b16 %v595
        %v660 = vunpack.c.h.b16 %v595
        %v661 = vunpack.c.l.b16 %v596
        %v662 = vunpack.c.h.b16 %v596
        %v663 = vunpack.c.l.b16 %v597
        %v664 = vunpack.c.h.b16 %v597
        %v665 = vunpack.c.l.b16 %v598
        %v666 = vunpack.c.h.b16 %v598
        %v667 = vunpack.c.l.b16 %v599
        %v668 = vunpack.c.h.b16 %v599
        %v669 = vunpack.c.l.b16 %v600
        %v670 = vunpack.c.h.b16 %v600
        %v671 = vunpack.c.l.b16 %v601
        %v672 = vunpack.c.h.b16 %v601
        %v673 = vunpack.c.l.b16 %v602
        %v674 = vunpack.c.h.b16 %v602
        %v675 = vunpack.c.l.b16 %v603
        %v676 = vunpack.c.h.b16 %v603
        %v677 = vunpack.c.l.b16 %v604
        %v678 = vunpack.c.h.b16 %v604
        %v679 = vunpack.c.l.b16 %v605
        %v680 = vunpack.c.h.b16 %v605
        %v681 = vunpack.c.l.b16 %v606
        %v682 = vunpack.c.h.b16 %v606
        %v683 = vunpack.c.l.b16 %v607
        %v684 = vunpack.c.h.b16 %v607
        %v685 = vunpack.c.l.b16 %v608
        %v686 = vunpack.c.h.b16 %v608
        %v687 = vunpack.c.l.b16 %v609
        %v688 = vunpack.c.h.b16 %v609
        %v689 = vunpack.c.l.b16 %v610
        %v690 = vunpack.c.h.b16 %v610
        %v691 = vunpack.c.l.b16 %v611
        %v692 = vunpack.c.h.b16 %v611
        %v693 = vunpack.c.l.b16 %v612
        %v694 = vunpack.c.h.b16 %v612
        %v695 = vunpack.c.l.b16 %v613
        %v696 = vunpack.c.h.b16 %v613
        %v697 = vunpack.c.l.b16 %v614
        %v698 = vunpack.c.h.b16 %v614
        %v699 = vunpack.c.l.b16 %v615
        %v700 = vunpack.c.h.b16 %v615
        %v701 = vunpack.c.l.b16 %v616
        %v702 = vunpack.c.h.b16 %v616
        %v703 = vunpack.c.l.b16 %v617
        %v704 = vunpack.c.h.b16 %v617
        %v705 = vunpack.c.l.b16 %v618
        %v706 = vunpack.c.h.b16 %v618
        %v707 = vunpack.c.l.b16 %v619
        %v708 = vunpack.c.h.b16 %v619
        %v709 = vunpack.c.l.b16 %v620
        %v710 = vunpack.c.h.b16 %v620
        %v711 = vpack.c.b16 %v661, %v651
        %v712 = vpack.c.b16 %v662, %v652
        %v713 = vpack.c.b16 %v663, %v653
        %v714 = vpack.c.b16 %v664, %v654
        %v715 = vpack.c.b16 %v665, %v655
        %v716 = vpack.c.b16 %v666, %v656
        %v717 = vpack.c.b16 %v667, %v657
        %v718 = vpack.c.b16 %v668, %v658
        %v719 = vpack.c.b16 %v669, %v659
        %v720 = vpack.c.b16 %v670, %v660
        %v721 = vpack.c.b16 %v681, %v671
        %v722 = vpack.c.b16 %v682, %v672
        %v723 = vpack.c.b16 %v683, %v673
        %v724 = vpack.c.b16 %v684, %v674
        %v725 = vpack.c.b16 %v685, %v675
        %v726 = vpack.c.b16 %v686, %v676
        %v727 = vpack.c.b16 %v687, %v677
        %v728 = vpack.c.b16 %v688, %v678
        %v729 = vpack.c.b16 %v689, %v679
        %v730 = vpack.c.b16 %v690, %v680
        %v731 = vpack.c.b16 %v701, %v691
        %v732 = vpack.c.b16 %v702, %v692
        %v733 = vpack.c.b16 %v703, %v693
        %v734 = vpack.c.b16 %v704, %v694
        %v735 = vpack.c.b16 %v705, %v695
        %v736 = vpack.c.b16 %v706, %v696
        %v737 = vpack.c.b16 %v707, %v697
        %v738 = vpack.c.b16 %v708, %v698
        %v739 = vpack.c.b16 %v709, %v699
        %v740 = vpack.c.b16 %v710, %v700
        %vm761 = vcmask 343040
        %v763 = vsel %vm761, %v590, 0
        %vm765 = vcmask 1044480
        %v767 = vsel %vm765, %v731, 0
        %v770 = vsel %vm765, %v732, 0
        %v773 = vsel %vm765, %v733, 0
        %v776 = vsel %vm765, %v734, 0
        %v779 = vsel %vm765, %v735, 0
        %v782 = vsel %vm765, %v736, 0
        %v785 = vsel %vm765, %v737, 0
        %v788 = vsel %vm765, %v738, 0
        %v791 = vsel %vm765, %v739, 0
        %v794 = vsel %vm765, %v740, 0
        %796 = vmatprep.subr.bf16.mxu0 0
        %797 = vmatpush1.bf16.msra.mxu0 0
        %798 = vmatprep.subr.bf16.mxu0 0
        %799 = vmatpush1.bf16.msra.mxu0 0
        %800 = vmatprep.subr.bf16.mxu0 0
        %801 = vmatpush1.bf16.msra.mxu0 0
        %802 = vmatprep.subr.bf16.mxu0 0
        %803 = vmatpush1.bf16.msra.mxu0 0
        %804 = vmatprep.subr.bf16.mxu0 0
        %805 = vmatpush1.bf16.msra.mxu0 0
        %806 = vmatprep.subr.bf16.mxu0 %v770
        %807 = vmatpush1.bf16.msra.mxu0 %v767
        %808 = vmatprep.subr.bf16.mxu0 %v722
        %809 = vmatpush1.bf16.msra.mxu0 %v721
        %810 = vmatprep.subr.bf16.mxu0 %v712
        %811 = vmatpush1.bf16.msra.mxu0 %v711
        %812 = vmatprep.subr.bf16.mxu0 0
        %813 = vmatpush2.bf16.msra.mxu0 0
        %814 = vmatprep.subr.bf16.mxu0 0
        %815 = vmatpush2.bf16.msra.mxu0 0
        %816 = vmatprep.subr.bf16.mxu0 0
        %817 = vmatpush2.bf16.msra.mxu0 0
        %818 = vmatprep.subr.bf16.mxu0 0
        %819 = vmatpush2.bf16.msra.mxu0 0
        %820 = vmatprep.subr.bf16.mxu0 0
        %821 = vmatpush2.bf16.msra.mxu0 0
        %822 = vmatprep.subr.bf16.mxu0 0
        %823 = vmatpush2.bf16.msra.mxu0 0
        %824 = vmatprep.subr.bf16.mxu0 0
        %825 = vmatpush2.bf16.msra.mxu0 0
        %826 = vmatprep.subr.bf16.mxu0 0
        %827 = vmatpush2.bf16.msra.mxu0 0
        %828 = vmatprep.mubr.bf16.mxu0 0
        %829 = vmatmul.mubr.bf16.gmra.mxu0 %v763
        %v830 = vpop.f32.mrf.mxu0
        %v831 = vadd.f32 0.0, %v830
        %v832 = vpop.f32.mrf.mxu0
        %v833 = vadd.f32 0.0, %v832
        %v834 = vpop.f32.mrf.mxu0
        %v835 = vpop.f32.mrf.mxu0
        %836 = vdwg.mxu0
        %837 = vmatprep.subr.bf16.mxu0 0
        %838 = vmatpush1.bf16.msra.mxu0 0
        %839 = vmatprep.subr.bf16.mxu0 0
        %840 = vmatpush1.bf16.msra.mxu0 0
        %841 = vmatprep.subr.bf16.mxu0 0
        %842 = vmatpush1.bf16.msra.mxu0 0
        %843 = vmatprep.subr.bf16.mxu0 0
        %844 = vmatpush1.bf16.msra.mxu0 0
        %845 = vmatprep.subr.bf16.mxu0 0
        %846 = vmatpush1.bf16.msra.mxu0 0
        %847 = vmatprep.subr.bf16.mxu0 %v776
        %848 = vmatpush1.bf16.msra.mxu0 %v773
        %849 = vmatprep.subr.bf16.mxu0 %v724
        %850 = vmatpush1.bf16.msra.mxu0 %v723
        %851 = vmatprep.subr.bf16.mxu0 %v714
        %852 = vmatpush1.bf16.msra.mxu0 %v713
        %853 = vmatprep.subr.bf16.mxu0 0
        %854 = vmatpush2.bf16.msra.mxu0 0
        %855 = vmatprep.subr.bf16.mxu0 0
        %856 = vmatpush2.bf16.msra.mxu0 0
        %857 = vmatprep.subr.bf16.mxu0 0
        %858 = vmatpush2.bf16.msra.mxu0 0
        %859 = vmatprep.subr.bf16.mxu0 0
        %860 = vmatpush2.bf16.msra.mxu0 0
        %861 = vmatprep.subr.bf16.mxu0 0
        %862 = vmatpush2.bf16.msra.mxu0 0
        %863 = vmatprep.subr.bf16.mxu0 0
        %864 = vmatpush2.bf16.msra.mxu0 0
        %865 = vmatprep.subr.bf16.mxu0 0
        %866 = vmatpush2.bf16.msra.mxu0 0
        %867 = vmatprep.subr.bf16.mxu0 0
        %868 = vmatpush2.bf16.msra.mxu0 0
        %869 = vmatprep.mubr.bf16.mxu0 0
        %870 = vmatmul.mubr.bf16.gmra.mxu0 %v763
        %v871 = vpop.f32.mrf.mxu0
        %v872 = vadd.f32 0.0, %v871
        %v873 = vpop.f32.mrf.mxu0
        %v874 = vadd.f32 0.0, %v873
        %v875 = vpop.f32.mrf.mxu0
        %v876 = vpop.f32.mrf.mxu0
        %877 = vdwg.mxu0
        %878 = vmatprep.subr.bf16.mxu0 0
        %879 = vmatpush1.bf16.msra.mxu0 0
        %880 = vmatprep.subr.bf16.mxu0 0
        %881 = vmatpush1.bf16.msra.mxu0 0
        %882 = vmatprep.subr.bf16.mxu0 0
        %883 = vmatpush1.bf16.msra.mxu0 0
        %884 = vmatprep.subr.bf16.mxu0 0
        %885 = vmatpush1.bf16.msra.mxu0 0
        %886 = vmatprep.subr.bf16.mxu0 0
        %887 = vmatpush1.bf16.msra.mxu0 0
        %888 = vmatprep.subr.bf16.mxu0 %v782
        %889 = vmatpush1.bf16.msra.mxu0 %v779
        %890 = vmatprep.subr.bf16.mxu0 %v726
        %891 = vmatpush1.bf16.msra.mxu0 %v725
        %892 = vmatprep.subr.bf16.mxu0 %v716
        %893 = vmatpush1.bf16.msra.mxu0 %v715
        %894 = vmatprep.subr.bf16.mxu0 0
        %895 = vmatpush2.bf16.msra.mxu0 0
        %896 = vmatprep.subr.bf16.mxu0 0
        %897 = vmatpush2.bf16.msra.mxu0 0
        %898 = vmatprep.subr.bf16.mxu0 0
        %899 = vmatpush2.bf16.msra.mxu0 0
        %900 = vmatprep.subr.bf16.mxu0 0
        %901 = vmatpush2.bf16.msra.mxu0 0
        %902 = vmatprep.subr.bf16.mxu0 0
        %903 = vmatpush2.bf16.msra.mxu0 0
        %904 = vmatprep.subr.bf16.mxu0 0
        %905 = vmatpush2.bf16.msra.mxu0 0
        %906 = vmatprep.subr.bf16.mxu0 0
        %907 = vmatpush2.bf16.msra.mxu0 0
        %908 = vmatprep.subr.bf16.mxu0 0
        %909 = vmatpush2.bf16.msra.mxu0 0
        %910 = vmatprep.mubr.bf16.mxu0 0
        %911 = vmatmul.mubr.bf16.gmra.mxu0 %v763
        %v912 = vpop.f32.mrf.mxu0
        %v913 = vadd.f32 0.0, %v912
        %v914 = vpop.f32.mrf.mxu0
        %v915 = vadd.f32 0.0, %v914
        %v916 = vpop.f32.mrf.mxu0
        %v917 = vpop.f32.mrf.mxu0
        %918 = vdwg.mxu0
        %919 = vmatprep.subr.bf16.mxu0 0
        %920 = vmatpush1.bf16.msra.mxu0 0
        %921 = vmatprep.subr.bf16.mxu0 0
        %922 = vmatpush1.bf16.msra.mxu0 0
        %923 = vmatprep.subr.bf16.mxu0 0
        %924 = vmatpush1.bf16.msra.mxu0 0
        %925 = vmatprep.subr.bf16.mxu0 0
        %926 = vmatpush1.bf16.msra.mxu0 0
        %927 = vmatprep.subr.bf16.mxu0 0
        %928 = vmatpush1.bf16.msra.mxu0 0
        %929 = vmatprep.subr.bf16.mxu0 %v788
        %930 = vmatpush1.bf16.msra.mxu0 %v785
        %931 = vmatprep.subr.bf16.mxu0 %v728
        %932 = vmatpush1.bf16.msra.mxu0 %v727
        %933 = vmatprep.subr.bf16.mxu0 %v718
        %934 = vmatpush1.bf16.msra.mxu0 %v717
        %935 = vmatprep.subr.bf16.mxu0 0
        %936 = vmatpush2.bf16.msra.mxu0 0
        %937 = vmatprep.subr.bf16.mxu0 0
        %938 = vmatpush2.bf16.msra.mxu0 0
        %939 = vmatprep.subr.bf16.mxu0 0
        %940 = vmatpush2.bf16.msra.mxu0 0
        %941 = vmatprep.subr.bf16.mxu0 0
        %942 = vmatpush2.bf16.msra.mxu0 0
        %943 = vmatprep.subr.bf16.mxu0 0
        %944 = vmatpush2.bf16.msra.mxu0 0
        %945 = vmatprep.subr.bf16.mxu0 0
        %946 = vmatpush2.bf16.msra.mxu0 0
        %947 = vmatprep.subr.bf16.mxu0 0
        %948 = vmatpush2.bf16.msra.mxu0 0
        %949 = vmatprep.subr.bf16.mxu0 0
        %950 = vmatpush2.bf16.msra.mxu0 0
        %951 = vmatprep.mubr.bf16.mxu0 0
        %952 = vmatmul.mubr.bf16.gmra.mxu0 %v763
        %v953 = vpop.f32.mrf.mxu0
        %v954 = vadd.f32 0.0, %v953
        %v955 = vpop.f32.mrf.mxu0
        %v956 = vadd.f32 0.0, %v955
        %v957 = vpop.f32.mrf.mxu0
        %v958 = vpop.f32.mrf.mxu0
        %959 = vdwg.mxu0
        %960 = vmatprep.subr.bf16.mxu0 0
        %961 = vmatpush1.bf16.msra.mxu0 0
        %962 = vmatprep.subr.bf16.mxu0 0
        %963 = vmatpush1.bf16.msra.mxu0 0
        %964 = vmatprep.subr.bf16.mxu0 0
        %965 = vmatpush1.bf16.msra.mxu0 0
        %966 = vmatprep.subr.bf16.mxu0 0
        %967 = vmatpush1.bf16.msra.mxu0 0
        %968 = vmatprep.subr.bf16.mxu0 0
        %969 = vmatpush1.bf16.msra.mxu0 0
        %970 = vmatprep.subr.bf16.mxu0 %v794
        %971 = vmatpush1.bf16.msra.mxu0 %v791
        %972 = vmatprep.subr.bf16.mxu0 %v730
        %973 = vmatpush1.bf16.msra.mxu0 %v729
        %974 = vmatprep.subr.bf16.mxu0 %v720
        %975 = vmatpush1.bf16.msra.mxu0 %v719
        %976 = vmatprep.subr.bf16.mxu0 0
        %977 = vmatpush2.bf16.msra.mxu0 0
        %978 = vmatprep.subr.bf16.mxu0 0
        %979 = vmatpush2.bf16.msra.mxu0 0
        %980 = vmatprep.subr.bf16.mxu0 0
        %981 = vmatpush2.bf16.msra.mxu0 0
        %982 = vmatprep.subr.bf16.mxu0 0
        %983 = vmatpush2.bf16.msra.mxu0 0
        %984 = vmatprep.subr.bf16.mxu0 0
        %985 = vmatpush2.bf16.msra.mxu0 0
        %986 = vmatprep.subr.bf16.mxu0 0
        %987 = vmatpush2.bf16.msra.mxu0 0
        %988 = vmatprep.subr.bf16.mxu0 0
        %989 = vmatpush2.bf16.msra.mxu0 0
        %990 = vmatprep.subr.bf16.mxu0 0
        %991 = vmatpush2.bf16.msra.mxu0 0
        %992 = vmatprep.mubr.bf16.mxu0 0
        %993 = vmatmul.mubr.bf16.gmra.mxu0 %v763
        %v994 = vpop.f32.mrf.mxu0
        %v995 = vadd.f32 0.0, %v994
        %v996 = vpop.f32.mrf.mxu0
        %v997 = vadd.f32 0.0, %v996
        %v998 = vpop.f32.mrf.mxu0
        %v999 = vpop.f32.mrf.mxu0
        %1000 = vdwg.mxu0
        %v1001 = vld [vmem:[%s2] sm:$0xff]
        %v1003 = vlaneseq
        %v1004 = vshrl.u32 %v1003, 7
        %v1005 = vsub.s32 0, %v1004
        %v1006 = vrot.slane %v1001, %v1005
        %v1007 = vlaneseq
        %v1008 = vshrl.u32 %v1007, 7
        %v1009 = vsub.s32 1, %v1008
        %v1010 = vrot.slane %v1001, %v1009
        %v1011 = vlaneseq
        %v1012 = vshrl.u32 %v1011, 7
        %v1013 = vsub.s32 2, %v1012
        %v1014 = vrot.slane %v1001, %v1013
        %v1015 = vlaneseq
        %v1016 = vshrl.u32 %v1015, 7
        %v1017 = vsub.s32 3, %v1016
        %v1018 = vrot.slane %v1001, %v1017
        %v1019 = vlaneseq
        %v1020 = vshrl.u32 %v1019, 7
        %v1021 = vsub.s32 4, %v1020
        %v1022 = vrot.slane %v1001, %v1021
        %v1023 = vlaneseq
        %v1024 = vshrl.u32 %v1023, 7
        %v1025 = vsub.s32 5, %v1024
        %v1026 = vrot.slane %v1001, %v1025
        %v1027 = vlaneseq
        %v1028 = vshrl.u32 %v1027, 7
        %v1029 = vsub.s32 6, %v1028
        %v1030 = vrot.slane %v1001, %v1029
        %v1031 = vlaneseq
        %v1032 = vshrl.u32 %v1031, 7
        %v1033 = vsub.s32 7, %v1032
        %v1034 = vrot.slane %v1001, %v1033
        %v1043 = vadd.f32 %v831, %v1006
        %v1044 = vadd.f32 %v833, %v1010
        %v1045 = vadd.f32 %v872, %v1014
        %v1046 = vadd.f32 %v874, %v1018
        %v1047 = vadd.f32 %v913, %v1022
        %v1048 = vadd.f32 %v915, %v1026
        %v1049 = vadd.f32 %v954, %v1030
        %v1050 = vadd.f32 %v956, %v1034
        %v1051 = vmax.f32 %v1043, 0.0
        %v1052 = vmax.f32 %v1044, 0.0
        %v1053 = vmax.f32 %v1045, 0.0
        %v1054 = vmax.f32 %v1046, 0.0
        %v1055 = vmax.f32 %v1047, 0.0
        %v1056 = vmax.f32 %v1048, 0.0
        %v1057 = vmax.f32 %v1049, 0.0
        %v1058 = vmax.f32 %v1050, 0.0
        %v1059 = vpack.c.bf16 %v1051, %v1051
        %v1060 = vpack.c.bf16 %v1052, %v1052
        %v1061 = vpack.c.bf16 %v1053, %v1053
        %v1062 = vpack.c.bf16 %v1054, %v1054
        %v1063 = vld [vmem:[%s3] sm:$0xff]
        %v1064 = vld [vmem:[%s3 + $0x8] sm:$0xff]
        %v1065 = vld [vmem:[%s3 + $0x10] sm:$0xff]
        %v1066 = vld [vmem:[%s3 + $0x18] sm:$0xff]
        %v1067 = vld [vmem:[%s3 + $0x20] sm:$0xff]
        %v1068 = vld [vmem:[%s3 + $0x28] sm:$0xff]
        %v1069 = vld [vmem:[%s3 + $0x30] sm:$0xff]
        %v1070 = vld [vmem:[%s3 + $0x38] sm:$0xff]
        %v1071 = vld [vmem:[%s3 + $0x40] sm:$0xff]
        %v1072 = vld [vmem:[%s3 + $0x48] sm:$0xff]
        %v1073 = vld [vmem:[%s3 + $0x50] sm:$0xff]
        %v1074 = vld [vmem:[%s3 + $0x58] sm:$0xff]
        %v1075 = vld [vmem:[%s3 + $0x60] sm:$0xff]
        %v1076 = vld [vmem:[%s3 + $0x68] sm:$0xff]
        %v1077 = vld [vmem:[%s3 + $0x70] sm:$0xff]
        %v1078 = vld [vmem:[%s3 + $0x78] sm:$0xff]
        %v1079 = vld [vmem:[%s3 + $0x80] sm:$0xff]
        %v1080 = vld [vmem:[%s3 + $0x88] sm:$0xff]
        %v1081 = vld [vmem:[%s3 + $0x90] sm:$0xff]
        %v1082 = vld [vmem:[%s3 + $0x98] sm:$0xff]
        %v1083 = vld [vmem:[%s3 + $0xa0] sm:$0xff]
        %v1084 = vld [vmem:[%s3 + $0xa8] sm:$0xff]
        %v1085 = vld [vmem:[%s3 + $0xb0] sm:$0xff]
        %v1086 = vld [vmem:[%s3 + $0xb8] sm:$0xff]
        %v1087 = vld [vmem:[%s3 + $0xc0] sm:$0xff]
        %v1088 = vld [vmem:[%s3 + $0xc8] sm:$0xff]
        %v1089 = vld [vmem:[%s3 + $0xd0] sm:$0xff]
        %v1090 = vld [vmem:[%s3 + $0xd8] sm:$0xff]
        %v1091 = vld [vmem:[%s3 + $0xe0] sm:$0xff]
        %v1092 = vld [vmem:[%s3 + $0xe8] sm:$0xff]
        %v1093 = vld [vmem:[%s3 + $0xf0] sm:$0xff]
        %v1094 = vld [vmem:[%s3 + $0xf8] sm:$0xff]
        %v1095 = vld [vmem:[%s3 + $0x100] sm:$0xff]
        %v1096 = vld [vmem:[%s3 + $0x108] sm:$0xff]
        %v1097 = vld [vmem:[%s3 + $0x110] sm:$0xff]
        %v1098 = vld [vmem:[%s3 + $0x118] sm:$0xff]
        %v1099 = vld [vmem:[%s3 + $0x120] sm:$0xff]
        %v1100 = vld [vmem:[%s3 + $0x128] sm:$0xff]
        %v1101 = vld [vmem:[%s3 + $0x130] sm:$0xff]
        %v1102 = vld [vmem:[%s3 + $0x138] sm:$0xff]
        %v1103 = vld [vmem:[%s3 + $0x140] sm:$0xff]
        %v1104 = vld [vmem:[%s3 + $0x148] sm:$0xff]
        %v1105 = vld [vmem:[%s3 + $0x150] sm:$0xff]
        %v1106 = vld [vmem:[%s3 + $0x158] sm:$0xff]
        %v1107 = vld [vmem:[%s3 + $0x160] sm:$0xff]
        %v1108 = vld [vmem:[%s3 + $0x168] sm:$0xff]
        %v1109 = vld [vmem:[%s3 + $0x170] sm:$0xff]
        %v1110 = vld [vmem:[%s3 + $0x178] sm:$0xff]
        %v1111 = vld [vmem:[%s3 + $0x180] sm:$0xff]
        %v1112 = vld [vmem:[%s3 + $0x188] sm:$0xff]
        %v1113 = vld [vmem:[%s3 + $0x190] sm:$0xff]
        %v1114 = vld [vmem:[%s3 + $0x198] sm:$0xff]
        %v1115 = vld [vmem:[%s3 + $0x1a0] sm:$0xff]
        %v1116 = vld [vmem:[%s3 + $0x1a8] sm:$0xff]
        %v1117 = vld [vmem:[%s3 + $0x1b0] sm:$0xff]
        %v1118 = vld [vmem:[%s3 + $0x1b8] sm:$0xff]
        %v1119 = vld [vmem:[%s3 + $0x1c0] sm:$0xff]
        %v1120 = vld [vmem:[%s3 + $0x1c8] sm:$0xff]
        %v1121 = vld [vmem:[%s3 + $0x1d0] sm:$0xff]
        %v1122 = vld [vmem:[%s3 + $0x1d8] sm:$0xff]
        %v1123 = vld [vmem:[%s3 + $0x1e0] sm:$0xff]
        %v1124 = vld [vmem:[%s3 + $0x1e8] sm:$0xff]
        %v1125 = vld [vmem:[%s3 + $0x1f0] sm:$0xff]
        %v1126 = vld [vmem:[%s3 + $0x1f8] sm:$0xff]
        %v1127 = vld [vmem:[%s4] sm:$0x3]
        %v1129 = vlaneseq
        %v1130 = vshrl.u32 %v1129, 7
        %v1131 = vsub.s32 0, %v1130
        %v1132 = vrot.slane %v1127, %v1131
        %v1133 = vlaneseq
        %v1134 = vshrl.u32 %v1133, 7
        %v1135 = vsub.s32 1, %v1134
        %v1136 = vrot.slane %v1127, %v1135
        %v1203 = vunpack.c.l.b16 %v1063
        %v1204 = vunpack.c.h.b16 %v1063
        %v1205 = vunpack.c.l.b16 %v1064
        %v1206 = vunpack.c.h.b16 %v1064
        %v1207 = vunpack.c.l.b16 %v1065
        %v1208 = vunpack.c.h.b16 %v1065
        %v1209 = vunpack.c.l.b16 %v1066
        %v1210 = vunpack.c.h.b16 %v1066
        %v1211 = vunpack.c.l.b16 %v1067
        %v1212 = vunpack.c.h.b16 %v1067
        %v1213 = vunpack.c.l.b16 %v1068
        %v1214 = vunpack.c.h.b16 %v1068
        %v1215 = vunpack.c.l.b16 %v1069
        %v1216 = vunpack.c.h.b16 %v1069
        %v1217 = vunpack.c.l.b16 %v1070
        %v1218 = vunpack.c.h.b16 %v1070
        %v1219 = vunpack.c.l.b16 %v1071
        %v1220 = vunpack.c.h.b16 %v1071
        %v1221 = vunpack.c.l.b16 %v1072
        %v1222 = vunpack.c.h.b16 %v1072
        %v1223 = vunpack.c.l.b16 %v1073
        %v1224 = vunpack.c.h.b16 %v1073
        %v1225 = vunpack.c.l.b16 %v1074
        %v1226 = vunpack.c.h.b16 %v1074
        %v1227 = vunpack.c.l.b16 %v1075
        %v1228 = vunpack.c.h.b16 %v1075
        %v1229 = vunpack.c.l.b16 %v1076
        %v1230 = vunpack.c.h.b16 %v1076
        %v1231 = vunpack.c.l.b16 %v1077
        %v1232 = vunpack.c.h.b16 %v1077
        %v1233 = vunpack.c.l.b16 %v1078
        %v1234 = vunpack.c.h.b16 %v1078
        %v1235 = vunpack.c.l.b16 %v1079
        %v1236 = vunpack.c.h.b16 %v1079
        %v1237 = vunpack.c.l.b16 %v1080
        %v1238 = vunpack.c.h.b16 %v1080
        %v1239 = vunpack.c.l.b16 %v1081
        %v1240 = vunpack.c.h.b16 %v1081
        %v1241 = vunpack.c.l.b16 %v1082
        %v1242 = vunpack.c.h.b16 %v1082
        %v1243 = vunpack.c.l.b16 %v1083
        %v1244 = vunpack.c.h.b16 %v1083
        %v1245 = vunpack.c.l.b16 %v1084
        %v1246 = vunpack.c.h.b16 %v1084
        %v1247 = vunpack.c.l.b16 %v1085
        %v1248 = vunpack.c.h.b16 %v1085
        %v1249 = vunpack.c.l.b16 %v1086
        %v1250 = vunpack.c.h.b16 %v1086
        %v1251 = vunpack.c.l.b16 %v1087
        %v1252 = vunpack.c.h.b16 %v1087
        %v1253 = vunpack.c.l.b16 %v1088
        %v1254 = vunpack.c.h.b16 %v1088
        %v1255 = vunpack.c.l.b16 %v1089
        %v1256 = vunpack.c.h.b16 %v1089
        %v1257 = vunpack.c.l.b16 %v1090
        %v1258 = vunpack.c.h.b16 %v1090
        %v1259 = vunpack.c.l.b16 %v1091
        %v1260 = vunpack.c.h.b16 %v1091
        %v1261 = vunpack.c.l.b16 %v1092
        %v1262 = vunpack.c.h.b16 %v1092
        %v1263 = vunpack.c.l.b16 %v1093
        %v1264 = vunpack.c.h.b16 %v1093
        %v1265 = vunpack.c.l.b16 %v1094
        %v1266 = vunpack.c.h.b16 %v1094
        %v1267 = vunpack.c.l.b16 %v1095
        %v1268 = vunpack.c.h.b16 %v1095
        %v1269 = vunpack.c.l.b16 %v1096
        %v1270 = vunpack.c.h.b16 %v1096
        %v1271 = vunpack.c.l.b16 %v1097
        %v1272 = vunpack.c.h.b16 %v1097
        %v1273 = vunpack.c.l.b16 %v1098
        %v1274 = vunpack.c.h.b16 %v1098
        %v1275 = vunpack.c.l.b16 %v1099
        %v1276 = vunpack.c.h.b16 %v1099
        %v1277 = vunpack.c.l.b16 %v1100
        %v1278 = vunpack.c.h.b16 %v1100
        %v1279 = vunpack.c.l.b16 %v1101
        %v1280 = vunpack.c.h.b16 %v1101
        %v1281 = vunpack.c.l.b16 %v1102
        %v1282 = vunpack.c.h.b16 %v1102
        %v1283 = vunpack.c.l.b16 %v1103
        %v1284 = vunpack.c.h.b16 %v1103
        %v1285 = vunpack.c.l.b16 %v1104
        %v1286 = vunpack.c.h.b16 %v1104
        %v1287 = vunpack.c.l.b16 %v1105
        %v1288 = vunpack.c.h.b16 %v1105
        %v1289 = vunpack.c.l.b16 %v1106
        %v1290 = vunpack.c.h.b16 %v1106
        %v1291 = vunpack.c.l.b16 %v1107
        %v1292 = vunpack.c.h.b16 %v1107
        %v1293 = vunpack.c.l.b16 %v1108
        %v1294 = vunpack.c.h.b16 %v1108
        %v1295 = vunpack.c.l.b16 %v1109
        %v1296 = vunpack.c.h.b16 %v1109
        %v1297 = vunpack.c.l.b16 %v1110
        %v1298 = vunpack.c.h.b16 %v1110
        %v1299 = vunpack.c.l.b16 %v1111
        %v1300 = vunpack.c.h.b16 %v1111
        %v1301 = vunpack.c.l.b16 %v1112
        %v1302 = vunpack.c.h.b16 %v1112
        %v1303 = vunpack.c.l.b16 %v1113
        %v1304 = vunpack.c.h.b16 %v1113
        %v1305 = vunpack.c.l.b16 %v1114
        %v1306 = vunpack.c.h.b16 %v1114
        %v1307 = vunpack.c.l.b16 %v1115
        %v1308 = vunpack.c.h.b16 %v1115
        %v1309 = vunpack.c.l.b16 %v1116
        %v1310 = vunpack.c.h.b16 %v1116
        %v1311 = vunpack.c.l.b16 %v1117
        %v1312 = vunpack.c.h.b16 %v1117
        %v1313 = vunpack.c.l.b16 %v1118
        %v1314 = vunpack.c.h.b16 %v1118
        %v1315 = vunpack.c.l.b16 %v1119
        %v1316 = vunpack.c.h.b16 %v1119
        %v1317 = vunpack.c.l.b16 %v1120
        %v1318 = vunpack.c.h.b16 %v1120
        %v1319 = vunpack.c.l.b16 %v1121
        %v1320 = vunpack.c.h.b16 %v1121
        %v1321 = vunpack.c.l.b16 %v1122
        %v1322 = vunpack.c.h.b16 %v1122
        %v1323 = vunpack.c.l.b16 %v1123
        %v1324 = vunpack.c.h.b16 %v1123
        %v1325 = vunpack.c.l.b16 %v1124
        %v1326 = vunpack.c.h.b16 %v1124
        %v1327 = vunpack.c.l.b16 %v1125
        %v1328 = vunpack.c.h.b16 %v1125
        %v1329 = vunpack.c.l.b16 %v1126
        %v1330 = vunpack.c.h.b16 %v1126
        %v1331 = vpack.c.b16 %v1205, %v1203
        %v1332 = vpack.c.b16 %v1206, %v1204
        %v1333 = vpack.c.b16 %v1209, %v1207
        %v1334 = vpack.c.b16 %v1210, %v1208
        %v1335 = vpack.c.b16 %v1213, %v1211
        %v1336 = vpack.c.b16 %v1214, %v1212
        %v1337 = vpack.c.b16 %v1217, %v1215
        %v1338 = vpack.c.b16 %v1218, %v1216
        %v1339 = vpack.c.b16 %v1221, %v1219
        %v1340 = vpack.c.b16 %v1222, %v1220
        %v1341 = vpack.c.b16 %v1225, %v1223
        %v1342 = vpack.c.b16 %v1226, %v1224
        %v1343 = vpack.c.b16 %v1229, %v1227
        %v1344 = vpack.c.b16 %v1230, %v1228
        %v1345 = vpack.c.b16 %v1233, %v1231
        %v1346 = vpack.c.b16 %v1234, %v1232
        %v1347 = vpack.c.b16 %v1237, %v1235
        %v1348 = vpack.c.b16 %v1238, %v1236
        %v1349 = vpack.c.b16 %v1241, %v1239
        %v1350 = vpack.c.b16 %v1242, %v1240
        %v1351 = vpack.c.b16 %v1245, %v1243
        %v1352 = vpack.c.b16 %v1246, %v1244
        %v1353 = vpack.c.b16 %v1249, %v1247
        %v1354 = vpack.c.b16 %v1250, %v1248
        %v1355 = vpack.c.b16 %v1253, %v1251
        %v1356 = vpack.c.b16 %v1254, %v1252
        %v1357 = vpack.c.b16 %v1257, %v1255
        %v1358 = vpack.c.b16 %v1258, %v1256
        %v1359 = vpack.c.b16 %v1261, %v1259
        %v1360 = vpack.c.b16 %v1262, %v1260
        %v1361 = vpack.c.b16 %v1265, %v1263
        %v1362 = vpack.c.b16 %v1266, %v1264
        %v1363 = vpack.c.b16 %v1269, %v1267
        %v1364 = vpack.c.b16 %v1270, %v1268
        %v1365 = vpack.c.b16 %v1273, %v1271
        %v1366 = vpack.c.b16 %v1274, %v1272
        %v1367 = vpack.c.b16 %v1277, %v1275
        %v1368 = vpack.c.b16 %v1278, %v1276
        %v1369 = vpack.c.b16 %v1281, %v1279
        %v1370 = vpack.c.b16 %v1282, %v1280
        %v1371 = vpack.c.b16 %v1285, %v1283
        %v1372 = vpack.c.b16 %v1286, %v1284
        %v1373 = vpack.c.b16 %v1289, %v1287
        %v1374 = vpack.c.b16 %v1290, %v1288
        %v1375 = vpack.c.b16 %v1293, %v1291
        %v1376 = vpack.c.b16 %v1294, %v1292
        %v1377 = vpack.c.b16 %v1297, %v1295
        %v1378 = vpack.c.b16 %v1298, %v1296
        %v1379 = vpack.c.b16 %v1301, %v1299
        %v1380 = vpack.c.b16 %v1302, %v1300
        %v1381 = vpack.c.b16 %v1305, %v1303
        %v1382 = vpack.c.b16 %v1306, %v1304
        %v1383 = vpack.c.b16 %v1309, %v1307
        %v1384 = vpack.c.b16 %v1310, %v1308
        %v1385 = vpack.c.b16 %v1313, %v1311
        %v1386 = vpack.c.b16 %v1314, %v1312
        %v1387 = vpack.c.b16 %v1317, %v1315
        %v1388 = vpack.c.b16 %v1318, %v1316
        %v1389 = vpack.c.b16 %v1321, %v1319
        %v1390 = vpack.c.b16 %v1322, %v1320
        %v1391 = vpack.c.b16 %v1325, %v1323
        %v1392 = vpack.c.b16 %v1326, %v1324
        %v1393 = vpack.c.b16 %v1329, %v1327
        %v1394 = vpack.c.b16 %v1330, %v1328
        %1459 = vmatprep.subr.bf16.mxu0 %v1346
        %1460 = vmatpush1.bf16.msra.mxu0 %v1345
        %1461 = vmatprep.subr.bf16.mxu0 %v1344
        %1462 = vmatpush1.bf16.msra.mxu0 %v1343
        %1463 = vmatprep.subr.bf16.mxu0 %v1342
        %1464 = vmatpush1.bf16.msra.mxu0 %v1341
        %1465 = vmatprep.subr.bf16.mxu0 %v1340
        %1466 = vmatpush1.bf16.msra.mxu0 %v1339
        %1467 = vmatprep.subr.bf16.mxu0 %v1338
        %1468 = vmatpush1.bf16.msra.mxu0 %v1337
        %1469 = vmatprep.subr.bf16.mxu0 %v1336
        %1470 = vmatpush1.bf16.msra.mxu0 %v1335
        %1471 = vmatprep.subr.bf16.mxu0 %v1334
        %1472 = vmatpush1.bf16.msra.mxu0 %v1333
        %1473 = vmatprep.subr.bf16.mxu0 %v1332
        %1474 = vmatpush1.bf16.msra.mxu0 %v1331
        %1475 = vmatprep.subr.bf16.mxu0 %v1362
        %1476 = vmatpush2.bf16.msra.mxu0 %v1361
        %1477 = vmatprep.subr.bf16.mxu0 %v1360
        %1478 = vmatpush2.bf16.msra.mxu0 %v1359
        %1479 = vmatprep.subr.bf16.mxu0 %v1358
        %1480 = vmatpush2.bf16.msra.mxu0 %v1357
        %1481 = vmatprep.subr.bf16.mxu0 %v1356
        %1482 = vmatpush2.bf16.msra.mxu0 %v1355
        %1483 = vmatprep.subr.bf16.mxu0 %v1354
        %1484 = vmatpush2.bf16.msra.mxu0 %v1353
        %1485 = vmatprep.subr.bf16.mxu0 %v1352
        %1486 = vmatpush2.bf16.msra.mxu0 %v1351
        %1487 = vmatprep.subr.bf16.mxu0 %v1350
        %1488 = vmatpush2.bf16.msra.mxu0 %v1349
        %1489 = vmatprep.subr.bf16.mxu0 %v1348
        %1490 = vmatpush2.bf16.msra.mxu0 %v1347
        %1491 = vmatprep.mubr.bf16.mxu0 %v1060
        %1492 = vmatmul.mubr.bf16.gmra.mxu0 %v1059
        %v1493 = vpop.f32.mrf.mxu0
        %v1494 = vadd.f32 %v1132, %v1493
        %v1495 = vpop.f32.mrf.mxu0
        %v1496 = vadd.f32 %v1136, %v1495
        %v1497 = vpop.f32.mrf.mxu0
        %v1498 = vpop.f32.mrf.mxu0
        %1499 = vdwg.mxu0
        %1500 = vmatprep.subr.bf16.mxu0 %v1378
        %1501 = vmatpush1.bf16.msra.mxu0 %v1377
        %1502 = vmatprep.subr.bf16.mxu0 %v1376
        %1503 = vmatpush1.bf16.msra.mxu0 %v1375
        %1504 = vmatprep.subr.bf16.mxu0 %v1374
        %1505 = vmatpush1.bf16.msra.mxu0 %v1373
        %1506 = vmatprep.subr.bf16.mxu0 %v1372
        %1507 = vmatpush1.bf16.msra.mxu0 %v1371
        %1508 = vmatprep.subr.bf16.mxu0 %v1370
        %1509 = vmatpush1.bf16.msra.mxu0 %v1369
        %1510 = vmatprep.subr.bf16.mxu0 %v1368
        %1511 = vmatpush1.bf16.msra.mxu0 %v1367
        %1512 = vmatprep.subr.bf16.mxu0 %v1366
        %1513 = vmatpush1.bf16.msra.mxu0 %v1365
        %1514 = vmatprep.subr.bf16.mxu0 %v1364
        %1515 = vmatpush1.bf16.msra.mxu0 %v1363
        %1516 = vmatprep.subr.bf16.mxu0 %v1394
        %1517 = vmatpush2.bf16.msra.mxu0 %v1393
        %1518 = vmatprep.subr.bf16.mxu0 %v1392
        %1519 = vmatpush2.bf16.msra.mxu0 %v1391
        %1520 = vmatprep.subr.bf16.mxu0 %v1390
        %1521 = vmatpush2.bf16.msra.mxu0 %v1389
        %1522 = vmatprep.subr.bf16.mxu0 %v1388
        %1523 = vmatpush2.bf16.msra.mxu0 %v1387
        %1524 = vmatprep.subr.bf16.mxu0 %v1386
        %1525 = vmatpush2.bf16.msra.mxu0 %v1385
        %1526 = vmatprep.subr.bf16.mxu0 %v1384
        %1527 = vmatpush2.bf16.msra.mxu0 %v1383
        %1528 = vmatprep.subr.bf16.mxu0 %v1382
        %1529 = vmatpush2.bf16.msra.mxu0 %v1381
        %1530 = vmatprep.subr.bf16.mxu0 %v1380
        %1531 = vmatpush2.bf16.msra.mxu0 %v1379
        %1532 = vmatprep.mubr.bf16.mxu0 %v1062
        %1533 = vmatmul.mubr.bf16.gmra.mxu0 %v1061
        %v1534 = vpop.f32.mrf.mxu0
        %v1535 = vadd.f32 %v1494, %v1534
        %v1536 = vpop.f32.mrf.mxu0
        %v1537 = vadd.f32 %v1496, %v1536
        %v1538 = vpop.f32.mrf.mxu0
        %v1539 = vpop.f32.mrf.mxu0
        %1540 = vdwg.mxu0
        %v1541 = vmax.f32 %v1535, 0.0
        %v1542 = vmax.f32 %v1537, 0.0
        %v1543 = vpack.c.bf16 %v1541, %v1541
        %v1544 = vpack.c.bf16 %v1542, %v1542
        %v1545 = vld [vmem:[%s5] sm:$0xff]
        %v1546 = vld [vmem:[%s5 + $0x8] sm:$0xff]
        %v1547 = vld [vmem:[%s5 + $0x10] sm:$0xff]
        %v1548 = vld [vmem:[%s5 + $0x18] sm:$0xff]
        %v1549 = vld [vmem:[%s5 + $0x20] sm:$0xff]
        %v1550 = vld [vmem:[%s5 + $0x28] sm:$0xff]
        %v1551 = vld [vmem:[%s5 + $0x30] sm:$0xff]
        %v1552 = vld [vmem:[%s5 + $0x38] sm:$0xff]
        %v1553 = vld [vmem:[%s5 + $0x40] sm:$0xff]
        %v1554 = vld [vmem:[%s5 + $0x48] sm:$0xff]
        %v1555 = vld [vmem:[%s5 + $0x50] sm:$0xff]
        %v1556 = vld [vmem:[%s5 + $0x58] sm:$0xff]
        %v1557 = vld [vmem:[%s5 + $0x60] sm:$0xff]
        %v1558 = vld [vmem:[%s5 + $0x68] sm:$0xff]
        %v1559 = vld [vmem:[%s5 + $0x70] sm:$0xff]
        %v1560 = vld [vmem:[%s5 + $0x78] sm:$0xff]
        %v1561 = vld [vmem:[%s5 + $0x80] sm:$0xff]
        %v1562 = vld [vmem:[%s5 + $0x88] sm:$0xff]
        %v1563 = vld [vmem:[%s5 + $0x90] sm:$0xff]
        %v1564 = vld [vmem:[%s5 + $0x98] sm:$0xff]
        %v1565 = vld [vmem:[%s5 + $0xa0] sm:$0xff]
        %v1566 = vld [vmem:[%s5 + $0xa8] sm:$0xff]
        %v1567 = vld [vmem:[%s5 + $0xb0] sm:$0xff]
        %v1568 = vld [vmem:[%s5 + $0xb8] sm:$0xff]
        %v1569 = vld [vmem:[%s5 + $0xc0] sm:$0xff]
        %v1570 = vld [vmem:[%s5 + $0xc8] sm:$0xff]
        %v1571 = vld [vmem:[%s5 + $0xd0] sm:$0xff]
        %v1572 = vld [vmem:[%s5 + $0xd8] sm:$0xff]
        %v1573 = vld [vmem:[%s5 + $0xe0] sm:$0xff]
        %v1574 = vld [vmem:[%s5 + $0xe8] sm:$0xff]
        %v1575 = vld [vmem:[%s5 + $0xf0] sm:$0xff]
        %v1576 = vld [vmem:[%s5 + $0xf8] sm:$0xff]
        %v1609 = vunpack.c.l.b16 %v1545
        %v1610 = vunpack.c.h.b16 %v1545
        %v1611 = vunpack.c.l.b16 %v1546
        %v1612 = vunpack.c.h.b16 %v1546
        %v1613 = vunpack.c.l.b16 %v1547
        %v1614 = vunpack.c.h.b16 %v1547
        %v1615 = vunpack.c.l.b16 %v1548
        %v1616 = vunpack.c.h.b16 %v1548
        %v1617 = vunpack.c.l.b16 %v1549
        %v1618 = vunpack.c.h.b16 %v1549
        %v1619 = vunpack.c.l.b16 %v1550
        %v1620 = vunpack.c.h.b16 %v1550
        %v1621 = vunpack.c.l.b16 %v1551
        %v1622 = vunpack.c.h.b16 %v1551
        %v1623 = vunpack.c.l.b16 %v1552
        %v1624 = vunpack.c.h.b16 %v1552
        %v1625 = vunpack.c.l.b16 %v1553
        %v1626 = vunpack.c.h.b16 %v1553
        %v1627 = vunpack.c.l.b16 %v1554
        %v1628 = vunpack.c.h.b16 %v1554
        %v1629 = vunpack.c.l.b16 %v1555
        %v1630 = vunpack.c.h.b16 %v1555
        %v1631 = vunpack.c.l.b16 %v1556
        %v1632 = vunpack.c.h.b16 %v1556
        %v1633 = vunpack.c.l.b16 %v1557
        %v1634 = vunpack.c.h.b16 %v1557
        %v1635 = vunpack.c.l.b16 %v1558
        %v1636 = vunpack.c.h.b16 %v1558
        %v1637 = vunpack.c.l.b16 %v1559
        %v1638 = vunpack.c.h.b16 %v1559
        %v1639 = vunpack.c.l.b16 %v1560
        %v1640 = vunpack.c.h.b16 %v1560
        %v1641 = vunpack.c.l.b16 %v1561
        %v1642 = vunpack.c.h.b16 %v1561
        %v1643 = vunpack.c.l.b16 %v1562
        %v1644 = vunpack.c.h.b16 %v1562
        %v1645 = vunpack.c.l.b16 %v1563
        %v1646 = vunpack.c.h.b16 %v1563
        %v1647 = vunpack.c.l.b16 %v1564
        %v1648 = vunpack.c.h.b16 %v1564
        %v1649 = vunpack.c.l.b16 %v1565
        %v1650 = vunpack.c.h.b16 %v1565
        %v1651 = vunpack.c.l.b16 %v1566
        %v1652 = vunpack.c.h.b16 %v1566
        %v1653 = vunpack.c.l.b16 %v1567
        %v1654 = vunpack.c.h.b16 %v1567
        %v1655 = vunpack.c.l.b16 %v1568
        %v1656 = vunpack.c.h.b16 %v1568
        %v1657 = vunpack.c.l.b16 %v1569
        %v1658 = vunpack.c.h.b16 %v1569
        %v1659 = vunpack.c.l.b16 %v1570
        %v1660 = vunpack.c.h.b16 %v1570
        %v1661 = vunpack.c.l.b16 %v1571
        %v1662 = vunpack.c.h.b16 %v1571
        %v1663 = vunpack.c.l.b16 %v1572
        %v1664 = vunpack.c.h.b16 %v1572
        %v1665 = vunpack.c.l.b16 %v1573
        %v1666 = vunpack.c.h.b16 %v1573
        %v1667 = vunpack.c.l.b16 %v1574
        %v1668 = vunpack.c.h.b16 %v1574
        %v1669 = vunpack.c.l.b16 %v1575
        %v1670 = vunpack.c.h.b16 %v1575
        %v1671 = vunpack.c.l.b16 %v1576
        %v1672 = vunpack.c.h.b16 %v1576
        %v1673 = vpack.c.b16 %v1611, %v1609
        %v1674 = vpack.c.b16 %v1612, %v1610
        %v1675 = vpack.c.b16 %v1615, %v1613
        %v1676 = vpack.c.b16 %v1616, %v1614
        %v1677 = vpack.c.b16 %v1619, %v1617
        %v1678 = vpack.c.b16 %v1620, %v1618
        %v1679 = vpack.c.b16 %v1623, %v1621
        %v1680 = vpack.c.b16 %v1624, %v1622
        %v1681 = vpack.c.b16 %v1627, %v1625
        %v1682 = vpack.c.b16 %v1628, %v1626
        %v1683 = vpack.c.b16 %v1631, %v1629
        %v1684 = vpack.c.b16 %v1632, %v1630
        %v1685 = vpack.c.b16 %v1635, %v1633
        %v1686 = vpack.c.b16 %v1636, %v1634
        %v1687 = vpack.c.b16 %v1639, %v1637
        %v1688 = vpack.c.b16 %v1640, %v1638
        %v1689 = vpack.c.b16 %v1643, %v1641
        %v1690 = vpack.c.b16 %v1644, %v1642
        %v1691 = vpack.c.b16 %v1647, %v1645
        %v1692 = vpack.c.b16 %v1648, %v1646
        %v1693 = vpack.c.b16 %v1651, %v1649
        %v1694 = vpack.c.b16 %v1652, %v1650
        %v1695 = vpack.c.b16 %v1655, %v1653
        %v1696 = vpack.c.b16 %v1656, %v1654
        %v1697 = vpack.c.b16 %v1659, %v1657
        %v1698 = vpack.c.b16 %v1660, %v1658
        %v1699 = vpack.c.b16 %v1663, %v1661
        %v1700 = vpack.c.b16 %v1664, %v1662
        %v1701 = vpack.c.b16 %v1667, %v1665
        %v1702 = vpack.c.b16 %v1668, %v1666
        %v1703 = vpack.c.b16 %v1671, %v1669
        %v1704 = vpack.c.b16 %v1672, %v1670
        %1737 = vmatprep.subr.bf16.mxu0 %v1688
        %1738 = vmatpush1.bf16.msra.mxu0 %v1687
        %1739 = vmatprep.subr.bf16.mxu0 %v1686
        %1740 = vmatpush1.bf16.msra.mxu0 %v1685
        %1741 = vmatprep.subr.bf16.mxu0 %v1684
        %1742 = vmatpush1.bf16.msra.mxu0 %v1683
        %1743 = vmatprep.subr.bf16.mxu0 %v1682
        %1744 = vmatpush1.bf16.msra.mxu0 %v1681
        %1745 = vmatprep.subr.bf16.mxu0 %v1680
        %1746 = vmatpush1.bf16.msra.mxu0 %v1679
        %1747 = vmatprep.subr.bf16.mxu0 %v1678
        %1748 = vmatpush1.bf16.msra.mxu0 %v1677
        %1749 = vmatprep.subr.bf16.mxu0 %v1676
        %1750 = vmatpush1.bf16.msra.mxu0 %v1675
        %1751 = vmatprep.subr.bf16.mxu0 %v1674
        %1752 = vmatpush1.bf16.msra.mxu0 %v1673
        %1753 = vmatprep.subr.bf16.mxu0 %v1704
        %1754 = vmatpush2.bf16.msra.mxu0 %v1703
        %1755 = vmatprep.subr.bf16.mxu0 %v1702
        %1756 = vmatpush2.bf16.msra.mxu0 %v1701
        %1757 = vmatprep.subr.bf16.mxu0 %v1700
        %1758 = vmatpush2.bf16.msra.mxu0 %v1699
        %1759 = vmatprep.subr.bf16.mxu0 %v1698
        %1760 = vmatpush2.bf16.msra.mxu0 %v1697
        %1761 = vmatprep.subr.bf16.mxu0 %v1696
        %1762 = vmatpush2.bf16.msra.mxu0 %v1695
        %1763 = vmatprep.subr.bf16.mxu0 %v1694
        %1764 = vmatpush2.bf16.msra.mxu0 %v1693
        %1765 = vmatprep.subr.bf16.mxu0 %v1692
        %1766 = vmatpush2.bf16.msra.mxu0 %v1691
        %1767 = vmatprep.subr.bf16.mxu0 %v1690
        %1768 = vmatpush2.bf16.msra.mxu0 %v1689
        %1769 = vmatprep.mubr.bf16.mxu0 %v1544
        %1770 = vmatmul.mubr.bf16.gmra.mxu0 %v1543
        %v1771 = vpop.f32.mrf.mxu0
        %v1772 = vadd.f32 %v995, %v1771
        %v1773 = vpop.f32.mrf.mxu0
        %v1774 = vadd.f32 %v997, %v1773
        %v1775 = vpop.f32.mrf.mxu0
        %v1776 = vpop.f32.mrf.mxu0
        %1777 = vdwg.mxu0
        %v1778 = vld [vmem:[%s6] sm:$0x3]
        %v1780 = vlaneseq
        %v1781 = vshrl.u32 %v1780, 7
        %v1782 = vsub.s32 0, %v1781
        %v1783 = vrot.slane %v1778, %v1782
        %v1784 = vlaneseq
        %v1785 = vshrl.u32 %v1784, 7
        %v1786 = vsub.s32 1, %v1785
        %v1787 = vrot.slane %v1778, %v1786
        %v1790 = vadd.f32 %v1772, %v1783
        %v1791 = vadd.f32 %v1774, %v1787
        %v1792 = vmax.f32 %v1790, 0.0
        %v1793 = vmax.f32 %v1791, 0.0
        %v1794 = vpack.c.bf16 %v1792, %v1792
        %v1795 = vpack.c.bf16 %v1793, %v1793
        %v1796 = vld [vmem:[%s7] sm:$0xf]
        %v1797 = vld [vmem:[%s7 + $0x4] sm:$0xf]
        %v1798 = vld [vmem:[%s7 + $0x8] sm:$0xf]
        %v1799 = vld [vmem:[%s7 + $0xc] sm:$0xf]
        %v1800 = vld [vmem:[%s7 + $0x10] sm:$0xf]
        %v1801 = vld [vmem:[%s7 + $0x14] sm:$0xf]
        %v1802 = vld [vmem:[%s7 + $0x18] sm:$0xf]
        %v1803 = vld [vmem:[%s7 + $0x1c] sm:$0xf]
        %v1804 = vld [vmem:[%s7 + $0x20] sm:$0xf]
        %v1805 = vld [vmem:[%s7 + $0x24] sm:$0xf]
        %v1806 = vld [vmem:[%s7 + $0x28] sm:$0xf]
        %v1807 = vld [vmem:[%s7 + $0x2c] sm:$0xf]
        %v1808 = vld [vmem:[%s7 + $0x30] sm:$0xf]
        %v1809 = vld [vmem:[%s7 + $0x34] sm:$0xf]
        %v1810 = vld [vmem:[%s7 + $0x38] sm:$0xf]
        %v1811 = vld [vmem:[%s7 + $0x3c] sm:$0xf]
        %v1812 = vld [vmem:[%s7 + $0x40] sm:$0xf]
        %v1813 = vld [vmem:[%s7 + $0x44] sm:$0xf]
        %v1814 = vld [vmem:[%s7 + $0x48] sm:$0xf]
        %v1815 = vld [vmem:[%s7 + $0x4c] sm:$0xf]
        %v1816 = vld [vmem:[%s7 + $0x50] sm:$0xf]
        %v1817 = vld [vmem:[%s7 + $0x54] sm:$0xf]
        %v1818 = vld [vmem:[%s7 + $0x58] sm:$0xf]
        %v1819 = vld [vmem:[%s7 + $0x5c] sm:$0xf]
        %v1820 = vld [vmem:[%s7 + $0x60] sm:$0xf]
        %v1821 = vld [vmem:[%s7 + $0x64] sm:$0xf]
        %v1822 = vld [vmem:[%s7 + $0x68] sm:$0xf]
        %v1823 = vld [vmem:[%s7 + $0x6c] sm:$0xf]
        %v1824 = vld [vmem:[%s7 + $0x70] sm:$0xf]
        %v1825 = vld [vmem:[%s7 + $0x74] sm:$0xf]
        %v1826 = vld [vmem:[%s7 + $0x78] sm:$0xf]
        %v1827 = vld [vmem:[%s7 + $0x7c] sm:$0xf]
        %v1828 = vld [vmem:[%s8] sm:$0x1]
        %v1830 = vlaneseq
        %v1831 = vshrl.u32 %v1830, 7
        %v1832 = vsub.s32 0, %v1831
        %v1833 = vrot.slane %v1828, %v1832
        %v1867 = vunpack.c.l.b16 %v1796
        %v1868 = vunpack.c.l.b16 %v1797
        %v1869 = vunpack.c.l.b16 %v1798
        %v1870 = vunpack.c.l.b16 %v1799
        %v1871 = vunpack.c.l.b16 %v1800
        %v1872 = vunpack.c.l.b16 %v1801
        %v1873 = vunpack.c.l.b16 %v1802
        %v1874 = vunpack.c.l.b16 %v1803
        %v1875 = vunpack.c.l.b16 %v1804
        %v1876 = vunpack.c.l.b16 %v1805
        %v1877 = vunpack.c.l.b16 %v1806
        %v1878 = vunpack.c.l.b16 %v1807
        %v1879 = vunpack.c.l.b16 %v1808
        %v1880 = vunpack.c.l.b16 %v1809
        %v1881 = vunpack.c.l.b16 %v1810
        %v1882 = vunpack.c.l.b16 %v1811
        %v1883 = vunpack.c.l.b16 %v1812
        %v1884 = vunpack.c.l.b16 %v1813
        %v1885 = vunpack.c.l.b16 %v1814
        %v1886 = vunpack.c.l.b16 %v1815
        %v1887 = vunpack.c.l.b16 %v1816
        %v1888 = vunpack.c.l.b16 %v1817
        %v1889 = vunpack.c.l.b16 %v1818
        %v1890 = vunpack.c.l.b16 %v1819
        %v1891 = vunpack.c.l.b16 %v1820
        %v1892 = vunpack.c.l.b16 %v1821
        %v1893 = vunpack.c.l.b16 %v1822
        %v1894 = vunpack.c.l.b16 %v1823
        %v1895 = vunpack.c.l.b16 %v1824
        %v1896 = vunpack.c.l.b16 %v1825
        %v1897 = vunpack.c.l.b16 %v1826
        %v1898 = vunpack.c.l.b16 %v1827
        %v1899 = vpack.c.b16 %v1868, %v1867
        %v1900 = vpack.c.b16 %v1870, %v1869
        %v1901 = vpack.c.b16 %v1872, %v1871
        %v1902 = vpack.c.b16 %v1874, %v1873
        %v1903 = vpack.c.b16 %v1876, %v1875
        %v1904 = vpack.c.b16 %v1878, %v1877
        %v1905 = vpack.c.b16 %v1880, %v1879
        %v1906 = vpack.c.b16 %v1882, %v1881
        %v1907 = vpack.c.b16 %v1884, %v1883
        %v1908 = vpack.c.b16 %v1886, %v1885
        %v1909 = vpack.c.b16 %v1888, %v1887
        %v1910 = vpack.c.b16 %v1890, %v1889
        %v1911 = vpack.c.b16 %v1892, %v1891
        %v1912 = vpack.c.b16 %v1894, %v1893
        %v1913 = vpack.c.b16 %v1896, %v1895
        %v1914 = vpack.c.b16 %v1898, %v1897
        %1931 = vmatprep.subr.bf16.mxu0 0
        %1932 = vmatpush1.bf16.msra.mxu0 %v1906
        %1933 = vmatprep.subr.bf16.mxu0 0
        %1934 = vmatpush1.bf16.msra.mxu0 %v1905
        %1935 = vmatprep.subr.bf16.mxu0 0
        %1936 = vmatpush1.bf16.msra.mxu0 %v1904
        %1937 = vmatprep.subr.bf16.mxu0 0
        %1938 = vmatpush1.bf16.msra.mxu0 %v1903
        %1939 = vmatprep.subr.bf16.mxu0 0
        %1940 = vmatpush1.bf16.msra.mxu0 %v1902
        %1941 = vmatprep.subr.bf16.mxu0 0
        %1942 = vmatpush1.bf16.msra.mxu0 %v1901
        %1943 = vmatprep.subr.bf16.mxu0 0
        %1944 = vmatpush1.bf16.msra.mxu0 %v1900
        %1945 = vmatprep.subr.bf16.mxu0 0
        %1946 = vmatpush1.bf16.msra.mxu0 %v1899
        %1947 = vmatprep.subr.bf16.mxu0 0
        %1948 = vmatpush2.bf16.msra.mxu0 %v1914
        %1949 = vmatprep.subr.bf16.mxu0 0
        %1950 = vmatpush2.bf16.msra.mxu0 %v1913
        %1951 = vmatprep.subr.bf16.mxu0 0
        %1952 = vmatpush2.bf16.msra.mxu0 %v1912
        %1953 = vmatprep.subr.bf16.mxu0 0
        %1954 = vmatpush2.bf16.msra.mxu0 %v1911
        %1955 = vmatprep.subr.bf16.mxu0 0
        %1956 = vmatpush2.bf16.msra.mxu0 %v1910
        %1957 = vmatprep.subr.bf16.mxu0 0
        %1958 = vmatpush2.bf16.msra.mxu0 %v1909
        %1959 = vmatprep.subr.bf16.mxu0 0
        %1960 = vmatpush2.bf16.msra.mxu0 %v1908
        %1961 = vmatprep.subr.bf16.mxu0 0
        %1962 = vmatpush2.bf16.msra.mxu0 %v1907
        %1963 = vmatprep.mubr.bf16.mxu0 %v1795
        %1964 = vmatmul.mubr.bf16.gmra.mxu0 %v1794
        %v1965 = vpop.f32.mrf.mxu0
        %v1966 = vadd.f32 %v1833, %v1965
        %v1967 = vpop.f32.mrf.mxu0
        %v1968 = vpop.f32.mrf.mxu0
        %v1969 = vpop.f32.mrf.mxu0
        %1970 = vdwg.mxu0
        %v1971 = vxor.u32 %v1966, 2147483648
        %v1972 = vmul.f32 %v1971, 1.442695
        %v1973 = vpow.pop %v1972
        %v1974 = vadd.f32 %v1973, 1.0
        %v1975 = vrcp.pop %v1974
        %v1976 = vmul.f32 1.0, %v1975
        %v1977 = vpack.c.bf16 %v1055, %v1055
        %v1978 = vpack.c.bf16 %v1056, %v1056
        %v1979 = vpack.c.bf16 %v1057, %v1057
        %v1980 = vpack.c.bf16 %v1058, %v1058
        %v1981 = vld [vmem:[#allocation4] sm:$0xff]
        %v1982 = vld [vmem:[#allocation4 + $0x8] sm:$0xff]
        %v1983 = vld [vmem:[#allocation4 + $0x10] sm:$0xff]
        %v1984 = vld [vmem:[#allocation4 + $0x18] sm:$0xff]
        %v1985 = vld [vmem:[#allocation4 + $0x20] sm:$0xff]
        %v1986 = vld [vmem:[#allocation4 + $0x28] sm:$0xff]
        %v1987 = vld [vmem:[#allocation4 + $0x30] sm:$0xff]
        %v1988 = vld [vmem:[#allocation4 + $0x38] sm:$0xff]
        %v1989 = vld [vmem:[#allocation4 + $0x40] sm:$0xff]
        %v1990 = vld [vmem:[#allocation4 + $0x48] sm:$0xff]
        %v1991 = vld [vmem:[#allocation4 + $0x50] sm:$0xff]
        %v1992 = vld [vmem:[#allocation4 + $0x58] sm:$0xff]
        %v1993 = vld [vmem:[#allocation4 + $0x60] sm:$0xff]
        %v1994 = vld [vmem:[#allocation4 + $0x68] sm:$0xff]
        %v1995 = vld [vmem:[#allocation4 + $0x70] sm:$0xff]
        %v1996 = vld [vmem:[#allocation4 + $0x78] sm:$0xff]
        %v1997 = vld [vmem:[#allocation4 + $0x80] sm:$0xff]
        %v1998 = vld [vmem:[#allocation4 + $0x88] sm:$0xff]
        %v1999 = vld [vmem:[#allocation4 + $0x90] sm:$0xff]
        %v2000 = vld [vmem:[#allocation4 + $0x98] sm:$0xff]
        %v2001 = vld [vmem:[#allocation4 + $0xa0] sm:$0xff]
        %v2002 = vld [vmem:[#allocation4 + $0xa8] sm:$0xff]
        %v2003 = vld [vmem:[#allocation4 + $0xb0] sm:$0xff]
        %v2004 = vld [vmem:[#allocation4 + $0xb8] sm:$0xff]
        %v2005 = vld [vmem:[#allocation4 + $0xc0] sm:$0xff]
        %v2006 = vld [vmem:[#allocation4 + $0xc8] sm:$0xff]
        %v2007 = vld [vmem:[#allocation4 + $0xd0] sm:$0xff]
        %v2008 = vld [vmem:[#allocation4 + $0xd8] sm:$0xff]
        %v2009 = vld [vmem:[#allocation4 + $0xe0] sm:$0xff]
        %v2010 = vld [vmem:[#allocation4 + $0xe8] sm:$0xff]
        %v2011 = vld [vmem:[#allocation4 + $0xf0] sm:$0xff]
        %v2012 = vld [vmem:[#allocation4 + $0xf8] sm:$0xff]
        %v2013 = vld [vmem:[#allocation4 + $0x100] sm:$0xff]
        %v2014 = vld [vmem:[#allocation4 + $0x108] sm:$0xff]
        %v2015 = vld [vmem:[#allocation4 + $0x110] sm:$0xff]
        %v2016 = vld [vmem:[#allocation4 + $0x118] sm:$0xff]
        %v2017 = vld [vmem:[#allocation4 + $0x120] sm:$0xff]
        %v2018 = vld [vmem:[#allocation4 + $0x128] sm:$0xff]
        %v2019 = vld [vmem:[#allocation4 + $0x130] sm:$0xff]
        %v2020 = vld [vmem:[#allocation4 + $0x138] sm:$0xff]
        %v2021 = vld [vmem:[#allocation4 + $0x140] sm:$0xff]
        %v2022 = vld [vmem:[#allocation4 + $0x148] sm:$0xff]
        %v2023 = vld [vmem:[#allocation4 + $0x150] sm:$0xff]
        %v2024 = vld [vmem:[#allocation4 + $0x158] sm:$0xff]
        %v2025 = vld [vmem:[#allocation4 + $0x160] sm:$0xff]
        %v2026 = vld [vmem:[#allocation4 + $0x168] sm:$0xff]
        %v2027 = vld [vmem:[#allocation4 + $0x170] sm:$0xff]
        %v2028 = vld [vmem:[#allocation4 + $0x178] sm:$0xff]
        %v2029 = vld [vmem:[#allocation4 + $0x180] sm:$0xff]
        %v2030 = vld [vmem:[#allocation4 + $0x188] sm:$0xff]
        %v2031 = vld [vmem:[#allocation4 + $0x190] sm:$0xff]
        %v2032 = vld [vmem:[#allocation4 + $0x198] sm:$0xff]
        %v2033 = vld [vmem:[#allocation4 + $0x1a0] sm:$0xff]
        %v2034 = vld [vmem:[#allocation4 + $0x1a8] sm:$0xff]
        %v2035 = vld [vmem:[#allocation4 + $0x1b0] sm:$0xff]
        %v2036 = vld [vmem:[#allocation4 + $0x1b8] sm:$0xff]
        %v2037 = vld [vmem:[#allocation4 + $0x1c0] sm:$0xff]
        %v2038 = vld [vmem:[#allocation4 + $0x1c8] sm:$0xff]
        %v2039 = vld [vmem:[#allocation4 + $0x1d0] sm:$0xff]
        %v2040 = vld [vmem:[#allocation4 + $0x1d8] sm:$0xff]
        %v2041 = vld [vmem:[#allocation4 + $0x1e0] sm:$0xff]
        %v2042 = vld [vmem:[#allocation4 + $0x1e8] sm:$0xff]
        %v2043 = vld [vmem:[#allocation4 + $0x1f0] sm:$0xff]
        %v2044 = vld [vmem:[#allocation4 + $0x1f8] sm:$0xff]
        %v2045 = vld [vmem:[%s10] sm:$0x3]
        %v2047 = vlaneseq
        %v2048 = vshrl.u32 %v2047, 7
        %v2049 = vsub.s32 0, %v2048
        %v2050 = vrot.slane %v2045, %v2049
        %v2051 = vlaneseq
        %v2052 = vshrl.u32 %v2051, 7
        %v2053 = vsub.s32 1, %v2052
        %v2054 = vrot.slane %v2045, %v2053
        %v2121 = vunpack.c.l.b16 %v1981
        %v2122 = vunpack.c.h.b16 %v1981
        %v2123 = vunpack.c.l.b16 %v1982
        %v2124 = vunpack.c.h.b16 %v1982
        %v2125 = vunpack.c.l.b16 %v1983
        %v2126 = vunpack.c.h.b16 %v1983
        %v2127 = vunpack.c.l.b16 %v1984
        %v2128 = vunpack.c.h.b16 %v1984
        %v2129 = vunpack.c.l.b16 %v1985
        %v2130 = vunpack.c.h.b16 %v1985
        %v2131 = vunpack.c.l.b16 %v1986
        %v2132 = vunpack.c.h.b16 %v1986
        %v2133 = vunpack.c.l.b16 %v1987
        %v2134 = vunpack.c.h.b16 %v1987
        %v2135 = vunpack.c.l.b16 %v1988
        %v2136 = vunpack.c.h.b16 %v1988
        %v2137 = vunpack.c.l.b16 %v1989
        %v2138 = vunpack.c.h.b16 %v1989
        %v2139 = vunpack.c.l.b16 %v1990
        %v2140 = vunpack.c.h.b16 %v1990
        %v2141 = vunpack.c.l.b16 %v1991
        %v2142 = vunpack.c.h.b16 %v1991
        %v2143 = vunpack.c.l.b16 %v1992
        %v2144 = vunpack.c.h.b16 %v1992
        %v2145 = vunpack.c.l.b16 %v1993
        %v2146 = vunpack.c.h.b16 %v1993
        %v2147 = vunpack.c.l.b16 %v1994
        %v2148 = vunpack.c.h.b16 %v1994
        %v2149 = vunpack.c.l.b16 %v1995
        %v2150 = vunpack.c.h.b16 %v1995
        %v2151 = vunpack.c.l.b16 %v1996
        %v2152 = vunpack.c.h.b16 %v1996
        %v2153 = vunpack.c.l.b16 %v1997
        %v2154 = vunpack.c.h.b16 %v1997
        %v2155 = vunpack.c.l.b16 %v1998
        %v2156 = vunpack.c.h.b16 %v1998
        %v2157 = vunpack.c.l.b16 %v1999
        %v2158 = vunpack.c.h.b16 %v1999
        %v2159 = vunpack.c.l.b16 %v2000
        %v2160 = vunpack.c.h.b16 %v2000
        %v2161 = vunpack.c.l.b16 %v2001
        %v2162 = vunpack.c.h.b16 %v2001
        %v2163 = vunpack.c.l.b16 %v2002
        %v2164 = vunpack.c.h.b16 %v2002
        %v2165 = vunpack.c.l.b16 %v2003
        %v2166 = vunpack.c.h.b16 %v2003
        %v2167 = vunpack.c.l.b16 %v2004
        %v2168 = vunpack.c.h.b16 %v2004
        %v2169 = vunpack.c.l.b16 %v2005
        %v2170 = vunpack.c.h.b16 %v2005
        %v2171 = vunpack.c.l.b16 %v2006
        %v2172 = vunpack.c.h.b16 %v2006
        %v2173 = vunpack.c.l.b16 %v2007
        %v2174 = vunpack.c.h.b16 %v2007
        %v2175 = vunpack.c.l.b16 %v2008
        %v2176 = vunpack.c.h.b16 %v2008
        %v2177 = vunpack.c.l.b16 %v2009
        %v2178 = vunpack.c.h.b16 %v2009
        %v2179 = vunpack.c.l.b16 %v2010
        %v2180 = vunpack.c.h.b16 %v2010
        %v2181 = vunpack.c.l.b16 %v2011
        %v2182 = vunpack.c.h.b16 %v2011
        %v2183 = vunpack.c.l.b16 %v2012
        %v2184 = vunpack.c.h.b16 %v2012
        %v2185 = vunpack.c.l.b16 %v2013
        %v2186 = vunpack.c.h.b16 %v2013
        %v2187 = vunpack.c.l.b16 %v2014
        %v2188 = vunpack.c.h.b16 %v2014
        %v2189 = vunpack.c.l.b16 %v2015
        %v2190 = vunpack.c.h.b16 %v2015
        %v2191 = vunpack.c.l.b16 %v2016
        %v2192 = vunpack.c.h.b16 %v2016
        %v2193 = vunpack.c.l.b16 %v2017
        %v2194 = vunpack.c.h.b16 %v2017
        %v2195 = vunpack.c.l.b16 %v2018
        %v2196 = vunpack.c.h.b16 %v2018
        %v2197 = vunpack.c.l.b16 %v2019
        %v2198 = vunpack.c.h.b16 %v2019
        %v2199 = vunpack.c.l.b16 %v2020
        %v2200 = vunpack.c.h.b16 %v2020
        %v2201 = vunpack.c.l.b16 %v2021
        %v2202 = vunpack.c.h.b16 %v2021
        %v2203 = vunpack.c.l.b16 %v2022
        %v2204 = vunpack.c.h.b16 %v2022
        %v2205 = vunpack.c.l.b16 %v2023
        %v2206 = vunpack.c.h.b16 %v2023
        %v2207 = vunpack.c.l.b16 %v2024
        %v2208 = vunpack.c.h.b16 %v2024
        %v2209 = vunpack.c.l.b16 %v2025
        %v2210 = vunpack.c.h.b16 %v2025
        %v2211 = vunpack.c.l.b16 %v2026
        %v2212 = vunpack.c.h.b16 %v2026
        %v2213 = vunpack.c.l.b16 %v2027
        %v2214 = vunpack.c.h.b16 %v2027
        %v2215 = vunpack.c.l.b16 %v2028
        %v2216 = vunpack.c.h.b16 %v2028
        %v2217 = vunpack.c.l.b16 %v2029
        %v2218 = vunpack.c.h.b16 %v2029
        %v2219 = vunpack.c.l.b16 %v2030
        %v2220 = vunpack.c.h.b16 %v2030
        %v2221 = vunpack.c.l.b16 %v2031
        %v2222 = vunpack.c.h.b16 %v2031
        %v2223 = vunpack.c.l.b16 %v2032
        %v2224 = vunpack.c.h.b16 %v2032
        %v2225 = vunpack.c.l.b16 %v2033
        %v2226 = vunpack.c.h.b16 %v2033
        %v2227 = vunpack.c.l.b16 %v2034
        %v2228 = vunpack.c.h.b16 %v2034
        %v2229 = vunpack.c.l.b16 %v2035
        %v2230 = vunpack.c.h.b16 %v2035
        %v2231 = vunpack.c.l.b16 %v2036
        %v2232 = vunpack.c.h.b16 %v2036
        %v2233 = vunpack.c.l.b16 %v2037
        %v2234 = vunpack.c.h.b16 %v2037
        %v2235 = vunpack.c.l.b16 %v2038
        %v2236 = vunpack.c.h.b16 %v2038
        %v2237 = vunpack.c.l.b16 %v2039
        %v2238 = vunpack.c.h.b16 %v2039
        %v2239 = vunpack.c.l.b16 %v2040
        %v2240 = vunpack.c.h.b16 %v2040
        %v2241 = vunpack.c.l.b16 %v2041
        %v2242 = vunpack.c.h.b16 %v2041
        %v2243 = vunpack.c.l.b16 %v2042
        %v2244 = vunpack.c.h.b16 %v2042
        %v2245 = vunpack.c.l.b16 %v2043
        %v2246 = vunpack.c.h.b16 %v2043
        %v2247 = vunpack.c.l.b16 %v2044
        %v2248 = vunpack.c.h.b16 %v2044
        %v2249 = vpack.c.b16 %v2123, %v2121
        %v2250 = vpack.c.b16 %v2124, %v2122
        %v2251 = vpack.c.b16 %v2127, %v2125
        %v2252 = vpack.c.b16 %v2128, %v2126
        %v2253 = vpack.c.b16 %v2131, %v2129
        %v2254 = vpack.c.b16 %v2132, %v2130
        %v2255 = vpack.c.b16 %v2135, %v2133
        %v2256 = vpack.c.b16 %v2136, %v2134
        %v2257 = vpack.c.b16 %v2139, %v2137
        %v2258 = vpack.c.b16 %v2140, %v2138
        %v2259 = vpack.c.b16 %v2143, %v2141
        %v2260 = vpack.c.b16 %v2144, %v2142
        %v2261 = vpack.c.b16 %v2147, %v2145
        %v2262 = vpack.c.b16 %v2148, %v2146
        %v2263 = vpack.c.b16 %v2151, %v2149
        %v2264 = vpack.c.b16 %v2152, %v2150
        %v2265 = vpack.c.b16 %v2155, %v2153
        %v2266 = vpack.c.b16 %v2156, %v2154
        %v2267 = vpack.c.b16 %v2159, %v2157
        %v2268 = vpack.c.b16 %v2160, %v2158
        %v2269 = vpack.c.b16 %v2163, %v2161
        %v2270 = vpack.c.b16 %v2164, %v2162
        %v2271 = vpack.c.b16 %v2167, %v2165
        %v2272 = vpack.c.b16 %v2168, %v2166
        %v2273 = vpack.c.b16 %v2171, %v2169
        %v2274 = vpack.c.b16 %v2172, %v2170
        %v2275 = vpack.c.b16 %v2175, %v2173
        %v2276 = vpack.c.b16 %v2176, %v2174
        %v2277 = vpack.c.b16 %v2179, %v2177
        %v2278 = vpack.c.b16 %v2180, %v2178
        %v2279 = vpack.c.b16 %v2183, %v2181
        %v2280 = vpack.c.b16 %v2184, %v2182
        %v2281 = vpack.c.b16 %v2187, %v2185
        %v2282 = vpack.c.b16 %v2188, %v2186
        %v2283 = vpack.c.b16 %v2191, %v2189
        %v2284 = vpack.c.b16 %v2192, %v2190
        %v2285 = vpack.c.b16 %v2195, %v2193
        %v2286 = vpack.c.b16 %v2196, %v2194
        %v2287 = vpack.c.b16 %v2199, %v2197
        %v2288 = vpack.c.b16 %v2200, %v2198
        %v2289 = vpack.c.b16 %v2203, %v2201
        %v2290 = vpack.c.b16 %v2204, %v2202
        %v2291 = vpack.c.b16 %v2207, %v2205
        %v2292 = vpack.c.b16 %v2208, %v2206
        %v2293 = vpack.c.b16 %v2211, %v2209
        %v2294 = vpack.c.b16 %v2212, %v2210
        %v2295 = vpack.c.b16 %v2215, %v2213
        %v2296 = vpack.c.b16 %v2216, %v2214
        %v2297 = vpack.c.b16 %v2219, %v2217
        %v2298 = vpack.c.b16 %v2220, %v2218
        %v2299 = vpack.c.b16 %v2223, %v2221
        %v2300 = vpack.c.b16 %v2224, %v2222
        %v2301 = vpack.c.b16 %v2227, %v2225
        %v2302 = vpack.c.b16 %v2228, %v2226
        %v2303 = vpack.c.b16 %v2231, %v2229
        %v2304 = vpack.c.b16 %v2232, %v2230
        %v2305 = vpack.c.b16 %v2235, %v2233
        %v2306 = vpack.c.b16 %v2236, %v2234
        %v2307 = vpack.c.b16 %v2239, %v2237
        %v2308 = vpack.c.b16 %v2240, %v2238
        %v2309 = vpack.c.b16 %v2243, %v2241
        %v2310 = vpack.c.b16 %v2244, %v2242
        %v2311 = vpack.c.b16 %v2247, %v2245
        %v2312 = vpack.c.b16 %v2248, %v2246
        %2377 = vmatprep.subr.bf16.mxu0 %v2264
        %2378 = vmatpush1.bf16.msra.mxu0 %v2263
        %2379 = vmatprep.subr.bf16.mxu0 %v2262
        %2380 = vmatpush1.bf16.msra.mxu0 %v2261
        %2381 = vmatprep.subr.bf16.mxu0 %v2260
        %2382 = vmatpush1.bf16.msra.mxu0 %v2259
        %2383 = vmatprep.subr.bf16.mxu0 %v2258
        %2384 = vmatpush1.bf16.msra.mxu0 %v2257
        %2385 = vmatprep.subr.bf16.mxu0 %v2256
        %2386 = vmatpush1.bf16.msra.mxu0 %v2255
        %2387 = vmatprep.subr.bf16.mxu0 %v2254
        %2388 = vmatpush1.bf16.msra.mxu0 %v2253
        %2389 = vmatprep.subr.bf16.mxu0 %v2252
        %2390 = vmatpush1.bf16.msra.mxu0 %v2251
        %2391 = vmatprep.subr.bf16.mxu0 %v2250
        %2392 = vmatpush1.bf16.msra.mxu0 %v2249
        %2393 = vmatprep.subr.bf16.mxu0 %v2280
        %2394 = vmatpush2.bf16.msra.mxu0 %v2279
        %2395 = vmatprep.subr.bf16.mxu0 %v2278
        %2396 = vmatpush2.bf16.msra.mxu0 %v2277
        %2397 = vmatprep.subr.bf16.mxu0 %v2276
        %2398 = vmatpush2.bf16.msra.mxu0 %v2275
        %2399 = vmatprep.subr.bf16.mxu0 %v2274
        %2400 = vmatpush2.bf16.msra.mxu0 %v2273
        %2401 = vmatprep.subr.bf16.mxu0 %v2272
        %2402 = vmatpush2.bf16.msra.mxu0 %v2271
        %2403 = vmatprep.subr.bf16.mxu0 %v2270
        %2404 = vmatpush2.bf16.msra.mxu0 %v2269
        %2405 = vmatprep.subr.bf16.mxu0 %v2268
        %2406 = vmatpush2.bf16.msra.mxu0 %v2267
        %2407 = vmatprep.subr.bf16.mxu0 %v2266
        %2408 = vmatpush2.bf16.msra.mxu0 %v2265
        %2409 = vmatprep.mubr.bf16.mxu0 %v1978
        %2410 = vmatmul.mubr.bf16.gmra.mxu0 %v1977
        %v2411 = vpop.f32.mrf.mxu0
        %v2412 = vadd.f32 %v2050, %v2411
        %v2413 = vpop.f32.mrf.mxu0
        %v2414 = vadd.f32 %v2054, %v2413
        %v2415 = vpop.f32.mrf.mxu0
        %v2416 = vpop.f32.mrf.mxu0
        %2417 = vdwg.mxu0
        %2418 = vmatprep.subr.bf16.mxu0 %v2296
        %2419 = vmatpush1.bf16.msra.mxu0 %v2295
        %2420 = vmatprep.subr.bf16.mxu0 %v2294
        %2421 = vmatpush1.bf16.msra.mxu0 %v2293
        %2422 = vmatprep.subr.bf16.mxu0 %v2292
        %2423 = vmatpush1.bf16.msra.mxu0 %v2291
        %2424 = vmatprep.subr.bf16.mxu0 %v2290
        %2425 = vmatpush1.bf16.msra.mxu0 %v2289
        %2426 = vmatprep.subr.bf16.mxu0 %v2288
        %2427 = vmatpush1.bf16.msra.mxu0 %v2287
        %2428 = vmatprep.subr.bf16.mxu0 %v2286
        %2429 = vmatpush1.bf16.msra.mxu0 %v2285
        %2430 = vmatprep.subr.bf16.mxu0 %v2284
        %2431 = vmatpush1.bf16.msra.mxu0 %v2283
        %2432 = vmatprep.subr.bf16.mxu0 %v2282
        %2433 = vmatpush1.bf16.msra.mxu0 %v2281
        %2434 = vmatprep.subr.bf16.mxu0 %v2312
        %2435 = vmatpush2.bf16.msra.mxu0 %v2311
        %2436 = vmatprep.subr.bf16.mxu0 %v2310
        %2437 = vmatpush2.bf16.msra.mxu0 %v2309
        %2438 = vmatprep.subr.bf16.mxu0 %v2308
        %2439 = vmatpush2.bf16.msra.mxu0 %v2307
        %2440 = vmatprep.subr.bf16.mxu0 %v2306
        %2441 = vmatpush2.bf16.msra.mxu0 %v2305
        %2442 = vmatprep.subr.bf16.mxu0 %v2304
        %2443 = vmatpush2.bf16.msra.mxu0 %v2303
        %2444 = vmatprep.subr.bf16.mxu0 %v2302
        %2445 = vmatpush2.bf16.msra.mxu0 %v2301
        %2446 = vmatprep.subr.bf16.mxu0 %v2300
        %2447 = vmatpush2.bf16.msra.mxu0 %v2299
        %2448 = vmatprep.subr.bf16.mxu0 %v2298
        %2449 = vmatpush2.bf16.msra.mxu0 %v2297
        %2450 = vmatprep.mubr.bf16.mxu0 %v1980
        %2451 = vmatmul.mubr.bf16.gmra.mxu0 %v1979
        %v2452 = vpop.f32.mrf.mxu0
        %v2453 = vadd.f32 %v2412, %v2452
        %v2454 = vpop.f32.mrf.mxu0
        %v2455 = vadd.f32 %v2414, %v2454
        %v2456 = vpop.f32.mrf.mxu0
        %v2457 = vpop.f32.mrf.mxu0
        %2458 = vdwg.mxu0
        %v2459 = vmax.f32 %v2453, 0.0
        %v2460 = vmax.f32 %v2455, 0.0
        %v2461 = vpack.c.bf16 %v2459, %v2459
        %v2462 = vpack.c.bf16 %v2460, %v2460
        %v2463 = vld [vmem:[#allocation6] sm:$0xff]
        %v2464 = vld [vmem:[#allocation6 + $0x8] sm:$0xff]
        %v2465 = vld [vmem:[#allocation6 + $0x10] sm:$0xff]
        %v2466 = vld [vmem:[#allocation6 + $0x18] sm:$0xff]
        %v2467 = vld [vmem:[#allocation6 + $0x20] sm:$0xff]
        %v2468 = vld [vmem:[#allocation6 + $0x28] sm:$0xff]
        %v2469 = vld [vmem:[#allocation6 + $0x30] sm:$0xff]
        %v2470 = vld [vmem:[#allocation6 + $0x38] sm:$0xff]
        %v2471 = vld [vmem:[#allocation6 + $0x40] sm:$0xff]
        %v2472 = vld [vmem:[#allocation6 + $0x48] sm:$0xff]
        %v2473 = vld [vmem:[#allocation6 + $0x50] sm:$0xff]
        %v2474 = vld [vmem:[#allocation6 + $0x58] sm:$0xff]
        %v2475 = vld [vmem:[#allocation6 + $0x60] sm:$0xff]
        %v2476 = vld [vmem:[#allocation6 + $0x68] sm:$0xff]
        %v2477 = vld [vmem:[#allocation6 + $0x70] sm:$0xff]
        %v2478 = vld [vmem:[#allocation6 + $0x78] sm:$0xff]
        %v2479 = vld [vmem:[#allocation6 + $0x80] sm:$0xff]
        %v2480 = vld [vmem:[#allocation6 + $0x88] sm:$0xff]
        %v2481 = vld [vmem:[#allocation6 + $0x90] sm:$0xff]
        %v2482 = vld [vmem:[#allocation6 + $0x98] sm:$0xff]
        %v2483 = vld [vmem:[#allocation6 + $0xa0] sm:$0xff]
        %v2484 = vld [vmem:[#allocation6 + $0xa8] sm:$0xff]
        %v2485 = vld [vmem:[#allocation6 + $0xb0] sm:$0xff]
        %v2486 = vld [vmem:[#allocation6 + $0xb8] sm:$0xff]
        %v2487 = vld [vmem:[#allocation6 + $0xc0] sm:$0xff]
        %v2488 = vld [vmem:[#allocation6 + $0xc8] sm:$0xff]
        %v2489 = vld [vmem:[#allocation6 + $0xd0] sm:$0xff]
        %v2490 = vld [vmem:[#allocation6 + $0xd8] sm:$0xff]
        %v2491 = vld [vmem:[#allocation6 + $0xe0] sm:$0xff]
        %v2492 = vld [vmem:[#allocation6 + $0xe8] sm:$0xff]
        %v2493 = vld [vmem:[#allocation6 + $0xf0] sm:$0xff]
        %v2494 = vld [vmem:[#allocation6 + $0xf8] sm:$0xff]
        %v2495 = vld [vmem:[#allocation6 + $0x100] sm:$0xff]
        %v2496 = vld [vmem:[#allocation6 + $0x108] sm:$0xff]
        %v2497 = vld [vmem:[#allocation6 + $0x110] sm:$0xff]
        %v2498 = vld [vmem:[#allocation6 + $0x118] sm:$0xff]
        %v2499 = vld [vmem:[#allocation6 + $0x120] sm:$0xff]
        %v2500 = vld [vmem:[#allocation6 + $0x128] sm:$0xff]
        %v2501 = vld [vmem:[#allocation6 + $0x130] sm:$0xff]
        %v2502 = vld [vmem:[#allocation6 + $0x138] sm:$0xff]
        %v2503 = vld [vmem:[#allocation6 + $0x140] sm:$0xff]
        %v2504 = vld [vmem:[#allocation6 + $0x148] sm:$0xff]
        %v2505 = vld [vmem:[#allocation6 + $0x150] sm:$0xff]
        %v2506 = vld [vmem:[#allocation6 + $0x158] sm:$0xff]
        %v2507 = vld [vmem:[#allocation6 + $0x160] sm:$0xff]
        %v2508 = vld [vmem:[#allocation6 + $0x168] sm:$0xff]
        %v2509 = vld [vmem:[#allocation6 + $0x170] sm:$0xff]
        %v2510 = vld [vmem:[#allocation6 + $0x178] sm:$0xff]
        %v2511 = vld [vmem:[#allocation6 + $0x180] sm:$0xff]
        %v2512 = vld [vmem:[#allocation6 + $0x188] sm:$0xff]
        %v2513 = vld [vmem:[#allocation6 + $0x190] sm:$0xff]
        %v2514 = vld [vmem:[#allocation6 + $0x198] sm:$0xff]
        %v2515 = vld [vmem:[#allocation6 + $0x1a0] sm:$0xff]
        %v2516 = vld [vmem:[#allocation6 + $0x1a8] sm:$0xff]
        %v2517 = vld [vmem:[#allocation6 + $0x1b0] sm:$0xff]
        %v2518 = vld [vmem:[#allocation6 + $0x1b8] sm:$0xff]
        %v2519 = vld [vmem:[#allocation6 + $0x1c0] sm:$0xff]
        %v2520 = vld [vmem:[#allocation6 + $0x1c8] sm:$0xff]
        %v2521 = vld [vmem:[#allocation6 + $0x1d0] sm:$0xff]
        %v2522 = vld [vmem:[#allocation6 + $0x1d8] sm:$0xff]
        %v2523 = vld [vmem:[#allocation6 + $0x1e0] sm:$0xff]
        %v2524 = vld [vmem:[#allocation6 + $0x1e8] sm:$0xff]
        %v2525 = vld [vmem:[#allocation6 + $0x1f0] sm:$0xff]
        %v2526 = vld [vmem:[#allocation6 + $0x1f8] sm:$0xff]
        %v2527 = vld [vmem:[#allocation6 + $0x200] sm:$0xff]
        %v2528 = vld [vmem:[#allocation6 + $0x208] sm:$0xff]
        %v2529 = vld [vmem:[#allocation6 + $0x210] sm:$0xff]
        %v2530 = vld [vmem:[#allocation6 + $0x218] sm:$0xff]
        %v2531 = vld [vmem:[#allocation6 + $0x220] sm:$0xff]
        %v2532 = vld [vmem:[#allocation6 + $0x228] sm:$0xff]
        %v2533 = vld [vmem:[#allocation6 + $0x230] sm:$0xff]
        %v2534 = vld [vmem:[#allocation6 + $0x238] sm:$0xff]
        %v2535 = vld [vmem:[#allocation6 + $0x240] sm:$0xff]
        %v2536 = vld [vmem:[#allocation6 + $0x248] sm:$0xff]
        %v2537 = vld [vmem:[#allocation6 + $0x250] sm:$0xff]
        %v2538 = vld [vmem:[#allocation6 + $0x258] sm:$0xff]
        %v2539 = vld [vmem:[#allocation6 + $0x260] sm:$0xff]
        %v2540 = vld [vmem:[#allocation6 + $0x268] sm:$0xff]
        %v2541 = vld [vmem:[#allocation6 + $0x270] sm:$0xff]
        %v2542 = vld [vmem:[#allocation6 + $0x278] sm:$0xff]
        %v2543 = vld [vmem:[#allocation6 + $0x280] sm:$0xff]
        %v2544 = vld [vmem:[#allocation6 + $0x288] sm:$0xff]
        %v2545 = vld [vmem:[#allocation6 + $0x290] sm:$0xff]
        %v2546 = vld [vmem:[#allocation6 + $0x298] sm:$0xff]
        %v2547 = vld [vmem:[#allocation6 + $0x2a0] sm:$0xff]
        %v2548 = vld [vmem:[#allocation6 + $0x2a8] sm:$0xff]
        %v2549 = vld [vmem:[#allocation6 + $0x2b0] sm:$0xff]
        %v2550 = vld [vmem:[#allocation6 + $0x2b8] sm:$0xff]
        %v2551 = vld [vmem:[#allocation6 + $0x2c0] sm:$0xff]
        %v2552 = vld [vmem:[#allocation6 + $0x2c8] sm:$0xff]
        %v2553 = vld [vmem:[#allocation6 + $0x2d0] sm:$0xff]
        %v2554 = vld [vmem:[#allocation6 + $0x2d8] sm:$0xff]
        %v2555 = vld [vmem:[#allocation6 + $0x2e0] sm:$0xff]
        %v2556 = vld [vmem:[#allocation6 + $0x2e8] sm:$0xff]
        %v2557 = vld [vmem:[#allocation6 + $0x2f0] sm:$0xff]
        %v2558 = vld [vmem:[#allocation6 + $0x2f8] sm:$0xff]
        %v2559 = vld [vmem:[#allocation6 + $0x300] sm:$0xff]
        %v2560 = vld [vmem:[#allocation6 + $0x308] sm:$0xff]
        %v2561 = vld [vmem:[#allocation6 + $0x310] sm:$0xff]
        %v2562 = vld [vmem:[#allocation6 + $0x318] sm:$0xff]
        %v2563 = vld [vmem:[#allocation6 + $0x320] sm:$0xff]
        %v2564 = vld [vmem:[#allocation6 + $0x328] sm:$0xff]
        %v2565 = vld [vmem:[#allocation6 + $0x330] sm:$0xff]
        %v2566 = vld [vmem:[#allocation6 + $0x338] sm:$0xff]
        %v2567 = vld [vmem:[#allocation6 + $0x340] sm:$0xff]
        %v2568 = vld [vmem:[#allocation6 + $0x348] sm:$0xff]
        %v2569 = vld [vmem:[#allocation6 + $0x350] sm:$0xff]
        %v2570 = vld [vmem:[#allocation6 + $0x358] sm:$0xff]
        %v2571 = vld [vmem:[#allocation6 + $0x360] sm:$0xff]
        %v2572 = vld [vmem:[#allocation6 + $0x368] sm:$0xff]
        %v2573 = vld [vmem:[#allocation6 + $0x370] sm:$0xff]
        %v2574 = vld [vmem:[#allocation6 + $0x378] sm:$0xff]
        %v2575 = vld [vmem:[#allocation6 + $0x380] sm:$0xff]
        %v2576 = vld [vmem:[#allocation6 + $0x388] sm:$0xff]
        %v2577 = vld [vmem:[#allocation6 + $0x390] sm:$0xff]
        %v2578 = vld [vmem:[#allocation6 + $0x398] sm:$0xff]
        %v2579 = vld [vmem:[#allocation6 + $0x3a0] sm:$0xff]
        %v2580 = vld [vmem:[#allocation6 + $0x3a8] sm:$0xff]
        %v2581 = vld [vmem:[#allocation6 + $0x3b0] sm:$0xff]
        %v2582 = vld [vmem:[#allocation6 + $0x3b8] sm:$0xff]
        %v2583 = vld [vmem:[#allocation6 + $0x3c0] sm:$0xff]
        %v2584 = vld [vmem:[#allocation6 + $0x3c8] sm:$0xff]
        %v2585 = vld [vmem:[#allocation6 + $0x3d0] sm:$0xff]
        %v2586 = vld [vmem:[#allocation6 + $0x3d8] sm:$0xff]
        %v2587 = vld [vmem:[#allocation6 + $0x3e0] sm:$0xff]
        %v2588 = vld [vmem:[#allocation6 + $0x3e8] sm:$0xff]
        %v2589 = vld [vmem:[#allocation6 + $0x3f0] sm:$0xff]
        %v2590 = vld [vmem:[#allocation6 + $0x3f8] sm:$0xff]
        %v2591 = vld [vmem:[%s12] sm:$0xff]
        %v2593 = vlaneseq
        %v2594 = vshrl.u32 %v2593, 7
        %v2595 = vsub.s32 0, %v2594
        %v2596 = vrot.slane %v2591, %v2595
        %v2597 = vlaneseq
        %v2598 = vshrl.u32 %v2597, 7
        %v2599 = vsub.s32 1, %v2598
        %v2600 = vrot.slane %v2591, %v2599
        %v2601 = vlaneseq
        %v2602 = vshrl.u32 %v2601, 7
        %v2603 = vsub.s32 2, %v2602
        %v2604 = vrot.slane %v2591, %v2603
        %v2605 = vlaneseq
        %v2606 = vshrl.u32 %v2605, 7
        %v2607 = vsub.s32 3, %v2606
        %v2608 = vrot.slane %v2591, %v2607
        %v2609 = vlaneseq
        %v2610 = vshrl.u32 %v2609, 7
        %v2611 = vsub.s32 4, %v2610
        %v2612 = vrot.slane %v2591, %v2611
        %v2613 = vlaneseq
        %v2614 = vshrl.u32 %v2613, 7
        %v2615 = vsub.s32 5, %v2614
        %v2616 = vrot.slane %v2591, %v2615
        %v2617 = vlaneseq
        %v2618 = vshrl.u32 %v2617, 7
        %v2619 = vsub.s32 6, %v2618
        %v2620 = vrot.slane %v2591, %v2619
        %v2621 = vlaneseq
        %v2622 = vshrl.u32 %v2621, 7
        %v2623 = vsub.s32 7, %v2622
        %v2624 = vrot.slane %v2591, %v2623
        %v2761 = vunpack.c.l.b16 %v2463
        %v2762 = vunpack.c.h.b16 %v2463
        %v2763 = vunpack.c.l.b16 %v2464
        %v2764 = vunpack.c.h.b16 %v2464
        %v2765 = vunpack.c.l.b16 %v2465
        %v2766 = vunpack.c.h.b16 %v2465
        %v2767 = vunpack.c.l.b16 %v2466
        %v2768 = vunpack.c.h.b16 %v2466
        %v2769 = vunpack.c.l.b16 %v2467
        %v2770 = vunpack.c.h.b16 %v2467
        %v2771 = vunpack.c.l.b16 %v2468
        %v2772 = vunpack.c.h.b16 %v2468
        %v2773 = vunpack.c.l.b16 %v2469
        %v2774 = vunpack.c.h.b16 %v2469
        %v2775 = vunpack.c.l.b16 %v2470
        %v2776 = vunpack.c.h.b16 %v2470
        %v2777 = vunpack.c.l.b16 %v2471
        %v2778 = vunpack.c.h.b16 %v2471
        %v2779 = vunpack.c.l.b16 %v2472
        %v2780 = vunpack.c.h.b16 %v2472
        %v2781 = vunpack.c.l.b16 %v2473
        %v2782 = vunpack.c.h.b16 %v2473
        %v2783 = vunpack.c.l.b16 %v2474
        %v2784 = vunpack.c.h.b16 %v2474
        %v2785 = vunpack.c.l.b16 %v2475
        %v2786 = vunpack.c.h.b16 %v2475
        %v2787 = vunpack.c.l.b16 %v2476
        %v2788 = vunpack.c.h.b16 %v2476
        %v2789 = vunpack.c.l.b16 %v2477
        %v2790 = vunpack.c.h.b16 %v2477
        %v2791 = vunpack.c.l.b16 %v2478
        %v2792 = vunpack.c.h.b16 %v2478
        %v2793 = vunpack.c.l.b16 %v2479
        %v2794 = vunpack.c.h.b16 %v2479
        %v2795 = vunpack.c.l.b16 %v2480
        %v2796 = vunpack.c.h.b16 %v2480
        %v2797 = vunpack.c.l.b16 %v2481
        %v2798 = vunpack.c.h.b16 %v2481
        %v2799 = vunpack.c.l.b16 %v2482
        %v2800 = vunpack.c.h.b16 %v2482
        %v2801 = vunpack.c.l.b16 %v2483
        %v2802 = vunpack.c.h.b16 %v2483
        %v2803 = vunpack.c.l.b16 %v2484
        %v2804 = vunpack.c.h.b16 %v2484
        %v2805 = vunpack.c.l.b16 %v2485
        %v2806 = vunpack.c.h.b16 %v2485
        %v2807 = vunpack.c.l.b16 %v2486
        %v2808 = vunpack.c.h.b16 %v2486
        %v2809 = vunpack.c.l.b16 %v2487
        %v2810 = vunpack.c.h.b16 %v2487
        %v2811 = vunpack.c.l.b16 %v2488
        %v2812 = vunpack.c.h.b16 %v2488
        %v2813 = vunpack.c.l.b16 %v2489
        %v2814 = vunpack.c.h.b16 %v2489
        %v2815 = vunpack.c.l.b16 %v2490
        %v2816 = vunpack.c.h.b16 %v2490
        %v2817 = vunpack.c.l.b16 %v2491
        %v2818 = vunpack.c.h.b16 %v2491
        %v2819 = vunpack.c.l.b16 %v2492
        %v2820 = vunpack.c.h.b16 %v2492
        %v2821 = vunpack.c.l.b16 %v2493
        %v2822 = vunpack.c.h.b16 %v2493
        %v2823 = vunpack.c.l.b16 %v2494
        %v2824 = vunpack.c.h.b16 %v2494
        %v2825 = vunpack.c.l.b16 %v2495
        %v2826 = vunpack.c.h.b16 %v2495
        %v2827 = vunpack.c.l.b16 %v2496
        %v2828 = vunpack.c.h.b16 %v2496
        %v2829 = vunpack.c.l.b16 %v2497
        %v2830 = vunpack.c.h.b16 %v2497
        %v2831 = vunpack.c.l.b16 %v2498
        %v2832 = vunpack.c.h.b16 %v2498
        %v2833 = vunpack.c.l.b16 %v2499
        %v2834 = vunpack.c.h.b16 %v2499
        %v2835 = vunpack.c.l.b16 %v2500
        %v2836 = vunpack.c.h.b16 %v2500
        %v2837 = vunpack.c.l.b16 %v2501
        %v2838 = vunpack.c.h.b16 %v2501
        %v2839 = vunpack.c.l.b16 %v2502
        %v2840 = vunpack.c.h.b16 %v2502
        %v2841 = vunpack.c.l.b16 %v2503
        %v2842 = vunpack.c.h.b16 %v2503
        %v2843 = vunpack.c.l.b16 %v2504
        %v2844 = vunpack.c.h.b16 %v2504
        %v2845 = vunpack.c.l.b16 %v2505
        %v2846 = vunpack.c.h.b16 %v2505
        %v2847 = vunpack.c.l.b16 %v2506
        %v2848 = vunpack.c.h.b16 %v2506
        %v2849 = vunpack.c.l.b16 %v2507
        %v2850 = vunpack.c.h.b16 %v2507
        %v2851 = vunpack.c.l.b16 %v2508
        %v2852 = vunpack.c.h.b16 %v2508
        %v2853 = vunpack.c.l.b16 %v2509
        %v2854 = vunpack.c.h.b16 %v2509
        %v2855 = vunpack.c.l.b16 %v2510
        %v2856 = vunpack.c.h.b16 %v2510
        %v2857 = vunpack.c.l.b16 %v2511
        %v2858 = vunpack.c.h.b16 %v2511
        %v2859 = vunpack.c.l.b16 %v2512
        %v2860 = vunpack.c.h.b16 %v2512
        %v2861 = vunpack.c.l.b16 %v2513
        %v2862 = vunpack.c.h.b16 %v2513
        %v2863 = vunpack.c.l.b16 %v2514
        %v2864 = vunpack.c.h.b16 %v2514
        %v2865 = vunpack.c.l.b16 %v2515
        %v2866 = vunpack.c.h.b16 %v2515
        %v2867 = vunpack.c.l.b16 %v2516
        %v2868 = vunpack.c.h.b16 %v2516
        %v2869 = vunpack.c.l.b16 %v2517
        %v2870 = vunpack.c.h.b16 %v2517
        %v2871 = vunpack.c.l.b16 %v2518
        %v2872 = vunpack.c.h.b16 %v2518
        %v2873 = vunpack.c.l.b16 %v2519
        %v2874 = vunpack.c.h.b16 %v2519
        %v2875 = vunpack.c.l.b16 %v2520
        %v2876 = vunpack.c.h.b16 %v2520
        %v2877 = vunpack.c.l.b16 %v2521
        %v2878 = vunpack.c.h.b16 %v2521
        %v2879 = vunpack.c.l.b16 %v2522
        %v2880 = vunpack.c.h.b16 %v2522
        %v2881 = vunpack.c.l.b16 %v2523
        %v2882 = vunpack.c.h.b16 %v2523
        %v2883 = vunpack.c.l.b16 %v2524
        %v2884 = vunpack.c.h.b16 %v2524
        %v2885 = vunpack.c.l.b16 %v2525
        %v2886 = vunpack.c.h.b16 %v2525
        %v2887 = vunpack.c.l.b16 %v2526
        %v2888 = vunpack.c.h.b16 %v2526
        %v2889 = vunpack.c.l.b16 %v2527
        %v2890 = vunpack.c.h.b16 %v2527
        %v2891 = vunpack.c.l.b16 %v2528
        %v2892 = vunpack.c.h.b16 %v2528
        %v2893 = vunpack.c.l.b16 %v2529
        %v2894 = vunpack.c.h.b16 %v2529
        %v2895 = vunpack.c.l.b16 %v2530
        %v2896 = vunpack.c.h.b16 %v2530
        %v2897 = vunpack.c.l.b16 %v2531
        %v2898 = vunpack.c.h.b16 %v2531
        %v2899 = vunpack.c.l.b16 %v2532
        %v2900 = vunpack.c.h.b16 %v2532
        %v2901 = vunpack.c.l.b16 %v2533
        %v2902 = vunpack.c.h.b16 %v2533
        %v2903 = vunpack.c.l.b16 %v2534
        %v2904 = vunpack.c.h.b16 %v2534
        %v2905 = vunpack.c.l.b16 %v2535
        %v2906 = vunpack.c.h.b16 %v2535
        %v2907 = vunpack.c.l.b16 %v2536
        %v2908 = vunpack.c.h.b16 %v2536
        %v2909 = vunpack.c.l.b16 %v2537
        %v2910 = vunpack.c.h.b16 %v2537
        %v2911 = vunpack.c.l.b16 %v2538
        %v2912 = vunpack.c.h.b16 %v2538
        %v2913 = vunpack.c.l.b16 %v2539
        %v2914 = vunpack.c.h.b16 %v2539
        %v2915 = vunpack.c.l.b16 %v2540
        %v2916 = vunpack.c.h.b16 %v2540
        %v2917 = vunpack.c.l.b16 %v2541
        %v2918 = vunpack.c.h.b16 %v2541
        %v2919 = vunpack.c.l.b16 %v2542
        %v2920 = vunpack.c.h.b16 %v2542
        %v2921 = vunpack.c.l.b16 %v2543
        %v2922 = vunpack.c.h.b16 %v2543
        %v2923 = vunpack.c.l.b16 %v2544
        %v2924 = vunpack.c.h.b16 %v2544
        %v2925 = vunpack.c.l.b16 %v2545
        %v2926 = vunpack.c.h.b16 %v2545
        %v2927 = vunpack.c.l.b16 %v2546
        %v2928 = vunpack.c.h.b16 %v2546
        %v2929 = vunpack.c.l.b16 %v2547
        %v2930 = vunpack.c.h.b16 %v2547
        %v2931 = vunpack.c.l.b16 %v2548
        %v2932 = vunpack.c.h.b16 %v2548
        %v2933 = vunpack.c.l.b16 %v2549
        %v2934 = vunpack.c.h.b16 %v2549
        %v2935 = vunpack.c.l.b16 %v2550
        %v2936 = vunpack.c.h.b16 %v2550
        %v2937 = vunpack.c.l.b16 %v2551
        %v2938 = vunpack.c.h.b16 %v2551
        %v2939 = vunpack.c.l.b16 %v2552
        %v2940 = vunpack.c.h.b16 %v2552
        %v2941 = vunpack.c.l.b16 %v2553
        %v2942 = vunpack.c.h.b16 %v2553
        %v2943 = vunpack.c.l.b16 %v2554
        %v2944 = vunpack.c.h.b16 %v2554
        %v2945 = vunpack.c.l.b16 %v2555
        %v2946 = vunpack.c.h.b16 %v2555
        %v2947 = vunpack.c.l.b16 %v2556
        %v2948 = vunpack.c.h.b16 %v2556
        %v2949 = vunpack.c.l.b16 %v2557
        %v2950 = vunpack.c.h.b16 %v2557
        %v2951 = vunpack.c.l.b16 %v2558
        %v2952 = vunpack.c.h.b16 %v2558
        %v2953 = vunpack.c.l.b16 %v2559
        %v2954 = vunpack.c.h.b16 %v2559
        %v2955 = vunpack.c.l.b16 %v2560
        %v2956 = vunpack.c.h.b16 %v2560
        %v2957 = vunpack.c.l.b16 %v2561
        %v2958 = vunpack.c.h.b16 %v2561
        %v2959 = vunpack.c.l.b16 %v2562
        %v2960 = vunpack.c.h.b16 %v2562
        %v2961 = vunpack.c.l.b16 %v2563
        %v2962 = vunpack.c.h.b16 %v2563
        %v2963 = vunpack.c.l.b16 %v2564
        %v2964 = vunpack.c.h.b16 %v2564
        %v2965 = vunpack.c.l.b16 %v2565
        %v2966 = vunpack.c.h.b16 %v2565
        %v2967 = vunpack.c.l.b16 %v2566
        %v2968 = vunpack.c.h.b16 %v2566
        %v2969 = vunpack.c.l.b16 %v2567
        %v2970 = vunpack.c.h.b16 %v2567
        %v2971 = vunpack.c.l.b16 %v2568
        %v2972 = vunpack.c.h.b16 %v2568
        %v2973 = vunpack.c.l.b16 %v2569
        %v2974 = vunpack.c.h.b16 %v2569
        %v2975 = vunpack.c.l.b16 %v2570
        %v2976 = vunpack.c.h.b16 %v2570
        %v2977 = vunpack.c.l.b16 %v2571
        %v2978 = vunpack.c.h.b16 %v2571
        %v2979 = vunpack.c.l.b16 %v2572
        %v2980 = vunpack.c.h.b16 %v2572
        %v2981 = vunpack.c.l.b16 %v2573
        %v2982 = vunpack.c.h.b16 %v2573
        %v2983 = vunpack.c.l.b16 %v2574
        %v2984 = vunpack.c.h.b16 %v2574
        %v2985 = vunpack.c.l.b16 %v2575
        %v2986 = vunpack.c.h.b16 %v2575
        %v2987 = vunpack.c.l.b16 %v2576
        %v2988 = vunpack.c.h.b16 %v2576
        %v2989 = vunpack.c.l.b16 %v2577
        %v2990 = vunpack.c.h.b16 %v2577
        %v2991 = vunpack.c.l.b16 %v2578
        %v2992 = vunpack.c.h.b16 %v2578
        %v2993 = vunpack.c.l.b16 %v2579
        %v2994 = vunpack.c.h.b16 %v2579
        %v2995 = vunpack.c.l.b16 %v2580
        %v2996 = vunpack.c.h.b16 %v2580
        %v2997 = vunpack.c.l.b16 %v2581
        %v2998 = vunpack.c.h.b16 %v2581
        %v2999 = vunpack.c.l.b16 %v2582
        %v3000 = vunpack.c.h.b16 %v2582
        %v3001 = vunpack.c.l.b16 %v2583
        %v3002 = vunpack.c.h.b16 %v2583
        %v3003 = vunpack.c.l.b16 %v2584
        %v3004 = vunpack.c.h.b16 %v2584
        %v3005 = vunpack.c.l.b16 %v2585
        %v3006 = vunpack.c.h.b16 %v2585
        %v3007 = vunpack.c.l.b16 %v2586
        %v3008 = vunpack.c.h.b16 %v2586
        %v3009 = vunpack.c.l.b16 %v2587
        %v3010 = vunpack.c.h.b16 %v2587
        %v3011 = vunpack.c.l.b16 %v2588
        %v3012 = vunpack.c.h.b16 %v2588
        %v3013 = vunpack.c.l.b16 %v2589
        %v3014 = vunpack.c.h.b16 %v2589
        %v3015 = vunpack.c.l.b16 %v2590
        %v3016 = vunpack.c.h.b16 %v2590
        %v3017 = vpack.c.b16 %v2769, %v2761
        %v3018 = vpack.c.b16 %v2770, %v2762
        %v3019 = vpack.c.b16 %v2771, %v2763
        %v3020 = vpack.c.b16 %v2772, %v2764
        %v3021 = vpack.c.b16 %v2773, %v2765
        %v3022 = vpack.c.b16 %v2774, %v2766
        %v3023 = vpack.c.b16 %v2775, %v2767
        %v3024 = vpack.c.b16 %v2776, %v2768
        %v3025 = vpack.c.b16 %v2785, %v2777
        %v3026 = vpack.c.b16 %v2786, %v2778
        %v3027 = vpack.c.b16 %v2787, %v2779
        %v3028 = vpack.c.b16 %v2788, %v2780
        %v3029 = vpack.c.b16 %v2789, %v2781
        %v3030 = vpack.c.b16 %v2790, %v2782
        %v3031 = vpack.c.b16 %v2791, %v2783
        %v3032 = vpack.c.b16 %v2792, %v2784
        %v3033 = vpack.c.b16 %v2801, %v2793
        %v3034 = vpack.c.b16 %v2802, %v2794
        %v3035 = vpack.c.b16 %v2803, %v2795
        %v3036 = vpack.c.b16 %v2804, %v2796
        %v3037 = vpack.c.b16 %v2805, %v2797
        %v3038 = vpack.c.b16 %v2806, %v2798
        %v3039 = vpack.c.b16 %v2807, %v2799
        %v3040 = vpack.c.b16 %v2808, %v2800
        %v3041 = vpack.c.b16 %v2817, %v2809
        %v3042 = vpack.c.b16 %v2818, %v2810
        %v3043 = vpack.c.b16 %v2819, %v2811
        %v3044 = vpack.c.b16 %v2820, %v2812
        %v3045 = vpack.c.b16 %v2821, %v2813
        %v3046 = vpack.c.b16 %v2822, %v2814
        %v3047 = vpack.c.b16 %v2823, %v2815
        %v3048 = vpack.c.b16 %v2824, %v2816
        %v3049 = vpack.c.b16 %v2833, %v2825
        %v3050 = vpack.c.b16 %v2834, %v2826
        %v3051 = vpack.c.b16 %v2835, %v2827
        %v3052 = vpack.c.b16 %v2836, %v2828
        %v3053 = vpack.c.b16 %v2837, %v2829
        %v3054 = vpack.c.b16 %v2838, %v2830
        %v3055 = vpack.c.b16 %v2839, %v2831
        %v3056 = vpack.c.b16 %v2840, %v2832
        %v3057 = vpack.c.b16 %v2849, %v2841
        %v3058 = vpack.c.b16 %v2850, %v2842
        %v3059 = vpack.c.b16 %v2851, %v2843
        %v3060 = vpack.c.b16 %v2852, %v2844
        %v3061 = vpack.c.b16 %v2853, %v2845
        %v3062 = vpack.c.b16 %v2854, %v2846
        %v3063 = vpack.c.b16 %v2855, %v2847
        %v3064 = vpack.c.b16 %v2856, %v2848
        %v3065 = vpack.c.b16 %v2865, %v2857
        %v3066 = vpack.c.b16 %v2866, %v2858
        %v3067 = vpack.c.b16 %v2867, %v2859
        %v3068 = vpack.c.b16 %v2868, %v2860
        %v3069 = vpack.c.b16 %v2869, %v2861
        %v3070 = vpack.c.b16 %v2870, %v2862
        %v3071 = vpack.c.b16 %v2871, %v2863
        %v3072 = vpack.c.b16 %v2872, %v2864
        %v3073 = vpack.c.b16 %v2881, %v2873
        %v3074 = vpack.c.b16 %v2882, %v2874
        %v3075 = vpack.c.b16 %v2883, %v2875
        %v3076 = vpack.c.b16 %v2884, %v2876
        %v3077 = vpack.c.b16 %v2885, %v2877
        %v3078 = vpack.c.b16 %v2886, %v2878
        %v3079 = vpack.c.b16 %v2887, %v2879
        %v3080 = vpack.c.b16 %v2888, %v2880
        %v3081 = vpack.c.b16 %v2897, %v2889
        %v3082 = vpack.c.b16 %v2898, %v2890
        %v3083 = vpack.c.b16 %v2899, %v2891
        %v3084 = vpack.c.b16 %v2900, %v2892
        %v3085 = vpack.c.b16 %v2901, %v2893
        %v3086 = vpack.c.b16 %v2902, %v2894
        %v3087 = vpack.c.b16 %v2903, %v2895
        %v3088 = vpack.c.b16 %v2904, %v2896
        %v3089 = vpack.c.b16 %v2913, %v2905
        %v3090 = vpack.c.b16 %v2914, %v2906
        %v3091 = vpack.c.b16 %v2915, %v2907
        %v3092 = vpack.c.b16 %v2916, %v2908
        %v3093 = vpack.c.b16 %v2917, %v2909
        %v3094 = vpack.c.b16 %v2918, %v2910
        %v3095 = vpack.c.b16 %v2919, %v2911
        %v3096 = vpack.c.b16 %v2920, %v2912
        %v3097 = vpack.c.b16 %v2929, %v2921
        %v3098 = vpack.c.b16 %v2930, %v2922
        %v3099 = vpack.c.b16 %v2931, %v2923
        %v3100 = vpack.c.b16 %v2932, %v2924
        %v3101 = vpack.c.b16 %v2933, %v2925
        %v3102 = vpack.c.b16 %v2934, %v2926
        %v3103 = vpack.c.b16 %v2935, %v2927
        %v3104 = vpack.c.b16 %v2936, %v2928
        %v3105 = vpack.c.b16 %v2945, %v2937
        %v3106 = vpack.c.b16 %v2946, %v2938
        %v3107 = vpack.c.b16 %v2947, %v2939
        %v3108 = vpack.c.b16 %v2948, %v2940
        %v3109 = vpack.c.b16 %v2949, %v2941
        %v3110 = vpack.c.b16 %v2950, %v2942
        %v3111 = vpack.c.b16 %v2951, %v2943
        %v3112 = vpack.c.b16 %v2952, %v2944
        %v3113 = vpack.c.b16 %v2961, %v2953
        %v3114 = vpack.c.b16 %v2962, %v2954
        %v3115 = vpack.c.b16 %v2963, %v2955
        %v3116 = vpack.c.b16 %v2964, %v2956
        %v3117 = vpack.c.b16 %v2965, %v2957
        %v3118 = vpack.c.b16 %v2966, %v2958
        %v3119 = vpack.c.b16 %v2967, %v2959
        %v3120 = vpack.c.b16 %v2968, %v2960
        %v3121 = vpack.c.b16 %v2977, %v2969
        %v3122 = vpack.c.b16 %v2978, %v2970
        %v3123 = vpack.c.b16 %v2979, %v2971
        %v3124 = vpack.c.b16 %v2980, %v2972
        %v3125 = vpack.c.b16 %v2981, %v2973
        %v3126 = vpack.c.b16 %v2982, %v2974
        %v3127 = vpack.c.b16 %v2983, %v2975
        %v3128 = vpack.c.b16 %v2984, %v2976
        %v3129 = vpack.c.b16 %v2993, %v2985
        %v3130 = vpack.c.b16 %v2994, %v2986
        %v3131 = vpack.c.b16 %v2995, %v2987
        %v3132 = vpack.c.b16 %v2996, %v2988
        %v3133 = vpack.c.b16 %v2997, %v2989
        %v3134 = vpack.c.b16 %v2998, %v2990
        %v3135 = vpack.c.b16 %v2999, %v2991
        %v3136 = vpack.c.b16 %v3000, %v2992
        %v3137 = vpack.c.b16 %v3009, %v3001
        %v3138 = vpack.c.b16 %v3010, %v3002
        %v3139 = vpack.c.b16 %v3011, %v3003
        %v3140 = vpack.c.b16 %v3012, %v3004
        %v3141 = vpack.c.b16 %v3013, %v3005
        %v3142 = vpack.c.b16 %v3014, %v3006
        %v3143 = vpack.c.b16 %v3015, %v3007
        %v3144 = vpack.c.b16 %v3016, %v3008
        %3273 = vmatprep.subr.bf16.mxu0 %v3074
        %3274 = vmatpush1.bf16.msra.mxu0 %v3073
        %3275 = vmatprep.subr.bf16.mxu0 %v3066
        %3276 = vmatpush1.bf16.msra.mxu0 %v3065
        %3277 = vmatprep.subr.bf16.mxu0 %v3058
        %3278 = vmatpush1.bf16.msra.mxu0 %v3057
        %3279 = vmatprep.subr.bf16.mxu0 %v3050
        %3280 = vmatpush1.bf16.msra.mxu0 %v3049
        %3281 = vmatprep.subr.bf16.mxu0 %v3042
        %3282 = vmatpush1.bf16.msra.mxu0 %v3041
        %3283 = vmatprep.subr.bf16.mxu0 %v3034
        %3284 = vmatpush1.bf16.msra.mxu0 %v3033
        %3285 = vmatprep.subr.bf16.mxu0 %v3026
        %3286 = vmatpush1.bf16.msra.mxu0 %v3025
        %3287 = vmatprep.subr.bf16.mxu0 %v3018
        %3288 = vmatpush1.bf16.msra.mxu0 %v3017
        %3289 = vmatprep.subr.bf16.mxu0 %v3138
        %3290 = vmatpush2.bf16.msra.mxu0 %v3137
        %3291 = vmatprep.subr.bf16.mxu0 %v3130
        %3292 = vmatpush2.bf16.msra.mxu0 %v3129
        %3293 = vmatprep.subr.bf16.mxu0 %v3122
        %3294 = vmatpush2.bf16.msra.mxu0 %v3121
        %3295 = vmatprep.subr.bf16.mxu0 %v3114
        %3296 = vmatpush2.bf16.msra.mxu0 %v3113
        %3297 = vmatprep.subr.bf16.mxu0 %v3106
        %3298 = vmatpush2.bf16.msra.mxu0 %v3105
        %3299 = vmatprep.subr.bf16.mxu0 %v3098
        %3300 = vmatpush2.bf16.msra.mxu0 %v3097
        %3301 = vmatprep.subr.bf16.mxu0 %v3090
        %3302 = vmatpush2.bf16.msra.mxu0 %v3089
        %3303 = vmatprep.subr.bf16.mxu0 %v3082
        %3304 = vmatpush2.bf16.msra.mxu0 %v3081
        %3305 = vmatprep.mubr.bf16.mxu0 %v2462
        %3306 = vmatmul.mubr.bf16.gmra.mxu0 %v2461
        %v3307 = vpop.f32.mrf.mxu0
        %v3308 = vadd.f32 %v2596, %v3307
        %v3309 = vpop.f32.mrf.mxu0
        %v3310 = vadd.f32 %v2600, %v3309
        %v3311 = vpop.f32.mrf.mxu0
        %v3312 = vpop.f32.mrf.mxu0
        %3313 = vdwg.mxu0
        %3314 = vmatprep.subr.bf16.mxu0 %v3076
        %3315 = vmatpush1.bf16.msra.mxu0 %v3075
        %3316 = vmatprep.subr.bf16.mxu0 %v3068
        %3317 = vmatpush1.bf16.msra.mxu0 %v3067
        %3318 = vmatprep.subr.bf16.mxu0 %v3060
        %3319 = vmatpush1.bf16.msra.mxu0 %v3059
        %3320 = vmatprep.subr.bf16.mxu0 %v3052
        %3321 = vmatpush1.bf16.msra.mxu0 %v3051
        %3322 = vmatprep.subr.bf16.mxu0 %v3044
        %3323 = vmatpush1.bf16.msra.mxu0 %v3043
        %3324 = vmatprep.subr.bf16.mxu0 %v3036
        %3325 = vmatpush1.bf16.msra.mxu0 %v3035
        %3326 = vmatprep.subr.bf16.mxu0 %v3028
        %3327 = vmatpush1.bf16.msra.mxu0 %v3027
        %3328 = vmatprep.subr.bf16.mxu0 %v3020
        %3329 = vmatpush1.bf16.msra.mxu0 %v3019
        %3330 = vmatprep.subr.bf16.mxu0 %v3140
        %3331 = vmatpush2.bf16.msra.mxu0 %v3139
        %3332 = vmatprep.subr.bf16.mxu0 %v3132
        %3333 = vmatpush2.bf16.msra.mxu0 %v3131
        %3334 = vmatprep.subr.bf16.mxu0 %v3124
        %3335 = vmatpush2.bf16.msra.mxu0 %v3123
        %3336 = vmatprep.subr.bf16.mxu0 %v3116
        %3337 = vmatpush2.bf16.msra.mxu0 %v3115
        %3338 = vmatprep.subr.bf16.mxu0 %v3108
        %3339 = vmatpush2.bf16.msra.mxu0 %v3107
        %3340 = vmatprep.subr.bf16.mxu0 %v3100
        %3341 = vmatpush2.bf16.msra.mxu0 %v3099
        %3342 = vmatprep.subr.bf16.mxu0 %v3092
        %3343 = vmatpush2.bf16.msra.mxu0 %v3091
        %3344 = vmatprep.subr.bf16.mxu0 %v3084
        %3345 = vmatpush2.bf16.msra.mxu0 %v3083
        %3346 = vmatprep.mubr.bf16.mxu0 %v2462
        %3347 = vmatmul.mubr.bf16.gmra.mxu0 %v2461
        %v3348 = vpop.f32.mrf.mxu0
        %v3349 = vadd.f32 %v2604, %v3348
        %v3350 = vpop.f32.mrf.mxu0
        %v3351 = vadd.f32 %v2608, %v3350
        %v3352 = vpop.f32.mrf.mxu0
        %v3353 = vpop.f32.mrf.mxu0
        %3354 = vdwg.mxu0
        %3355 = vmatprep.subr.bf16.mxu0 %v3078
        %3356 = vmatpush1.bf16.msra.mxu0 %v3077
        %3357 = vmatprep.subr.bf16.mxu0 %v3070
        %3358 = vmatpush1.bf16.msra.mxu0 %v3069
        %3359 = vmatprep.subr.bf16.mxu0 %v3062
        %3360 = vmatpush1.bf16.msra.mxu0 %v3061
        %3361 = vmatprep.subr.bf16.mxu0 %v3054
        %3362 = vmatpush1.bf16.msra.mxu0 %v3053
        %3363 = vmatprep.subr.bf16.mxu0 %v3046
        %3364 = vmatpush1.bf16.msra.mxu0 %v3045
        %3365 = vmatprep.subr.bf16.mxu0 %v3038
        %3366 = vmatpush1.bf16.msra.mxu0 %v3037
        %3367 = vmatprep.subr.bf16.mxu0 %v3030
        %3368 = vmatpush1.bf16.msra.mxu0 %v3029
        %3369 = vmatprep.subr.bf16.mxu0 %v3022
        %3370 = vmatpush1.bf16.msra.mxu0 %v3021
        %3371 = vmatprep.subr.bf16.mxu0 %v3142
        %3372 = vmatpush2.bf16.msra.mxu0 %v3141
        %3373 = vmatprep.subr.bf16.mxu0 %v3134
        %3374 = vmatpush2.bf16.msra.mxu0 %v3133
        %3375 = vmatprep.subr.bf16.mxu0 %v3126
        %3376 = vmatpush2.bf16.msra.mxu0 %v3125
        %3377 = vmatprep.subr.bf16.mxu0 %v3118
        %3378 = vmatpush2.bf16.msra.mxu0 %v3117
        %3379 = vmatprep.subr.bf16.mxu0 %v3110
        %3380 = vmatpush2.bf16.msra.mxu0 %v3109
        %3381 = vmatprep.subr.bf16.mxu0 %v3102
        %3382 = vmatpush2.bf16.msra.mxu0 %v3101
        %3383 = vmatprep.subr.bf16.mxu0 %v3094
        %3384 = vmatpush2.bf16.msra.mxu0 %v3093
        %3385 = vmatprep.subr.bf16.mxu0 %v3086
        %3386 = vmatpush2.bf16.msra.mxu0 %v3085
        %3387 = vmatprep.mubr.bf16.mxu0 %v2462
        %3388 = vmatmul.mubr.bf16.gmra.mxu0 %v2461
        %v3389 = vpop.f32.mrf.mxu0
        %v3390 = vadd.f32 %v2612, %v3389
        %v3391 = vpop.f32.mrf.mxu0
        %v3392 = vadd.f32 %v2616, %v3391
        %v3393 = vpop.f32.mrf.mxu0
        %v3394 = vpop.f32.mrf.mxu0
        %3395 = vdwg.mxu0
        %3396 = vmatprep.subr.bf16.mxu0 %v3080
        %3397 = vmatpush1.bf16.msra.mxu0 %v3079
        %3398 = vmatprep.subr.bf16.mxu0 %v3072
        %3399 = vmatpush1.bf16.msra.mxu0 %v3071
        %3400 = vmatprep.subr.bf16.mxu0 %v3064
        %3401 = vmatpush1.bf16.msra.mxu0 %v3063
        %3402 = vmatprep.subr.bf16.mxu0 %v3056
        %3403 = vmatpush1.bf16.msra.mxu0 %v3055
        %3404 = vmatprep.subr.bf16.mxu0 %v3048
        %3405 = vmatpush1.bf16.msra.mxu0 %v3047
        %3406 = vmatprep.subr.bf16.mxu0 %v3040
        %3407 = vmatpush1.bf16.msra.mxu0 %v3039
        %3408 = vmatprep.subr.bf16.mxu0 %v3032
        %3409 = vmatpush1.bf16.msra.mxu0 %v3031
        %3410 = vmatprep.subr.bf16.mxu0 %v3024
        %3411 = vmatpush1.bf16.msra.mxu0 %v3023
        %3412 = vmatprep.subr.bf16.mxu0 %v3144
        %3413 = vmatpush2.bf16.msra.mxu0 %v3143
        %3414 = vmatprep.subr.bf16.mxu0 %v3136
        %3415 = vmatpush2.bf16.msra.mxu0 %v3135
        %3416 = vmatprep.subr.bf16.mxu0 %v3128
        %3417 = vmatpush2.bf16.msra.mxu0 %v3127
        %3418 = vmatprep.subr.bf16.mxu0 %v3120
        %3419 = vmatpush2.bf16.msra.mxu0 %v3119
        %3420 = vmatprep.subr.bf16.mxu0 %v3112
        %3421 = vmatpush2.bf16.msra.mxu0 %v3111
        %3422 = vmatprep.subr.bf16.mxu0 %v3104
        %3423 = vmatpush2.bf16.msra.mxu0 %v3103
        %3424 = vmatprep.subr.bf16.mxu0 %v3096
        %3425 = vmatpush2.bf16.msra.mxu0 %v3095
        %3426 = vmatprep.subr.bf16.mxu0 %v3088
        %3427 = vmatpush2.bf16.msra.mxu0 %v3087
        %3428 = vmatprep.mubr.bf16.mxu0 %v2462
        %3429 = vmatmul.mubr.bf16.gmra.mxu0 %v2461
        %v3430 = vpop.f32.mrf.mxu0
        %v3431 = vadd.f32 %v2620, %v3430
        %v3432 = vpop.f32.mrf.mxu0
        %v3433 = vadd.f32 %v2624, %v3432
        %v3434 = vpop.f32.mrf.mxu0
        %v3435 = vpop.f32.mrf.mxu0
        %3436 = vdwg.mxu0
        %v3437 = vmax.f32 %v3308, 0.0
        %v3438 = vmax.f32 %v3310, 0.0
        %v3439 = vmax.f32 %v3349, 0.0
        %v3440 = vmax.f32 %v3351, 0.0
        %v3441 = vmax.f32 %v3390, 0.0
        %v3442 = vmax.f32 %v3392, 0.0
        %v3443 = vmax.f32 %v3431, 0.0
        %v3444 = vmax.f32 %v3433, 0.0
        %v3445 = vpack.c.bf16 %v3437, %v3437
        %v3446 = vpack.c.bf16 %v3438, %v3438
        %v3447 = vpack.c.bf16 %v3439, %v3439
        %v3448 = vpack.c.bf16 %v3440, %v3440
        %v3449 = vpack.c.bf16 %v3441, %v3441
        %v3450 = vpack.c.bf16 %v3442, %v3442
        %v3451 = vpack.c.bf16 %v3443, %v3443
        %v3452 = vpack.c.bf16 %v3444, %v3444
        %v3453 = vld [vmem:[%s13] sm:$0xf]
        %v3454 = vld [vmem:[%s13 + $0x4] sm:$0xf]
        %v3455 = vld [vmem:[%s13 + $0x8] sm:$0xf]
        %v3456 = vld [vmem:[%s13 + $0xc] sm:$0xf]
        %v3457 = vld [vmem:[%s13 + $0x10] sm:$0xf]
        %v3458 = vld [vmem:[%s13 + $0x14] sm:$0xf]
        %v3459 = vld [vmem:[%s13 + $0x18] sm:$0xf]
        %v3460 = vld [vmem:[%s13 + $0x1c] sm:$0xf]
        %v3461 = vld [vmem:[%s13 + $0x20] sm:$0xf]
        %v3462 = vld [vmem:[%s13 + $0x24] sm:$0xf]
        %v3463 = vld [vmem:[%s13 + $0x28] sm:$0xf]
        %v3464 = vld [vmem:[%s13 + $0x2c] sm:$0xf]
        %v3465 = vld [vmem:[%s13 + $0x30] sm:$0xf]
        %v3466 = vld [vmem:[%s13 + $0x34] sm:$0xf]
        %v3467 = vld [vmem:[%s13 + $0x38] sm:$0xf]
        %v3468 = vld [vmem:[%s13 + $0x3c] sm:$0xf]
        %v3469 = vld [vmem:[%s13 + $0x40] sm:$0xf]
        %v3470 = vld [vmem:[%s13 + $0x44] sm:$0xf]
        %v3471 = vld [vmem:[%s13 + $0x48] sm:$0xf]
        %v3472 = vld [vmem:[%s13 + $0x4c] sm:$0xf]
        %v3473 = vld [vmem:[%s13 + $0x50] sm:$0xf]
        %v3474 = vld [vmem:[%s13 + $0x54] sm:$0xf]
        %v3475 = vld [vmem:[%s13 + $0x58] sm:$0xf]
        %v3476 = vld [vmem:[%s13 + $0x5c] sm:$0xf]
        %v3477 = vld [vmem:[%s13 + $0x60] sm:$0xf]
        %v3478 = vld [vmem:[%s13 + $0x64] sm:$0xf]
        %v3479 = vld [vmem:[%s13 + $0x68] sm:$0xf]
        %v3480 = vld [vmem:[%s13 + $0x6c] sm:$0xf]
        %v3481 = vld [vmem:[%s13 + $0x70] sm:$0xf]
        %v3482 = vld [vmem:[%s13 + $0x74] sm:$0xf]
        %v3483 = vld [vmem:[%s13 + $0x78] sm:$0xf]
        %v3484 = vld [vmem:[%s13 + $0x7c] sm:$0xf]
        %v3485 = vld [vmem:[%s13 + $0x80] sm:$0xf]
        %v3486 = vld [vmem:[%s13 + $0x84] sm:$0xf]
        %v3487 = vld [vmem:[%s13 + $0x88] sm:$0xf]
        %v3488 = vld [vmem:[%s13 + $0x8c] sm:$0xf]
        %v3489 = vld [vmem:[%s13 + $0x90] sm:$0xf]
        %v3490 = vld [vmem:[%s13 + $0x94] sm:$0xf]
        %v3491 = vld [vmem:[%s13 + $0x98] sm:$0xf]
        %v3492 = vld [vmem:[%s13 + $0x9c] sm:$0xf]
        %v3493 = vld [vmem:[%s13 + $0xa0] sm:$0xf]
        %v3494 = vld [vmem:[%s13 + $0xa4] sm:$0xf]
        %v3495 = vld [vmem:[%s13 + $0xa8] sm:$0xf]
        %v3496 = vld [vmem:[%s13 + $0xac] sm:$0xf]
        %v3497 = vld [vmem:[%s13 + $0xb0] sm:$0xf]
        %v3498 = vld [vmem:[%s13 + $0xb4] sm:$0xf]
        %v3499 = vld [vmem:[%s13 + $0xb8] sm:$0xf]
        %v3500 = vld [vmem:[%s13 + $0xbc] sm:$0xf]
        %v3501 = vld [vmem:[%s13 + $0xc0] sm:$0xf]
        %v3502 = vld [vmem:[%s13 + $0xc4] sm:$0xf]
        %v3503 = vld [vmem:[%s13 + $0xc8] sm:$0xf]
        %v3504 = vld [vmem:[%s13 + $0xcc] sm:$0xf]
        %v3505 = vld [vmem:[%s13 + $0xd0] sm:$0xf]
        %v3506 = vld [vmem:[%s13 + $0xd4] sm:$0xf]
        %v3507 = vld [vmem:[%s13 + $0xd8] sm:$0xf]
        %v3508 = vld [vmem:[%s13 + $0xdc] sm:$0xf]
        %v3509 = vld [vmem:[%s13 + $0xe0] sm:$0xf]
        %v3510 = vld [vmem:[%s13 + $0xe4] sm:$0xf]
        %v3511 = vld [vmem:[%s13 + $0xe8] sm:$0xf]
        %v3512 = vld [vmem:[%s13 + $0xec] sm:$0xf]
        %v3513 = vld [vmem:[%s13 + $0xf0] sm:$0xf]
        %v3514 = vld [vmem:[%s13 + $0xf4] sm:$0xf]
        %v3515 = vld [vmem:[%s13 + $0xf8] sm:$0xf]
        %v3516 = vld [vmem:[%s13 + $0xfc] sm:$0xf]
        %v3517 = vld [vmem:[%s13 + $0x100] sm:$0xf]
        %v3518 = vld [vmem:[%s13 + $0x104] sm:$0xf]
        %v3519 = vld [vmem:[%s13 + $0x108] sm:$0xf]
        %v3520 = vld [vmem:[%s13 + $0x10c] sm:$0xf]
        %v3521 = vld [vmem:[%s13 + $0x110] sm:$0xf]
        %v3522 = vld [vmem:[%s13 + $0x114] sm:$0xf]
        %v3523 = vld [vmem:[%s13 + $0x118] sm:$0xf]
        %v3524 = vld [vmem:[%s13 + $0x11c] sm:$0xf]
        %v3525 = vld [vmem:[%s13 + $0x120] sm:$0xf]
        %v3526 = vld [vmem:[%s13 + $0x124] sm:$0xf]
        %v3527 = vld [vmem:[%s13 + $0x128] sm:$0xf]
        %v3528 = vld [vmem:[%s13 + $0x12c] sm:$0xf]
        %v3529 = vld [vmem:[%s13 + $0x130] sm:$0xf]
        %v3530 = vld [vmem:[%s13 + $0x134] sm:$0xf]
        %v3531 = vld [vmem:[%s13 + $0x138] sm:$0xf]
        %v3532 = vld [vmem:[%s13 + $0x13c] sm:$0xf]
        %v3533 = vld [vmem:[%s13 + $0x140] sm:$0xf]
        %v3534 = vld [vmem:[%s13 + $0x144] sm:$0xf]
        %v3535 = vld [vmem:[%s13 + $0x148] sm:$0xf]
        %v3536 = vld [vmem:[%s13 + $0x14c] sm:$0xf]
        %v3537 = vld [vmem:[%s13 + $0x150] sm:$0xf]
        %v3538 = vld [vmem:[%s13 + $0x154] sm:$0xf]
        %v3539 = vld [vmem:[%s13 + $0x158] sm:$0xf]
        %v3540 = vld [vmem:[%s13 + $0x15c] sm:$0xf]
        %v3541 = vld [vmem:[%s13 + $0x160] sm:$0xf]
        %v3542 = vld [vmem:[%s13 + $0x164] sm:$0xf]
        %v3543 = vld [vmem:[%s13 + $0x168] sm:$0xf]
        %v3544 = vld [vmem:[%s13 + $0x16c] sm:$0xf]
        %v3545 = vld [vmem:[%s13 + $0x170] sm:$0xf]
        %v3546 = vld [vmem:[%s13 + $0x174] sm:$0xf]
        %v3547 = vld [vmem:[%s13 + $0x178] sm:$0xf]
        %v3548 = vld [vmem:[%s13 + $0x17c] sm:$0xf]
        %v3549 = vld [vmem:[%s13 + $0x180] sm:$0xf]
        %v3550 = vld [vmem:[%s13 + $0x184] sm:$0xf]
        %v3551 = vld [vmem:[%s13 + $0x188] sm:$0xf]
        %v3552 = vld [vmem:[%s13 + $0x18c] sm:$0xf]
        %v3553 = vld [vmem:[%s13 + $0x190] sm:$0xf]
        %v3554 = vld [vmem:[%s13 + $0x194] sm:$0xf]
        %v3555 = vld [vmem:[%s13 + $0x198] sm:$0xf]
        %v3556 = vld [vmem:[%s13 + $0x19c] sm:$0xf]
        %v3557 = vld [vmem:[%s13 + $0x1a0] sm:$0xf]
        %v3558 = vld [vmem:[%s13 + $0x1a4] sm:$0xf]
        %v3559 = vld [vmem:[%s13 + $0x1a8] sm:$0xf]
        %v3560 = vld [vmem:[%s13 + $0x1ac] sm:$0xf]
        %v3561 = vld [vmem:[%s13 + $0x1b0] sm:$0xf]
        %v3562 = vld [vmem:[%s13 + $0x1b4] sm:$0xf]
        %v3563 = vld [vmem:[%s13 + $0x1b8] sm:$0xf]
        %v3564 = vld [vmem:[%s13 + $0x1bc] sm:$0xf]
        %v3565 = vld [vmem:[%s13 + $0x1c0] sm:$0xf]
        %v3566 = vld [vmem:[%s13 + $0x1c4] sm:$0xf]
        %v3567 = vld [vmem:[%s13 + $0x1c8] sm:$0xf]
        %v3568 = vld [vmem:[%s13 + $0x1cc] sm:$0xf]
        %v3569 = vld [vmem:[%s13 + $0x1d0] sm:$0xf]
        %v3570 = vld [vmem:[%s13 + $0x1d4] sm:$0xf]
        %v3571 = vld [vmem:[%s13 + $0x1d8] sm:$0xf]
        %v3572 = vld [vmem:[%s13 + $0x1dc] sm:$0xf]
        %v3573 = vld [vmem:[%s13 + $0x1e0] sm:$0xf]
        %v3574 = vld [vmem:[%s13 + $0x1e4] sm:$0xf]
        %v3575 = vld [vmem:[%s13 + $0x1e8] sm:$0xf]
        %v3576 = vld [vmem:[%s13 + $0x1ec] sm:$0xf]
        %v3577 = vld [vmem:[%s13 + $0x1f0] sm:$0xf]
        %v3578 = vld [vmem:[%s13 + $0x1f4] sm:$0xf]
        %v3579 = vld [vmem:[%s13 + $0x1f8] sm:$0xf]
        %v3580 = vld [vmem:[%s13 + $0x1fc] sm:$0xf]
        %v3581 = vld [vmem:[%s14] sm:$0x1]
        %v3583 = vlaneseq
        %v3584 = vshrl.u32 %v3583, 7
        %v3585 = vsub.s32 0, %v3584
        %v3586 = vrot.slane %v3581, %v3585
        %v3716 = vunpack.c.l.b16 %v3453
        %v3717 = vunpack.c.l.b16 %v3454
        %v3718 = vunpack.c.l.b16 %v3455
        %v3719 = vunpack.c.l.b16 %v3456
        %v3720 = vunpack.c.l.b16 %v3457
        %v3721 = vunpack.c.l.b16 %v3458
        %v3722 = vunpack.c.l.b16 %v3459
        %v3723 = vunpack.c.l.b16 %v3460
        %v3724 = vunpack.c.l.b16 %v3461
        %v3725 = vunpack.c.l.b16 %v3462
        %v3726 = vunpack.c.l.b16 %v3463
        %v3727 = vunpack.c.l.b16 %v3464
        %v3728 = vunpack.c.l.b16 %v3465
        %v3729 = vunpack.c.l.b16 %v3466
        %v3730 = vunpack.c.l.b16 %v3467
        %v3731 = vunpack.c.l.b16 %v3468
        %v3732 = vunpack.c.l.b16 %v3469
        %v3733 = vunpack.c.l.b16 %v3470
        %v3734 = vunpack.c.l.b16 %v3471
        %v3735 = vunpack.c.l.b16 %v3472
        %v3736 = vunpack.c.l.b16 %v3473
        %v3737 = vunpack.c.l.b16 %v3474
        %v3738 = vunpack.c.l.b16 %v3475
        %v3739 = vunpack.c.l.b16 %v3476
        %v3740 = vunpack.c.l.b16 %v3477
        %v3741 = vunpack.c.l.b16 %v3478
        %v3742 = vunpack.c.l.b16 %v3479
        %v3743 = vunpack.c.l.b16 %v3480
        %v3744 = vunpack.c.l.b16 %v3481
        %v3745 = vunpack.c.l.b16 %v3482
        %v3746 = vunpack.c.l.b16 %v3483
        %v3747 = vunpack.c.l.b16 %v3484
        %v3748 = vunpack.c.l.b16 %v3485
        %v3749 = vunpack.c.l.b16 %v3486
        %v3750 = vunpack.c.l.b16 %v3487
        %v3751 = vunpack.c.l.b16 %v3488
        %v3752 = vunpack.c.l.b16 %v3489
        %v3753 = vunpack.c.l.b16 %v3490
        %v3754 = vunpack.c.l.b16 %v3491
        %v3755 = vunpack.c.l.b16 %v3492
        %v3756 = vunpack.c.l.b16 %v3493
        %v3757 = vunpack.c.l.b16 %v3494
        %v3758 = vunpack.c.l.b16 %v3495
        %v3759 = vunpack.c.l.b16 %v3496
        %v3760 = vunpack.c.l.b16 %v3497
        %v3761 = vunpack.c.l.b16 %v3498
        %v3762 = vunpack.c.l.b16 %v3499
        %v3763 = vunpack.c.l.b16 %v3500
        %v3764 = vunpack.c.l.b16 %v3501
        %v3765 = vunpack.c.l.b16 %v3502
        %v3766 = vunpack.c.l.b16 %v3503
        %v3767 = vunpack.c.l.b16 %v3504
        %v3768 = vunpack.c.l.b16 %v3505
        %v3769 = vunpack.c.l.b16 %v3506
        %v3770 = vunpack.c.l.b16 %v3507
        %v3771 = vunpack.c.l.b16 %v3508
        %v3772 = vunpack.c.l.b16 %v3509
        %v3773 = vunpack.c.l.b16 %v3510
        %v3774 = vunpack.c.l.b16 %v3511
        %v3775 = vunpack.c.l.b16 %v3512
        %v3776 = vunpack.c.l.b16 %v3513
        %v3777 = vunpack.c.l.b16 %v3514
        %v3778 = vunpack.c.l.b16 %v3515
        %v3779 = vunpack.c.l.b16 %v3516
        %v3780 = vunpack.c.l.b16 %v3517
        %v3781 = vunpack.c.l.b16 %v3518
        %v3782 = vunpack.c.l.b16 %v3519
        %v3783 = vunpack.c.l.b16 %v3520
        %v3784 = vunpack.c.l.b16 %v3521
        %v3785 = vunpack.c.l.b16 %v3522
        %v3786 = vunpack.c.l.b16 %v3523
        %v3787 = vunpack.c.l.b16 %v3524
        %v3788 = vunpack.c.l.b16 %v3525
        %v3789 = vunpack.c.l.b16 %v3526
        %v3790 = vunpack.c.l.b16 %v3527
        %v3791 = vunpack.c.l.b16 %v3528
        %v3792 = vunpack.c.l.b16 %v3529
        %v3793 = vunpack.c.l.b16 %v3530
        %v3794 = vunpack.c.l.b16 %v3531
        %v3795 = vunpack.c.l.b16 %v3532
        %v3796 = vunpack.c.l.b16 %v3533
        %v3797 = vunpack.c.l.b16 %v3534
        %v3798 = vunpack.c.l.b16 %v3535
        %v3799 = vunpack.c.l.b16 %v3536
        %v3800 = vunpack.c.l.b16 %v3537
        %v3801 = vunpack.c.l.b16 %v3538
        %v3802 = vunpack.c.l.b16 %v3539
        %v3803 = vunpack.c.l.b16 %v3540
        %v3804 = vunpack.c.l.b16 %v3541
        %v3805 = vunpack.c.l.b16 %v3542
        %v3806 = vunpack.c.l.b16 %v3543
        %v3807 = vunpack.c.l.b16 %v3544
        %v3808 = vunpack.c.l.b16 %v3545
        %v3809 = vunpack.c.l.b16 %v3546
        %v3810 = vunpack.c.l.b16 %v3547
        %v3811 = vunpack.c.l.b16 %v3548
        %v3812 = vunpack.c.l.b16 %v3549
        %v3813 = vunpack.c.l.b16 %v3550
        %v3814 = vunpack.c.l.b16 %v3551
        %v3815 = vunpack.c.l.b16 %v3552
        %v3816 = vunpack.c.l.b16 %v3553
        %v3817 = vunpack.c.l.b16 %v3554
        %v3818 = vunpack.c.l.b16 %v3555
        %v3819 = vunpack.c.l.b16 %v3556
        %v3820 = vunpack.c.l.b16 %v3557
        %v3821 = vunpack.c.l.b16 %v3558
        %v3822 = vunpack.c.l.b16 %v3559
        %v3823 = vunpack.c.l.b16 %v3560
        %v3824 = vunpack.c.l.b16 %v3561
        %v3825 = vunpack.c.l.b16 %v3562
        %v3826 = vunpack.c.l.b16 %v3563
        %v3827 = vunpack.c.l.b16 %v3564
        %v3828 = vunpack.c.l.b16 %v3565
        %v3829 = vunpack.c.l.b16 %v3566
        %v3830 = vunpack.c.l.b16 %v3567
        %v3831 = vunpack.c.l.b16 %v3568
        %v3832 = vunpack.c.l.b16 %v3569
        %v3833 = vunpack.c.l.b16 %v3570
        %v3834 = vunpack.c.l.b16 %v3571
        %v3835 = vunpack.c.l.b16 %v3572
        %v3836 = vunpack.c.l.b16 %v3573
        %v3837 = vunpack.c.l.b16 %v3574
        %v3838 = vunpack.c.l.b16 %v3575
        %v3839 = vunpack.c.l.b16 %v3576
        %v3840 = vunpack.c.l.b16 %v3577
        %v3841 = vunpack.c.l.b16 %v3578
        %v3842 = vunpack.c.l.b16 %v3579
        %v3843 = vunpack.c.l.b16 %v3580
        %v3844 = vpack.c.b16 %v3717, %v3716
        %v3845 = vpack.c.b16 %v3719, %v3718
        %v3846 = vpack.c.b16 %v3721, %v3720
        %v3847 = vpack.c.b16 %v3723, %v3722
        %v3848 = vpack.c.b16 %v3725, %v3724
        %v3849 = vpack.c.b16 %v3727, %v3726
        %v3850 = vpack.c.b16 %v3729, %v3728
        %v3851 = vpack.c.b16 %v3731, %v3730
        %v3852 = vpack.c.b16 %v3733, %v3732
        %v3853 = vpack.c.b16 %v3735, %v3734
        %v3854 = vpack.c.b16 %v3737, %v3736
        %v3855 = vpack.c.b16 %v3739, %v3738
        %v3856 = vpack.c.b16 %v3741, %v3740
        %v3857 = vpack.c.b16 %v3743, %v3742
        %v3858 = vpack.c.b16 %v3745, %v3744
        %v3859 = vpack.c.b16 %v3747, %v3746
        %v3860 = vpack.c.b16 %v3749, %v3748
        %v3861 = vpack.c.b16 %v3751, %v3750
        %v3862 = vpack.c.b16 %v3753, %v3752
        %v3863 = vpack.c.b16 %v3755, %v3754
        %v3864 = vpack.c.b16 %v3757, %v3756
        %v3865 = vpack.c.b16 %v3759, %v3758
        %v3866 = vpack.c.b16 %v3761, %v3760
        %v3867 = vpack.c.b16 %v3763, %v3762
        %v3868 = vpack.c.b16 %v3765, %v3764
        %v3869 = vpack.c.b16 %v3767, %v3766
        %v3870 = vpack.c.b16 %v3769, %v3768
        %v3871 = vpack.c.b16 %v3771, %v3770
        %v3872 = vpack.c.b16 %v3773, %v3772
        %v3873 = vpack.c.b16 %v3775, %v3774
        %v3874 = vpack.c.b16 %v3777, %v3776
        %v3875 = vpack.c.b16 %v3779, %v3778
        %v3876 = vpack.c.b16 %v3781, %v3780
        %v3877 = vpack.c.b16 %v3783, %v3782
        %v3878 = vpack.c.b16 %v3785, %v3784
        %v3879 = vpack.c.b16 %v3787, %v3786
        %v3880 = vpack.c.b16 %v3789, %v3788
        %v3881 = vpack.c.b16 %v3791, %v3790
        %v3882 = vpack.c.b16 %v3793, %v3792
        %v3883 = vpack.c.b16 %v3795, %v3794
        %v3884 = vpack.c.b16 %v3797, %v3796
        %v3885 = vpack.c.b16 %v3799, %v3798
        %v3886 = vpack.c.b16 %v3801, %v3800
        %v3887 = vpack.c.b16 %v3803, %v3802
        %v3888 = vpack.c.b16 %v3805, %v3804
        %v3889 = vpack.c.b16 %v3807, %v3806
        %v3890 = vpack.c.b16 %v3809, %v3808
        %v3891 = vpack.c.b16 %v3811, %v3810
        %v3892 = vpack.c.b16 %v3813, %v3812
        %v3893 = vpack.c.b16 %v3815, %v3814
        %v3894 = vpack.c.b16 %v3817, %v3816
        %v3895 = vpack.c.b16 %v3819, %v3818
        %v3896 = vpack.c.b16 %v3821, %v3820
        %v3897 = vpack.c.b16 %v3823, %v3822
        %v3898 = vpack.c.b16 %v3825, %v3824
        %v3899 = vpack.c.b16 %v3827, %v3826
        %v3900 = vpack.c.b16 %v3829, %v3828
        %v3901 = vpack.c.b16 %v3831, %v3830
        %v3902 = vpack.c.b16 %v3833, %v3832
        %v3903 = vpack.c.b16 %v3835, %v3834
        %v3904 = vpack.c.b16 %v3837, %v3836
        %v3905 = vpack.c.b16 %v3839, %v3838
        %v3906 = vpack.c.b16 %v3841, %v3840
        %v3907 = vpack.c.b16 %v3843, %v3842
        %3972 = vmatprep.subr.bf16.mxu0 0
        %3973 = vmatpush1.bf16.msra.mxu0 %v3851
        %3974 = vmatprep.subr.bf16.mxu0 0
        %3975 = vmatpush1.bf16.msra.mxu0 %v3850
        %3976 = vmatprep.subr.bf16.mxu0 0
        %3977 = vmatpush1.bf16.msra.mxu0 %v3849
        %3978 = vmatprep.subr.bf16.mxu0 0
        %3979 = vmatpush1.bf16.msra.mxu0 %v3848
        %3980 = vmatprep.subr.bf16.mxu0 0
        %3981 = vmatpush1.bf16.msra.mxu0 %v3847
        %3982 = vmatprep.subr.bf16.mxu0 0
        %3983 = vmatpush1.bf16.msra.mxu0 %v3846
        %3984 = vmatprep.subr.bf16.mxu0 0
        %3985 = vmatpush1.bf16.msra.mxu0 %v3845
        %3986 = vmatprep.subr.bf16.mxu0 0
        %3987 = vmatpush1.bf16.msra.mxu0 %v3844
        %3988 = vmatprep.subr.bf16.mxu0 0
        %3989 = vmatpush2.bf16.msra.mxu0 %v3859
        %3990 = vmatprep.subr.bf16.mxu0 0
        %3991 = vmatpush2.bf16.msra.mxu0 %v3858
        %3992 = vmatprep.subr.bf16.mxu0 0
        %3993 = vmatpush2.bf16.msra.mxu0 %v3857
        %3994 = vmatprep.subr.bf16.mxu0 0
        %3995 = vmatpush2.bf16.msra.mxu0 %v3856
        %3996 = vmatprep.subr.bf16.mxu0 0
        %3997 = vmatpush2.bf16.msra.mxu0 %v3855
        %3998 = vmatprep.subr.bf16.mxu0 0
        %3999 = vmatpush2.bf16.msra.mxu0 %v3854
        %4000 = vmatprep.subr.bf16.mxu0 0
        %4001 = vmatpush2.bf16.msra.mxu0 %v3853
        %4002 = vmatprep.subr.bf16.mxu0 0
        %4003 = vmatpush2.bf16.msra.mxu0 %v3852
        %4004 = vmatprep.mubr.bf16.mxu0 %v3446
        %4005 = vmatmul.mubr.bf16.gmra.mxu0 %v3445
        %v4006 = vpop.f32.mrf.mxu0
        %v4007 = vadd.f32 %v3586, %v4006
        %v4008 = vpop.f32.mrf.mxu0
        %v4009 = vpop.f32.mrf.mxu0
        %v4010 = vpop.f32.mrf.mxu0
        %4011 = vdwg.mxu0
        %4012 = vmatprep.subr.bf16.mxu0 0
        %4013 = vmatpush1.bf16.msra.mxu0 %v3867
        %4014 = vmatprep.subr.bf16.mxu0 0
        %4015 = vmatpush1.bf16.msra.mxu0 %v3866
        %4016 = vmatprep.subr.bf16.mxu0 0
        %4017 = vmatpush1.bf16.msra.mxu0 %v3865
        %4018 = vmatprep.subr.bf16.mxu0 0
        %4019 = vmatpush1.bf16.msra.mxu0 %v3864
        %4020 = vmatprep.subr.bf16.mxu0 0
        %4021 = vmatpush1.bf16.msra.mxu0 %v3863
        %4022 = vmatprep.subr.bf16.mxu0 0
        %4023 = vmatpush1.bf16.msra.mxu0 %v3862
        %4024 = vmatprep.subr.bf16.mxu0 0
        %4025 = vmatpush1.bf16.msra.mxu0 %v3861
        %4026 = vmatprep.subr.bf16.mxu0 0
        %4027 = vmatpush1.bf16.msra.mxu0 %v3860
        %4028 = vmatprep.subr.bf16.mxu0 0
        %4029 = vmatpush2.bf16.msra.mxu0 %v3875
        %4030 = vmatprep.subr.bf16.mxu0 0
        %4031 = vmatpush2.bf16.msra.mxu0 %v3874
        %4032 = vmatprep.subr.bf16.mxu0 0
        %4033 = vmatpush2.bf16.msra.mxu0 %v3873
        %4034 = vmatprep.subr.bf16.mxu0 0
        %4035 = vmatpush2.bf16.msra.mxu0 %v3872
        %4036 = vmatprep.subr.bf16.mxu0 0
        %4037 = vmatpush2.bf16.msra.mxu0 %v3871
        %4038 = vmatprep.subr.bf16.mxu0 0
        %4039 = vmatpush2.bf16.msra.mxu0 %v3870
        %4040 = vmatprep.subr.bf16.mxu0 0
        %4041 = vmatpush2.bf16.msra.mxu0 %v3869
        %4042 = vmatprep.subr.bf16.mxu0 0
        %4043 = vmatpush2.bf16.msra.mxu0 %v3868
        %4044 = vmatprep.mubr.bf16.mxu0 %v3448
        %4045 = vmatmul.mubr.bf16.gmra.mxu0 %v3447
        %v4046 = vpop.f32.mrf.mxu0
        %v4047 = vadd.f32 %v4007, %v4046
        %v4048 = vpop.f32.mrf.mxu0
        %v4049 = vpop.f32.mrf.mxu0
        %v4050 = vpop.f32.mrf.mxu0
        %4051 = vdwg.mxu0
        %4052 = vmatprep.subr.bf16.mxu0 0
        %4053 = vmatpush1.bf16.msra.mxu0 %v3883
        %4054 = vmatprep.subr.bf16.mxu0 0
        %4055 = vmatpush1.bf16.msra.mxu0 %v3882
        %4056 = vmatprep.subr.bf16.mxu0 0
        %4057 = vmatpush1.bf16.msra.mxu0 %v3881
        %4058 = vmatprep.subr.bf16.mxu0 0
        %4059 = vmatpush1.bf16.msra.mxu0 %v3880
        %4060 = vmatprep.subr.bf16.mxu0 0
        %4061 = vmatpush1.bf16.msra.mxu0 %v3879
        %4062 = vmatprep.subr.bf16.mxu0 0
        %4063 = vmatpush1.bf16.msra.mxu0 %v3878
        %4064 = vmatprep.subr.bf16.mxu0 0
        %4065 = vmatpush1.bf16.msra.mxu0 %v3877
        %4066 = vmatprep.subr.bf16.mxu0 0
        %4067 = vmatpush1.bf16.msra.mxu0 %v3876
        %4068 = vmatprep.subr.bf16.mxu0 0
        %4069 = vmatpush2.bf16.msra.mxu0 %v3891
        %4070 = vmatprep.subr.bf16.mxu0 0
        %4071 = vmatpush2.bf16.msra.mxu0 %v3890
        %4072 = vmatprep.subr.bf16.mxu0 0
        %4073 = vmatpush2.bf16.msra.mxu0 %v3889
        %4074 = vmatprep.subr.bf16.mxu0 0
        %4075 = vmatpush2.bf16.msra.mxu0 %v3888
        %4076 = vmatprep.subr.bf16.mxu0 0
        %4077 = vmatpush2.bf16.msra.mxu0 %v3887
        %4078 = vmatprep.subr.bf16.mxu0 0
        %4079 = vmatpush2.bf16.msra.mxu0 %v3886
        %4080 = vmatprep.subr.bf16.mxu0 0
        %4081 = vmatpush2.bf16.msra.mxu0 %v3885
        %4082 = vmatprep.subr.bf16.mxu0 0
        %4083 = vmatpush2.bf16.msra.mxu0 %v3884
        %4084 = vmatprep.mubr.bf16.mxu0 %v3450
        %4085 = vmatmul.mubr.bf16.gmra.mxu0 %v3449
        %v4086 = vpop.f32.mrf.mxu0
        %v4087 = vadd.f32 %v4047, %v4086
        %v4088 = vpop.f32.mrf.mxu0
        %v4089 = vpop.f32.mrf.mxu0
        %v4090 = vpop.f32.mrf.mxu0
        %4091 = vdwg.mxu0
        %4092 = vmatprep.subr.bf16.mxu0 0
        %4093 = vmatpush1.bf16.msra.mxu0 %v3899
        %4094 = vmatprep.subr.bf16.mxu0 0
        %4095 = vmatpush1.bf16.msra.mxu0 %v3898
        %4096 = vmatprep.subr.bf16.mxu0 0
        %4097 = vmatpush1.bf16.msra.mxu0 %v3897
        %4098 = vmatprep.subr.bf16.mxu0 0
        %4099 = vmatpush1.bf16.msra.mxu0 %v3896
        %4100 = vmatprep.subr.bf16.mxu0 0
        %4101 = vmatpush1.bf16.msra.mxu0 %v3895
        %4102 = vmatprep.subr.bf16.mxu0 0
        %4103 = vmatpush1.bf16.msra.mxu0 %v3894
        %4104 = vmatprep.subr.bf16.mxu0 0
        %4105 = vmatpush1.bf16.msra.mxu0 %v3893
        %4106 = vmatprep.subr.bf16.mxu0 0
        %4107 = vmatpush1.bf16.msra.mxu0 %v3892
        %4108 = vmatprep.subr.bf16.mxu0 0
        %4109 = vmatpush2.bf16.msra.mxu0 %v3907
        %4110 = vmatprep.subr.bf16.mxu0 0
        %4111 = vmatpush2.bf16.msra.mxu0 %v3906
        %4112 = vmatprep.subr.bf16.mxu0 0
        %4113 = vmatpush2.bf16.msra.mxu0 %v3905
        %4114 = vmatprep.subr.bf16.mxu0 0
        %4115 = vmatpush2.bf16.msra.mxu0 %v3904
        %4116 = vmatprep.subr.bf16.mxu0 0
        %4117 = vmatpush2.bf16.msra.mxu0 %v3903
        %4118 = vmatprep.subr.bf16.mxu0 0
        %4119 = vmatpush2.bf16.msra.mxu0 %v3902
        %4120 = vmatprep.subr.bf16.mxu0 0
        %4121 = vmatpush2.bf16.msra.mxu0 %v3901
        %4122 = vmatprep.subr.bf16.mxu0 0
        %4123 = vmatpush2.bf16.msra.mxu0 %v3900
        %4124 = vmatprep.mubr.bf16.mxu0 %v3452
        %4125 = vmatmul.mubr.bf16.gmra.mxu0 %v3451
        %v4126 = vpop.f32.mrf.mxu0
        %v4127 = vadd.f32 %v4087, %v4126
        %v4128 = vpop.f32.mrf.mxu0
        %v4129 = vpop.f32.mrf.mxu0
        %v4130 = vpop.f32.mrf.mxu0
        %4131 = vdwg.mxu0
        %v4132 = vmax.f32 %v4127, -11.512925
        %v4133 = vmin.f32 %v4132, 20.0
        %v4134 = vsub.f32 0.0, %v4133
        %v4135 = vmul.f32 %v4134, 1.442695
        %v4136 = vpow.pop %v4135
        %v4137 = vld [vmem:[%s15] sm:$0xf]
        %vm4138 = vcmask 31744
        %v4140 = vsel %vm4138, %v1976, 0
        %vm4142 = vcmask 1043456
        %v4144 = vsel %vm4142, %v4137, 0
        %4146 = vmatprep.subr.mxu0 0.0
        %4147 = vmatpush1.msra.mxu0 0.0
        %4148 = vmatprep.subr.mxu0 0.0
        %4149 = vmatpush1.msra.mxu0 0.0
        %4150 = vmatprep.subr.mxu0 0.0
        %4151 = vmatpush1.msra.mxu0 0.0
        %4152 = vmatprep.subr.mxu0 0.0
        %4153 = vmatpush1.msra.mxu0 0.0
        %4154 = vmatprep.subr.mxu0 0.0
        %4155 = vmatpush1.msra.mxu0 0.0
        %4156 = vmatprep.subr.mxu0 0.0
        %4157 = vmatpush1.msra.mxu0 0.0
        %4158 = vmatprep.subr.mxu0 0.0
        %4159 = vmatpush1.msra.mxu0 0.0
        %4160 = vmatprep.subr.mxu0 0.0
        %4161 = vmatpush1.msra.mxu0 0.0
        %4162 = vmatprep.subr.mxu0 0.0
        %4163 = vmatpush1.msra.mxu0 0.0
        %4164 = vmatprep.subr.mxu0 0.0
        %4165 = vmatpush1.msra.mxu0 0.0
        %4166 = vmatprep.subr.mxu0 0.0
        %4167 = vmatpush1.msra.mxu0 0.0
        %4168 = vmatprep.subr.mxu0 0.0
        %4169 = vmatpush1.msra.mxu0 0.0
        %4170 = vmatprep.subr.mxu0 0.0
        %4171 = vmatpush1.msra.mxu0 0.0
        %4172 = vmatprep.subr.mxu0 0.0
        %4173 = vmatpush1.msra.mxu0 0.0
        %4174 = vmatprep.subr.mxu0 0.0
        %4175 = vmatpush1.msra.mxu0 0.0
        %4176 = vmatprep.subr.mxu0 0.0
        %4177 = vmatpush1.msra.mxu0 %v4144
        %4178 = vmatprep.subr.mxu0 0.0
        %4179 = vmatpush2.msra.mxu0 0.0
        %4180 = vmatprep.subr.mxu0 0.0
        %4181 = vmatpush2.msra.mxu0 0.0
        %4182 = vmatprep.subr.mxu0 0.0
        %4183 = vmatpush2.msra.mxu0 0.0
        %4184 = vmatprep.subr.mxu0 0.0
        %4185 = vmatpush2.msra.mxu0 0.0
        %4186 = vmatprep.subr.mxu0 0.0
        %4187 = vmatpush2.msra.mxu0 0.0
        %4188 = vmatprep.subr.mxu0 0.0
        %4189 = vmatpush2.msra.mxu0 0.0
        %4190 = vmatprep.subr.mxu0 0.0
        %4191 = vmatpush2.msra.mxu0 0.0
        %4192 = vmatprep.subr.mxu0 0.0
        %4193 = vmatpush2.msra.mxu0 0.0
        %4194 = vmatprep.subr.mxu0 0.0
        %4195 = vmatpush2.msra.mxu0 0.0
        %4196 = vmatprep.subr.mxu0 0.0
        %4197 = vmatpush2.msra.mxu0 0.0
        %4198 = vmatprep.subr.mxu0 0.0
        %4199 = vmatpush2.msra.mxu0 0.0
        %4200 = vmatprep.subr.mxu0 0.0
        %4201 = vmatpush2.msra.mxu0 0.0
        %4202 = vmatprep.subr.mxu0 0.0
        %4203 = vmatpush2.msra.mxu0 0.0
        %4204 = vmatprep.subr.mxu0 0.0
        %4205 = vmatpush2.msra.mxu0 0.0
        %4206 = vmatprep.subr.mxu0 0.0
        %4207 = vmatpush2.msra.mxu0 0.0
        %4208 = vmatprep.subr.mxu0 0.0
        %4209 = vmatpush2.msra.mxu0 0.0
        %4210 = vmatprep.mubr.f32.mxu0 0.0
        %4211 = vmatmul.mubr.f32.gmra.mxu0 %v4140
        %v4212 = vpop.f32.mrf.mxu0
        %v4213 = vadd.f32 0.0, %v4212
        %v4214 = vpop.f32.mrf.mxu0
        %4215 = vdwg.mxu0
        %4217 = vrot.lane.b32.xlu0 %v4136, 96
        %v4218 = vpop.permute.xlu0 %4217
        %v4220 = vmul.f32 %v4213, %v4218
        %v4221 = vld [vmem:[%s16] sm:$0xff]
        %v4222 = vld [vmem:[%s16 + $0x8] sm:$0xff]
        %v4223 = vld [vmem:[%s16 + $0x10] sm:$0xff]
        %v4224 = vld [vmem:[%s16 + $0x18] sm:$0xff]
        %vm4225 = vcmask 261120
        %v4227 = vsel %vm4225, %v4220, 0
        %4229 = vmatprep.subr.mxu0 0.0
        %4230 = vmatpush1.msra.mxu0 0.0
        %4231 = vmatprep.subr.mxu0 0.0
        %4232 = vmatpush1.msra.mxu0 0.0
        %4233 = vmatprep.subr.mxu0 0.0
        %4234 = vmatpush1.msra.mxu0 0.0
        %4235 = vmatprep.subr.mxu0 0.0
        %4236 = vmatpush1.msra.mxu0 0.0
        %4237 = vmatprep.subr.mxu0 0.0
        %4238 = vmatpush1.msra.mxu0 0.0
        %4239 = vmatprep.subr.mxu0 0.0
        %4240 = vmatpush1.msra.mxu0 0.0
        %4241 = vmatprep.subr.mxu0 0.0
        %4242 = vmatpush1.msra.mxu0 0.0
        %4243 = vmatprep.subr.mxu0 0.0
        %4244 = vmatpush1.msra.mxu0 0.0
        %4245 = vmatprep.subr.mxu0 0.0
        %4246 = vmatpush1.msra.mxu0 0.0
        %4247 = vmatprep.subr.mxu0 0.0
        %4248 = vmatpush1.msra.mxu0 0.0
        %4249 = vmatprep.subr.mxu0 0.0
        %4250 = vmatpush1.msra.mxu0 0.0
        %4251 = vmatprep.subr.mxu0 0.0
        %4252 = vmatpush1.msra.mxu0 0.0
        %4253 = vmatprep.subr.mxu0 0.0
        %4254 = vmatpush1.msra.mxu0 %v4224
        %4255 = vmatprep.subr.mxu0 0.0
        %4256 = vmatpush1.msra.mxu0 %v4223
        %4257 = vmatprep.subr.mxu0 0.0
        %4258 = vmatpush1.msra.mxu0 %v4222
        %4259 = vmatprep.subr.mxu0 0.0
        %4260 = vmatpush1.msra.mxu0 %v4221
        %4261 = vmatprep.subr.mxu0 0.0
        %4262 = vmatpush2.msra.mxu0 0.0
        %4263 = vmatprep.subr.mxu0 0.0
        %4264 = vmatpush2.msra.mxu0 0.0
        %4265 = vmatprep.subr.mxu0 0.0
        %4266 = vmatpush2.msra.mxu0 0.0
        %4267 = vmatprep.subr.mxu0 0.0
        %4268 = vmatpush2.msra.mxu0 0.0
        %4269 = vmatprep.subr.mxu0 0.0
        %4270 = vmatpush2.msra.mxu0 0.0
        %4271 = vmatprep.subr.mxu0 0.0
        %4272 = vmatpush2.msra.mxu0 0.0
        %4273 = vmatprep.subr.mxu0 0.0
        %4274 = vmatpush2.msra.mxu0 0.0
        %4275 = vmatprep.subr.mxu0 0.0
        %4276 = vmatpush2.msra.mxu0 0.0
        %4277 = vmatprep.subr.mxu0 0.0
        %4278 = vmatpush2.msra.mxu0 0.0
        %4279 = vmatprep.subr.mxu0 0.0
        %4280 = vmatpush2.msra.mxu0 0.0
        %4281 = vmatprep.subr.mxu0 0.0
        %4282 = vmatpush2.msra.mxu0 0.0
        %4283 = vmatprep.subr.mxu0 0.0
        %4284 = vmatpush2.msra.mxu0 0.0
        %4285 = vmatprep.subr.mxu0 0.0
        %4286 = vmatpush2.msra.mxu0 0.0
        %4287 = vmatprep.subr.mxu0 0.0
        %4288 = vmatpush2.msra.mxu0 0.0
        %4289 = vmatprep.subr.mxu0 0.0
        %4290 = vmatpush2.msra.mxu0 0.0
        %4291 = vmatprep.subr.mxu0 0.0
        %4292 = vmatpush2.msra.mxu0 0.0
        %4293 = vmatprep.mubr.f32.mxu0 0.0
        %4294 = vmatmul.mubr.f32.gmra.mxu0 %v4227
        %v4295 = vpop.f32.mrf.mxu0
        %v4296 = vadd.f32 0.0, %v4295
        %v4297 = vpop.f32.mrf.mxu0
        %4298 = vdwg.mxu0
        %v4299 = vmul.f32 %v4220, %v4127
        %v4301 = vsel %vm4225, %v4299, 0
        %4303 = vmatprep.subr.mxu0 0.0
        %4304 = vmatpush1.msra.mxu0 0.0
        %4305 = vmatprep.subr.mxu0 0.0
        %4306 = vmatpush1.msra.mxu0 0.0
        %4307 = vmatprep.subr.mxu0 0.0
        %4308 = vmatpush1.msra.mxu0 0.0
        %4309 = vmatprep.subr.mxu0 0.0
        %4310 = vmatpush1.msra.mxu0 0.0
        %4311 = vmatprep.subr.mxu0 0.0
        %4312 = vmatpush1.msra.mxu0 0.0
        %4313 = vmatprep.subr.mxu0 0.0
        %4314 = vmatpush1.msra.mxu0 0.0
        %4315 = vmatprep.subr.mxu0 0.0
        %4316 = vmatpush1.msra.mxu0 0.0
        %4317 = vmatprep.subr.mxu0 0.0
        %4318 = vmatpush1.msra.mxu0 0.0
        %4319 = vmatprep.subr.mxu0 0.0
        %4320 = vmatpush1.msra.mxu0 0.0
        %4321 = vmatprep.subr.mxu0 0.0
        %4322 = vmatpush1.msra.mxu0 0.0
        %4323 = vmatprep.subr.mxu0 0.0
        %4324 = vmatpush1.msra.mxu0 0.0
        %4325 = vmatprep.subr.mxu0 0.0
        %4326 = vmatpush1.msra.mxu0 0.0
        %4327 = vmatprep.subr.mxu0 0.0
        %4328 = vmatpush1.msra.mxu0 %v4224
        %4329 = vmatprep.subr.mxu0 0.0
        %4330 = vmatpush1.msra.mxu0 %v4223
        %4331 = vmatprep.subr.mxu0 0.0
        %4332 = vmatpush1.msra.mxu0 %v4222
        %4333 = vmatprep.subr.mxu0 0.0
        %4334 = vmatpush1.msra.mxu0 %v4221
        %4335 = vmatprep.subr.mxu0 0.0
        %4336 = vmatpush2.msra.mxu0 0.0
        %4337 = vmatprep.subr.mxu0 0.0
        %4338 = vmatpush2.msra.mxu0 0.0
        %4339 = vmatprep.subr.mxu0 0.0
        %4340 = vmatpush2.msra.mxu0 0.0
        %4341 = vmatprep.subr.mxu0 0.0
        %4342 = vmatpush2.msra.mxu0 0.0
        %4343 = vmatprep.subr.mxu0 0.0
        %4344 = vmatpush2.msra.mxu0 0.0
        %4345 = vmatprep.subr.mxu0 0.0
        %4346 = vmatpush2.msra.mxu0 0.0
        %4347 = vmatprep.subr.mxu0 0.0
        %4348 = vmatpush2.msra.mxu0 0.0
        %4349 = vmatprep.subr.mxu0 0.0
        %4350 = vmatpush2.msra.mxu0 0.0
        %4351 = vmatprep.subr.mxu0 0.0
        %4352 = vmatpush2.msra.mxu0 0.0
        %4353 = vmatprep.subr.mxu0 0.0
        %4354 = vmatpush2.msra.mxu0 0.0
        %4355 = vmatprep.subr.mxu0 0.0
        %4356 = vmatpush2.msra.mxu0 0.0
        %4357 = vmatprep.subr.mxu0 0.0
        %4358 = vmatpush2.msra.mxu0 0.0
        %4359 = vmatprep.subr.mxu0 0.0
        %4360 = vmatpush2.msra.mxu0 0.0
        %4361 = vmatprep.subr.mxu0 0.0
        %4362 = vmatpush2.msra.mxu0 0.0
        %4363 = vmatprep.subr.mxu0 0.0
        %4364 = vmatpush2.msra.mxu0 0.0
        %4365 = vmatprep.subr.mxu0 0.0
        %4366 = vmatpush2.msra.mxu0 0.0
        %4367 = vmatprep.mubr.f32.mxu0 0.0
        %4368 = vmatmul.mubr.f32.gmra.mxu0 %v4301
        %v4369 = vpop.f32.mrf.mxu0
        %v4370 = vadd.f32 0.0, %v4369
        %v4371 = vpop.f32.mrf.mxu0
        %4372 = vdwg.mxu0
        %v4373 = vmax.f32 %v4296, 1e-05
        %v4374 = vrcp.pop %v4373
        %v4375 = vmul.f32 1.0, %v4374
        %v4376 = vmul.f32 %v4370, %v4375
        %v4377 = vmax.f32 %v4375, 1e-05
        %v4378 = vlog2.pop %v4377
        %v4379 = vmul.f32 %v4378, 0.6931472
        %vm4380 = vcmask 64512
        %4381 = vst.msk [vmem:[%s587] sm:$0xff] %vm4380, %v4376
        %4383 = vrot.lane.b32.xlu0 %v4379, 8
        %v4384 = vpop.permute.xlu0 %4383
        %vm4386 = vcmask 130112
        %4387 = vst.msk [vmem:[%s587] sm:$0xff] %vm4386, %v4384
        %p4388 = scmp.lt.s32.totalorder %s30, 1
        %s4389 = scalar_select %p4388, %s30, 1
        %s4390 = smul.addr %s4389, 8
        %s4391 = scalar_lea.vmem %s17, %s4390
        // Predicated region
        $region101: #{mcp_vision_forward.1} parent=87 // pred_check
          %p4392 = pneg %p410
        $region102: #{mcp_vision_forward.1} parent=87 // pred_check_branch
          %4394 = sbr.rel (%p4392) target = $region104
        $region103: #{mcp_vision_forward.1} parent=87 // pred_region
          _
        $region104: #{mcp_vision_forward.1} parent=87 // pred_fallthru
          _
      $region88: #{mcp_vision_forward.1} parent=5 // pred_fallthru
        _
      %p4395 = scmp.le.s32.totalorder 2, %s25
      // Predicated region
      $region105: #{mcp_vision_forward.1} parent=5 // pred_check
        %p4396 = pneg %p4395
      $region106: #{mcp_vision_forward.1} parent=5 // pred_check_branch
        %4398 = sbr.rel (%p4396) target = $region108
      $region107: #{mcp_vision_forward.1} parent=5 // pred_region
        %s4399 = ssub.s32 %s25, 2
        // Predicated region
        $region109: #{mcp_vision_forward.1} parent=107 // pred_check
          %p4400 = pneg %p416
        $region110: #{mcp_vision_forward.1} parent=107 // pred_check_branch
          %4402 = sbr.rel (%p4400) target = $region112
        $region111: #{mcp_vision_forward.1} parent=107 // pred_region
          %p4403 = scmp.lt.s32.totalorder %s31, 1
          %s4404 = scalar_select %p4403, %s31, 1
          %s4405 = smul.addr %s4404, 8
          %s4406 = scalar_lea.vmem %s17, %s4405
        $region112: #{mcp_vision_forward.1} parent=107 // pred_fallthru
          _
      $region108: #{mcp_vision_forward.1} parent=5 // pred_fallthru
        _
    $region6: #{mcp_vision_forward.1} parent=1 // loop_footer
      %s29 = sadd.s32 1, %s25
    $region7: #{mcp_vision_forward.1} parent=1 // loop_footer_branch
      %24 = sbr.rel target = $region3
    $region8: #{mcp_vision_forward.1} parent=1 // loop_exit
      _
    %4407 = vsyncpa [#allocation3], 1
    %s4408 = scalar_lea.sflag [#allocation3], 1
    %4409 = vsyncpa %s4408, 1
    %4410 = vsyncpa [#allocation5], 1

</llo_original>
